<compile_context>
chip_gen: v7x
topology: tpu7x:2x2x1
jax: 0.10.0
libtpu: 0.0.40
codegen_flags: <defaults>
</compile_context>

<pallas_src>
import functools

import jax
import jax.numpy as jnp
from jax import lax
from jax.experimental import pallas as pl
from jax.experimental.pallas import tpu as pltpu


def _round_up(x, m):
    return (x + m - 1) // m * m


def _tpu_generation():
    """Best-effort TPU-generation probe; conservative fallbacks if unknown."""
    try:
        kind = jax.devices()[0].device_kind.lower()
    except Exception:  # pragma: no cover
        kind = ""
    is_v7 = ("v7" in kind) or ("7x" in kind)
    is_v6 = "v6" in kind
    is_v5 = "v5" in kind
    return is_v5, is_v6, is_v7


def _choose_tc(seq_len, cap):
    """Largest multiple-of-8 chunk <= cap that divides round_up(seq_len, 8).

    Keeps padded x rows confined to (at most) the final chunk's DMA; the final
    chunk's *compute* trip count is exact regardless, so no masked steps run.
    """
    cap = max(8, cap // 8 * 8)
    t8 = _round_up(seq_len, 8)
    if t8 <= cap:
        return t8
    best = 8
    for tc in range(8, cap + 1, 8):
        if t8 % tc == 0:
            best = tc
    return best


def _textsubnet_kernel(x_ref,      # (Tc, Bb, Dk)   time-major input chunk
                       wih_ref,    # (Dk, 4Hp)      gate-blocked W_ih^T
                       whh_ref,    # (Hp, 4Hp)      gate-blocked W_hh^T
                       b_ref,      # (1, 4Hp)       b_ih + b_hh (f32)
                       w1_ref,     # (Hp, Op)       linear_1 weight^T
                       b1_ref,     # (1, Op)
                       w2_ref,     # (Op, Op)       linear_2 weight^T
                       b2_ref,     # (1, Op)
                       o_ref,      # (Bb, Op)       output slab
                       gx_scr,     # VMEM (Tc*Bb, 4Hp) f32: hoisted x-projection
                       h_scr,      # VMEM (Bb, Hp) compute dtype: hidden state
                       c_scr,      # VMEM (Bb, Hp) f32: cell state
                       *, n_chunks, steps_last, unroll, gate_dtype):
    t_chunk = pl.program_id(1)            # time-chunk index ("arbitrary" axis)
    Tc, Bb, Dk = x_ref.shape
    Hp = whh_ref.shape[0]

    @pl.when(t_chunk == 0)
    def _init():
        h_scr[...] = jnp.zeros_like(h_scr)
        c_scr[...] = jnp.zeros_like(c_scr)

    # ---- Hoisted input projection: ONE MXU matmul for the whole chunk.
    # (Tc, Bb, Dk) -> (Tc*Bb, Dk) collapses leading dims only (Bb is a multiple
    # of the sublane pack, so this is a layout relabel, not a VMEM copy).
    # Bias broadcast happens once per chunk.
    x_chunk = x_ref[...].reshape(Tc * Bb, Dk)
    gx_scr[...] = (jnp.dot(x_chunk, wih_ref[...],
                           preferred_element_type=jnp.float32)
                   + b_ref[...])                       # (Tc*Bb, 4Hp) f32

    # ---- Serial recurrence: only h @ W_hh^T remains on the critical path.
    def step(t, carry):
        row = pl.multiple_of(t * Bb, Bb)               # aligned sublane offset
        gates = gx_scr[pl.ds(row, Bb), :] + jnp.dot(
            h_scr[...], whh_ref[...],
            preferred_element_type=jnp.float32)        # (Bb, 4Hp) f32
        # Gate nonlinearities in gate_dtype (bf16 on v6e/v7x EUP, f32 otherwise).
        g = gates.astype(gate_dtype)
        # PyTorch gate order i, f, g, o; each slice is lane-aligned (Hp % 128 == 0).
        i_g = jax.nn.sigmoid(g[:, 0 * Hp:1 * Hp])
        f_g = jax.nn.sigmoid(g[:, 1 * Hp:2 * Hp])
        g_g = jnp.tanh(g[:, 2 * Hp:3 * Hp])
        o_g = jax.nn.sigmoid(g[:, 3 * Hp:4 * Hp])
        c_new = f_g * c_scr[...] + i_g * g_g           # promoted to f32
        h_new = o_g * jnp.tanh(c_new)
        c_scr[...] = c_new.astype(c_scr.dtype)
        h_scr[...] = h_new.astype(h_scr.dtype)
        return carry

    def run(n_steps):                                  # n_steps is a static int
        lax.fori_loop(0, n_steps, step, 0,
                      unroll=max(1, min(unroll, n_steps)))

    # Static specialization: non-final chunks run Tc steps; the final chunk
    # runs exactly `steps_last` steps (no masked / padded steps ever execute).
    if n_chunks == 1:
        run(steps_last)
    elif steps_last == Tc:
        run(Tc)
    else:
        @pl.when(t_chunk < n_chunks - 1)
        def _full_chunks():
            run(Tc)

        @pl.when(t_chunk == n_chunks - 1)
        def _tail_chunk():
            run(steps_last)

    # ---- Head: h_n -> Linear+ReLU -> Linear+ReLU (dropout = identity).
    @pl.when(t_chunk == n_chunks - 1)
    def _head():
        z1 = jnp.maximum(
            jnp.dot(h_scr[...], w1_ref[...], preferred_element_type=jnp.float32)
            + b1_ref[...], 0.0)
        z2 = jnp.maximum(
            jnp.dot(z1.astype(w2_ref.dtype), w2_ref[...],
                    preferred_element_type=jnp.float32) + b2_ref[...], 0.0)
        o_ref[...] = z2.astype(o_ref.dtype)


def text_subnet_forward(x, params, *, compute_dtype=jnp.bfloat16,
                        time_chunk=None):
    """x: (B, T, in_size) float32, batch_first (PyTorch convention)."""
    B, T, D = x.shape
    H = params["w_hh"].shape[1]          # w_hh: (4H, H)
    O = params["w1"].shape[0]            # w1:   (O, H)

    is_v5, is_v6, is_v7 = _tpu_generation()

    # ---- generation-aware knobs ----
    if is_v7:
        vmem_limit = 48 * 2**20          # 64 MiB physical per TC: leave headroom
    elif is_v5 or is_v6:
        vmem_limit = 100 * 2**20         # 128 MiB physical
    else:
        vmem_limit = 48 * 2**20          # unknown generation: be conservative
    bb_cap = 256 if (is_v6 or is_v7) else 128            # MXU M rows
    bf16_gates = (compute_dtype == jnp.bfloat16) and (is_v6 or is_v7)
    gate_dtype = compute_dtype if bf16_gates else jnp.float32

    # ---- hardware-tile padded sizes ----
    itemsize = jnp.dtype(compute_dtype).itemsize
    sub = 8 if compute_dtype == jnp.float32 else 16       # sublane pack
    Bb = max(sub, min(bb_cap, _round_up(B, sub)))         # batch block
    # TODO(synk): on v7x with B > Bb, prefer Bb such that nb is even so both
    #             TensorCores get a batch shard.
    Bp = _round_up(B, Bb)
    nb = Bp // Bb
    # Keep the feature (K) dim only sublane-pack aligned (NOT padded to 128):
    # cuts x HBM->VMEM DMA up to 8x for small D; MXU cost is unchanged.
    Dk = _round_up(D, sub)
    Hp = _round_up(H, 128)
    Op = _round_up(O, 128)

    # ---- time chunk sized from the VMEM budget, then snapped to a divisor of
    #      round_up(T, 8); the final chunk runs an exact static step count. ----
    weight_bytes = 2 * (Dk * 4 * Hp + Hp * 4 * Hp + Hp * Op + Op * Op) * itemsize
    bias_bytes = 2 * (4 * Hp + 2 * Op) * 4
    state_bytes = Bb * Hp * (itemsize + 4)
    budget = int(vmem_limit * 0.7) - weight_bytes - bias_bytes - state_bytes
    per_step_bytes = Bb * 4 * Hp * 4 + 2 * Bb * Dk * itemsize   # gx + 2x x bufs
    tc_cap = max(8, min(256, budget // max(per_step_bytes, 1)))
    if time_chunk is not None:                                  # explicit override
        Tc = max(8, _round_up(int(time_chunk), 8))
    else:
        Tc = _choose_tc(T, tc_cap)
    T_pad = _round_up(T, Tc)
    nt = T_pad // Tc
    steps_last = T - (nt - 1) * Tc                              # static, in (0, Tc]

    # unroll sized from the live (Bb, 4Hp) f32 gate footprint to avoid spills.
    gate_bytes = Bb * 4 * Hp * 4
    if gate_bytes <= 64 * 1024:
        unroll = 8
    elif gate_bytes <= 192 * 1024:
        unroll = 4
    else:
        unroll = 2

    # ---- pad / transpose parameters once (gate-blocked so each gate occupies a
    #      lane-aligned 128-multiple column block; padded columns are zero) ----
    f32 = jnp.float32
    w_ih4 = jnp.pad(params["w_ih"].astype(f32).reshape(4, H, D),
                    ((0, 0), (0, Hp - H), (0, Dk - D)))             # (4,Hp,Dk)
    wih_t = jnp.transpose(w_ih4, (2, 0, 1)).reshape(Dk, 4 * Hp)
    w_hh4 = jnp.pad(params["w_hh"].astype(f32).reshape(4, H, H),
                    ((0, 0), (0, Hp - H), (0, Hp - H)))             # (4,Hp,Hp)
    whh_t = jnp.transpose(w_hh4, (2, 0, 1)).reshape(Hp, 4 * Hp)
    bias = jnp.pad((params["b_ih"] + params["b_hh"]).astype(f32).reshape(4, H),
                   ((0, 0), (0, Hp - H))).reshape(1, 4 * Hp)
    w1_t = jnp.pad(params["w1"].astype(f32).T, ((0, Hp - H), (0, Op - O)))
    b1 = jnp.pad(params["b1"].astype(f32), (0, Op - O)).reshape(1, Op)
    w2_t = jnp.pad(params["w2"].astype(f32).T, ((0, Op - O), (0, Op - O)))
    b2 = jnp.pad(params["b2"].astype(f32), (0, Op - O)).reshape(1, Op)

    # MXU operands in compute_dtype (bf16 on all current gens); biases stay f32.
    wih_t = wih_t.astype(compute_dtype)
    whh_t = whh_t.astype(compute_dtype)
    w1_t = w1_t.astype(compute_dtype)
    w2_t = w2_t.astype(compute_dtype)

    # time-major, padded, compute-dtype input (one fused XLA pad+transpose+cast)
    x_tm = jnp.transpose(x, (1, 0, 2))                               # (T,B,D)
    x_tm = jnp.pad(x_tm, ((0, T_pad - T), (0, Bp - B), (0, Dk - D)))
    x_tm = x_tm.astype(compute_dtype)

    kernel = functools.partial(
        _textsubnet_kernel,
        n_chunks=nt, steps_last=steps_last, unroll=unroll, gate_dtype=gate_dtype)

    # NOTE: the weight/bias BlockSpecs use constant index maps, so they are
    # DMA'd only once per core; their double-buffered footprint is already
    # subtracted from the Tc budget above.
    out = pl.pallas_call(
        kernel,
        out_shape=jax.ShapeDtypeStruct((Bp, Op), jnp.float32),
        grid_spec=pltpu.PrefetchScalarGridSpec(
            num_scalar_prefetch=0,
            grid=(nb, nt),
            in_specs=[
                pl.BlockSpec((Tc, Bb, Dk), lambda b, t: (t, b, 0)),   # x chunk
                pl.BlockSpec((Dk, 4 * Hp), lambda b, t: (0, 0)),      # W_ih^T
                pl.BlockSpec((Hp, 4 * Hp), lambda b, t: (0, 0)),      # W_hh^T
                pl.BlockSpec((1, 4 * Hp), lambda b, t: (0, 0)),       # bias
                pl.BlockSpec((Hp, Op), lambda b, t: (0, 0)),          # W1^T
                pl.BlockSpec((1, Op), lambda b, t: (0, 0)),           # b1
                pl.BlockSpec((Op, Op), lambda b, t: (0, 0)),          # W2^T
                pl.BlockSpec((1, Op), lambda b, t: (0, 0)),           # b2
            ],
            out_specs=pl.BlockSpec((Bb, Op), lambda b, t: (b, 0)),
            scratch_shapes=[
                pltpu.VMEM((Tc * Bb, 4 * Hp), jnp.float32),   # hoisted x-proj
                pltpu.VMEM((Bb, Hp), compute_dtype),          # h state
                pltpu.VMEM((Bb, Hp), jnp.float32),            # c state
            ],
        ),
        compiler_params=pltpu.CompilerParams(
            dimension_semantics=("parallel", "arbitrary"),
            vmem_limit_bytes=vmem_limit,
        ),
    )(x_tm, wih_t, whh_t, bias, w1_t, b1, w2_t, b2)

    return out[:B, :O]


def _reference_forward(x, params):
    """Pure-JAX reference (mirrors the PyTorch forward, dropout in eval)."""
    B, T, D = x.shape
    H = params["w_hh"].shape[1]
    w_ih, w_hh = params["w_ih"], params["w_hh"]
    b = params["b_ih"] + params["b_hh"]

    def step(carry, x_t):
        h, c = carry
        gates = x_t @ w_ih.T + h @ w_hh.T + b
        i = jax.nn.sigmoid(gates[:, 0 * H:1 * H])
        f = jax.nn.sigmoid(gates[:, 1 * H:2 * H])
        g = jnp.tanh(gates[:, 2 * H:3 * H])
        o = jax.nn.sigmoid(gates[:, 3 * H:4 * H])
        c = f * c + i * g
        h = o * jnp.tanh(c)
        return (h, c), None

    h0 = jnp.zeros((B, H), jnp.float32)
    c0 = jnp.zeros((B, H), jnp.float32)
    (hT, _), _ = lax.scan(step, (h0, c0), jnp.transpose(x, (1, 0, 2)))
    z1 = jnp.maximum(hT @ params["w1"].T + params["b1"], 0.0)
    z2 = jnp.maximum(z1 @ params["w2"].T + params["b2"], 0.0)
    return z2


def init_params(key, in_size, hidden_size, out_size):
    """Deterministic synthetic parameters (PyTorch-style uniform init)."""
    ks = jax.random.split(key, 8)
    s_rnn = 1.0 / jnp.sqrt(hidden_size)
    s_l1 = 1.0 / jnp.sqrt(hidden_size)
    s_l2 = 1.0 / jnp.sqrt(out_size)
    u = lambda k, shape, s: jax.random.uniform(k, shape, jnp.float32, -s, s)
    return {
        "w_ih": u(ks[0], (4 * hidden_size, in_size), s_rnn),
        "w_hh": u(ks[1], (4 * hidden_size, hidden_size), s_rnn),
        "b_ih": u(ks[2], (4 * hidden_size,), s_rnn),
        "b_hh": u(ks[3], (4 * hidden_size,), s_rnn),
        "w1": u(ks[4], (out_size, hidden_size), s_l1),
        "b1": u(ks[5], (out_size,), s_l1),
        "w2": u(ks[6], (out_size, out_size), s_l2),
        "b2": u(ks[7], (out_size,), s_l2),
    }


if __name__ == "__main__":
    key = jax.random.PRNGKey(0)

    # --- Config 1: small reference shapes (single time chunk). ---
    B, T, IN, HID, OUT = 2, 8, 16, 32, 16
    k_x, k_p, key = jax.random.split(key, 3)
    x = jax.random.normal(k_x, (B, T, IN), jnp.float32)
    params = init_params(k_p, IN, HID, OUT)
    ref = _reference_forward(x, params)

    # f32 MXU path: tight structural/padding check (f32 gates, f32 h state).
    fwd_f32 = jax.jit(functools.partial(text_subnet_forward,
                                        compute_dtype=jnp.float32))
    out_f32 = jax.block_until_ready(fwd_f32(x, params))
    assert out_f32.shape == (B, OUT)
    assert jnp.allclose(out_f32, ref, rtol=1e-4, atol=1e-4), "f32 mismatch"

    # bf16 MXU path (optimized default): bf16 matmuls + bf16 h state (+ bf16
    # gate nonlinearities on v6e/v7x), so use a looser tolerance.
    out_bf16 = jax.block_until_ready(jax.jit(text_subnet_forward)(x, params))
    assert out_bf16.shape == (B, OUT)
    assert jnp.allclose(out_bf16, ref, rtol=5e-2, atol=5e-2), "bf16 mismatch"

    # --- Config 2: T=40 — auto Tc picks 40 (single chunk, zero wasted steps). ---
    B2, T2, IN2, HID2, OUT2 = 3, 40, 20, 64, 32
    k_x2, k_p2, key = jax.random.split(key, 3)
    x2 = jax.random.normal(k_x2, (B2, T2, IN2), jnp.float32)
    params2 = init_params(k_p2, IN2, HID2, OUT2)
    ref2 = _reference_forward(x2, params2)
    out2 = jax.block_until_ready(fwd_f32(x2, params2))
    assert out2.shape == (B2, OUT2)
    assert jnp.allclose(out2, ref2, rtol=1e-3, atol=1e-3), "single-chunk mismatch"

    # --- Config 2b/2c: force chunking to exercise the multi-chunk code paths
    #     (ragged tail chunk, and exact-multiple chunks). ---
    fwd_f32_tc16 = jax.jit(functools.partial(text_subnet_forward,
                                             compute_dtype=jnp.float32,
                                             time_chunk=16))   # nt=3, tail=8
    out2b = jax.block_until_ready(fwd_f32_tc16(x2, params2))
    assert jnp.allclose(out2b, ref2, rtol=1e-3, atol=1e-3), "tail-chunk mismatch"

    fwd_f32_tc8 = jax.jit(functools.partial(text_subnet_forward,
                                            compute_dtype=jnp.float32,
                                            time_chunk=8))     # nt=5, tail=Tc
    out2c = jax.block_until_ready(fwd_f32_tc8(x2, params2))
    assert jnp.allclose(out2c, ref2, rtol=1e-3, atol=1e-3), "chunked mismatch"

    print("KERNEL_OK")
</pallas_src>

<mosaic_0001>
module attributes {stable_mosaic.version = 11 : i64} {
  func.func @_textsubnet_kernel(%arg0: i32, %arg1: i32, %arg2: memref<8x8x16xf32, #tpu.memory_space<vmem>>, %arg3: memref<16x512xf32, #tpu.memory_space<vmem>>, %arg4: memref<128x512xf32, #tpu.memory_space<vmem>>, %arg5: memref<1x512xf32, #tpu.memory_space<vmem>>, %arg6: memref<128x128xf32, #tpu.memory_space<vmem>>, %arg7: memref<1x128xf32, #tpu.memory_space<vmem>>, %arg8: memref<128x128xf32, #tpu.memory_space<vmem>>, %arg9: memref<1x128xf32, #tpu.memory_space<vmem>>, %arg10: memref<8x128xf32, #tpu.memory_space<vmem>>, %arg11: memref<64x512xf32, #tpu.memory_space<vmem>>, %arg12: memref<8x128xf32, #tpu.memory_space<vmem>>, %arg13: memref<8x128xf32, #tpu.memory_space<vmem>>) attributes {dimension_semantics = [#tpu.dimension_semantics<parallel>, #tpu.dimension_semantics<arbitrary>], iteration_bounds = array<i64: 1, 1>, scalar_prefetch = 0 : i64, scratch_operands = 3 : i64, tpu.core_type = #tpu.core_type<tc>, window_params = [{transform_indices = @transform_0, window_bounds = array<i64: 8, 8, 16>}, {pipeline_mode = #tpu.pipeline_mode<synchronous>, transform_indices = @transform_1, window_bounds = array<i64: 16, 512>}, {pipeline_mode = #tpu.pipeline_mode<synchronous>, transform_indices = @transform_2, window_bounds = array<i64: 128, 512>}, {pipeline_mode = #tpu.pipeline_mode<synchronous>, transform_indices = @transform_3, window_bounds = array<i64: 1, 512>}, {pipeline_mode = #tpu.pipeline_mode<synchronous>, transform_indices = @transform_4, window_bounds = array<i64: 128, 128>}, {pipeline_mode = #tpu.pipeline_mode<synchronous>, transform_indices = @transform_5, window_bounds = array<i64: 1, 128>}, {pipeline_mode = #tpu.pipeline_mode<synchronous>, transform_indices = @transform_6, window_bounds = array<i64: 128, 128>}, {pipeline_mode = #tpu.pipeline_mode<synchronous>, transform_indices = @transform_7, window_bounds = array<i64: 1, 128>}, {transform_indices = @transform_8, window_bounds = array<i64: 8, 128>}]} {
    %c0_i32 = arith.constant 0 : i32
    %0 = arith.cmpi eq, %arg1, %c0_i32 : i32
    %1 = arith.extui %0 : i1 to i32
    %c0_i32_0 = arith.constant 0 : i32
    %2 = arith.cmpi ne, %1, %c0_i32_0 : i32
    scf.if %2 {
      %cst_140 = arith.constant 0.000000e+00 : f32
      %302 = vector.broadcast %cst_140 : f32 to vector<8x128xf32>
      %c0_141 = arith.constant 0 : index
      %c0_142 = arith.constant 0 : index
      %303 = vector.load %arg12[%c0_141, %c0_142] : memref<8x128xf32, #tpu.memory_space<vmem>>, vector<8x128xf32>
      tpu.vector_store %arg12[%c0_141, %c0_142], %302 {strides = array<i32>} : memref<8x128xf32, #tpu.memory_space<vmem>>, vector<8x128xf32>,
      %cst_143 = arith.constant 0.000000e+00 : f32
      %304 = vector.broadcast %cst_143 : f32 to vector<8x128xf32>
      %c0_144 = arith.constant 0 : index
      %c0_145 = arith.constant 0 : index
      %305 = vector.load %arg13[%c0_144, %c0_145] : memref<8x128xf32, #tpu.memory_space<vmem>>, vector<8x128xf32>
      tpu.vector_store %arg13[%c0_144, %c0_145], %304 {strides = array<i32>} : memref<8x128xf32, #tpu.memory_space<vmem>>, vector<8x128xf32>,
    } else {
    }
    %c0 = arith.constant 0 : index
    %c0_1 = arith.constant 0 : index
    %c0_2 = arith.constant 0 : index
    %3 = vector.load %arg2[%c0, %c0_1, %c0_2] : memref<8x8x16xf32, #tpu.memory_space<vmem>>, vector<8x8x16xf32>
    %4 = vector.shape_cast %3 : vector<8x8x16xf32> to vector<64x16xf32>
    %c0_3 = arith.constant 0 : index
    %c0_4 = arith.constant 0 : index
    %5 = vector.load %arg3[%c0_3, %c0_4] : memref<16x512xf32, #tpu.memory_space<vmem>>, vector<16x512xf32>
    %cst = arith.constant dense<0.000000e+00> : vector<64x512xf32>
    %6 = tpu.matmul %4, %5, %cst {dimension_numbers = #tpu.dot_dimension_numbers<[1], [0], [0], [1], [0, 0, 1, 1], [], []>} : vector<64x16xf32>, vector<16x512xf32>, vector<64x512xf32> -> vector<64x512xf32>
    %c0_5 = arith.constant 0 : index
    %c0_6 = arith.constant 0 : index
    %7 = vector.load %arg5[%c0_5, %c0_6] : memref<1x512xf32, #tpu.memory_space<vmem>>, vector<1x512xf32>
    %8 = vector.broadcast %7 : vector<1x512xf32> to vector<64x512xf32>
    %9 = arith.addf %6, %8 : vector<64x512xf32>
    %c0_7 = arith.constant 0 : index
    %c0_8 = arith.constant 0 : index
    %10 = vector.load %arg11[%c0_7, %c0_8] : memref<64x512xf32, #tpu.memory_space<vmem>>, vector<64x512xf32>
    tpu.vector_store %arg11[%c0_7, %c0_8], %9 {strides = array<i32>} : memref<64x512xf32, #tpu.memory_space<vmem>>, vector<64x512xf32>,
    %c0_i32_9 = arith.constant 0 : i32
    %c8_i32 = arith.constant 8 : i32
    %11 = arith.muli %c0_i32_9, %c8_i32 : i32
    %12 = tpu.assume_multiple %11, 8 : i32
    %13 = arith.index_cast %12 : i32 to index
    %c0_10 = arith.constant 0 : index
    %14 = vector.load %arg11[%13, %c0_10] : memref<64x512xf32, #tpu.memory_space<vmem>>, vector<8x512xf32>
    %c0_11 = arith.constant 0 : index
    %c0_12 = arith.constant 0 : index
    %15 = vector.load %arg12[%c0_11, %c0_12] : memref<8x128xf32, #tpu.memory_space<vmem>>, vector<8x128xf32>
    %c0_13 = arith.constant 0 : index
    %c0_14 = arith.constant 0 : index
    %16 = vector.load %arg4[%c0_13, %c0_14] : memref<128x512xf32, #tpu.memory_space<vmem>>, vector<128x512xf32>
    %cst_15 = arith.constant dense<0.000000e+00> : vector<8x512xf32>
    %17 = tpu.matmul %15, %16, %cst_15 {dimension_numbers = #tpu.dot_dimension_numbers<[1], [0], [0], [1], [0, 0, 1, 1], [], []>} : vector<8x128xf32>, vector<128x512xf32>, vector<8x512xf32> -> vector<8x512xf32>
    %18 = arith.addf %14, %17 : vector<8x512xf32>
    %19 = vector.extract_strided_slice %18 {offsets = [0, 0], sizes = [8, 128], strides = [1, 1]} : vector<8x512xf32> to vector<8x128xf32>
    %20 = arith.negf %19 : vector<8x128xf32>
    %21 = math.exp %20 : vector<8x128xf32>
    %cst_16 = arith.constant 1.000000e+00 : f32
    %22 = vector.broadcast %cst_16 : f32 to vector<8x128xf32>
    %23 = arith.addf %22, %21 : vector<8x128xf32>
    %24 = arith.divf %22, %23 : vector<8x128xf32>
    %25 = vector.extract_strided_slice %18 {offsets = [0, 128], sizes = [8, 128], strides = [1, 1]} : vector<8x512xf32> to vector<8x128xf32>
    %26 = arith.negf %25 : vector<8x128xf32>
    %27 = math.exp %26 : vector<8x128xf32>
    %cst_17 = arith.constant 1.000000e+00 : f32
    %28 = vector.broadcast %cst_17 : f32 to vector<8x128xf32>
    %29 = arith.addf %28, %27 : vector<8x128xf32>
    %30 = arith.divf %28, %29 : vector<8x128xf32>
    %31 = vector.extract_strided_slice %18 {offsets = [0, 256], sizes = [8, 128], strides = [1, 1]} : vector<8x512xf32> to vector<8x128xf32>
    %32 = math.tanh %31 : vector<8x128xf32>
    %33 = vector.extract_strided_slice %18 {offsets = [0, 384], sizes = [8, 128], strides = [1, 1]} : vector<8x512xf32> to vector<8x128xf32>
    %34 = arith.negf %33 : vector<8x128xf32>
    %35 = math.exp %34 : vector<8x128xf32>
    %cst_18 = arith.constant 1.000000e+00 : f32
    %36 = vector.broadcast %cst_18 : f32 to vector<8x128xf32>
    %37 = arith.addf %36, %35 : vector<8x128xf32>
    %38 = arith.divf %36, %37 : vector<8x128xf32>
    %c0_19 = arith.constant 0 : index
    %c0_20 = arith.constant 0 : index
    %39 = vector.load %arg13[%c0_19, %c0_20] : memref<8x128xf32, #tpu.memory_space<vmem>>, vector<8x128xf32>
    %40 = arith.mulf %30, %39 : vector<8x128xf32>
    %41 = arith.mulf %24, %32 : vector<8x128xf32>
    %42 = arith.addf %40, %41 : vector<8x128xf32>
    %43 = math.tanh %42 : vector<8x128xf32>
    %44 = arith.mulf %38, %43 : vector<8x128xf32>
    %c0_21 = arith.constant 0 : index
    %c0_22 = arith.constant 0 : index
    %45 = vector.load %arg13[%c0_21, %c0_22] : memref<8x128xf32, #tpu.memory_space<vmem>>, vector<8x128xf32>
    tpu.vector_store %arg13[%c0_21, %c0_22], %42 {strides = array<i32>} : memref<8x128xf32, #tpu.memory_space<vmem>>, vector<8x128xf32>,
    %c0_23 = arith.constant 0 : index
    %c0_24 = arith.constant 0 : index
    %46 = vector.load %arg12[%c0_23, %c0_24] : memref<8x128xf32, #tpu.memory_space<vmem>>, vector<8x128xf32>
    tpu.vector_store %arg12[%c0_23, %c0_24], %44 {strides = array<i32>} : memref<8x128xf32, #tpu.memory_space<vmem>>, vector<8x128xf32>,
    %c1_i32 = arith.constant 1 : i32
    %c8_i32_25 = arith.constant 8 : i32
    %47 = arith.muli %c1_i32, %c8_i32_25 : i32
    %48 = tpu.assume_multiple %47, 8 : i32
    %49 = arith.index_cast %48 : i32 to index
    %c0_26 = arith.constant 0 : index
    %50 = vector.load %arg11[%49, %c0_26] : memref<64x512xf32, #tpu.memory_space<vmem>>, vector<8x512xf32>
    %c0_27 = arith.constant 0 : index
    %c0_28 = arith.constant 0 : index
    %51 = vector.load %arg12[%c0_27, %c0_28] : memref<8x128xf32, #tpu.memory_space<vmem>>, vector<8x128xf32>
    %c0_29 = arith.constant 0 : index
    %c0_30 = arith.constant 0 : index
    %52 = vector.load %arg4[%c0_29, %c0_30] : memref<128x512xf32, #tpu.memory_space<vmem>>, vector<128x512xf32>
    %cst_31 = arith.constant dense<0.000000e+00> : vector<8x512xf32>
    %53 = tpu.matmul %51, %52, %cst_31 {dimension_numbers = #tpu.dot_dimension_numbers<[1], [0], [0], [1], [0, 0, 1, 1], [], []>} : vector<8x128xf32>, vector<128x512xf32>, vector<8x512xf32> -> vector<8x512xf32>
    %54 = arith.addf %50, %53 : vector<8x512xf32>
    %55 = vector.extract_strided_slice %54 {offsets = [0, 0], sizes = [8, 128], strides = [1, 1]} : vector<8x512xf32> to vector<8x128xf32>
    %56 = arith.negf %55 : vector<8x128xf32>
    %57 = math.exp %56 : vector<8x128xf32>
    %cst_32 = arith.constant 1.000000e+00 : f32
    %58 = vector.broadcast %cst_32 : f32 to vector<8x128xf32>
    %59 = arith.addf %58, %57 : vector<8x128xf32>
    %60 = arith.divf %58, %59 : vector<8x128xf32>
    %61 = vector.extract_strided_slice %54 {offsets = [0, 128], sizes = [8, 128], strides = [1, 1]} : vector<8x512xf32> to vector<8x128xf32>
    %62 = arith.negf %61 : vector<8x128xf32>
    %63 = math.exp %62 : vector<8x128xf32>
    %cst_33 = arith.constant 1.000000e+00 : f32
    %64 = vector.broadcast %cst_33 : f32 to vector<8x128xf32>
    %65 = arith.addf %64, %63 : vector<8x128xf32>
    %66 = arith.divf %64, %65 : vector<8x128xf32>
    %67 = vector.extract_strided_slice %54 {offsets = [0, 256], sizes = [8, 128], strides = [1, 1]} : vector<8x512xf32> to vector<8x128xf32>
    %68 = math.tanh %67 : vector<8x128xf32>
    %69 = vector.extract_strided_slice %54 {offsets = [0, 384], sizes = [8, 128], strides = [1, 1]} : vector<8x512xf32> to vector<8x128xf32>
    %70 = arith.negf %69 : vector<8x128xf32>
    %71 = math.exp %70 : vector<8x128xf32>
    %cst_34 = arith.constant 1.000000e+00 : f32
    %72 = vector.broadcast %cst_34 : f32 to vector<8x128xf32>
    %73 = arith.addf %72, %71 : vector<8x128xf32>
    %74 = arith.divf %72, %73 : vector<8x128xf32>
    %c0_35 = arith.constant 0 : index
    %c0_36 = arith.constant 0 : index
    %75 = vector.load %arg13[%c0_35, %c0_36] : memref<8x128xf32, #tpu.memory_space<vmem>>, vector<8x128xf32>
    %76 = arith.mulf %66, %75 : vector<8x128xf32>
    %77 = arith.mulf %60, %68 : vector<8x128xf32>
    %78 = arith.addf %76, %77 : vector<8x128xf32>
    %79 = math.tanh %78 : vector<8x128xf32>
    %80 = arith.mulf %74, %79 : vector<8x128xf32>
    %c0_37 = arith.constant 0 : index
    %c0_38 = arith.constant 0 : index
    %81 = vector.load %arg13[%c0_37, %c0_38] : memref<8x128xf32, #tpu.memory_space<vmem>>, vector<8x128xf32>
    tpu.vector_store %arg13[%c0_37, %c0_38], %78 {strides = array<i32>} : memref<8x128xf32, #tpu.memory_space<vmem>>, vector<8x128xf32>,
    %c0_39 = arith.constant 0 : index
    %c0_40 = arith.constant 0 : index
    %82 = vector.load %arg12[%c0_39, %c0_40] : memref<8x128xf32, #tpu.memory_space<vmem>>, vector<8x128xf32>
    tpu.vector_store %arg12[%c0_39, %c0_40], %80 {strides = array<i32>} : memref<8x128xf32, #tpu.memory_space<vmem>>, vector<8x128xf32>,
    %c2_i32 = arith.constant 2 : i32
    %c8_i32_41 = arith.constant 8 : i32
    %83 = arith.muli %c2_i32, %c8_i32_41 : i32
    %84 = tpu.assume_multiple %83, 8 : i32
    %85 = arith.index_cast %84 : i32 to index
    %c0_42 = arith.constant 0 : index
    %86 = vector.load %arg11[%85, %c0_42] : memref<64x512xf32, #tpu.memory_space<vmem>>, vector<8x512xf32>
    %c0_43 = arith.constant 0 : index
    %c0_44 = arith.constant 0 : index
    %87 = vector.load %arg12[%c0_43, %c0_44] : memref<8x128xf32, #tpu.memory_space<vmem>>, vector<8x128xf32>
    %c0_45 = arith.constant 0 : index
    %c0_46 = arith.constant 0 : index
    %88 = vector.load %arg4[%c0_45, %c0_46] : memref<128x512xf32, #tpu.memory_space<vmem>>, vector<128x512xf32>
    %cst_47 = arith.constant dense<0.000000e+00> : vector<8x512xf32>
    %89 = tpu.matmul %87, %88, %cst_47 {dimension_numbers = #tpu.dot_dimension_numbers<[1], [0], [0], [1], [0, 0, 1, 1], [], []>} : vector<8x128xf32>, vector<128x512xf32>, vector<8x512xf32> -> vector<8x512xf32>
    %90 = arith.addf %86, %89 : vector<8x512xf32>
    %91 = vector.extract_strided_slice %90 {offsets = [0, 0], sizes = [8, 128], strides = [1, 1]} : vector<8x512xf32> to vector<8x128xf32>
    %92 = arith.negf %91 : vector<8x128xf32>
    %93 = math.exp %92 : vector<8x128xf32>
    %cst_48 = arith.constant 1.000000e+00 : f32
    %94 = vector.broadcast %cst_48 : f32 to vector<8x128xf32>
    %95 = arith.addf %94, %93 : vector<8x128xf32>
    %96 = arith.divf %94, %95 : vector<8x128xf32>
    %97 = vector.extract_strided_slice %90 {offsets = [0, 128], sizes = [8, 128], strides = [1, 1]} : vector<8x512xf32> to vector<8x128xf32>
    %98 = arith.negf %97 : vector<8x128xf32>
    %99 = math.exp %98 : vector<8x128xf32>
    %cst_49 = arith.constant 1.000000e+00 : f32
    %100 = vector.broadcast %cst_49 : f32 to vector<8x128xf32>
    %101 = arith.addf %100, %99 : vector<8x128xf32>
    %102 = arith.divf %100, %101 : vector<8x128xf32>
    %103 = vector.extract_strided_slice %90 {offsets = [0, 256], sizes = [8, 128], strides = [1, 1]} : vector<8x512xf32> to vector<8x128xf32>
    %104 = math.tanh %103 : vector<8x128xf32>
    %105 = vector.extract_strided_slice %90 {offsets = [0, 384], sizes = [8, 128], strides = [1, 1]} : vector<8x512xf32> to vector<8x128xf32>
    %106 = arith.negf %105 : vector<8x128xf32>
    %107 = math.exp %106 : vector<8x128xf32>
    %cst_50 = arith.constant 1.000000e+00 : f32
    %108 = vector.broadcast %cst_50 : f32 to vector<8x128xf32>
    %109 = arith.addf %108, %107 : vector<8x128xf32>
    %110 = arith.divf %108, %109 : vector<8x128xf32>
    %c0_51 = arith.constant 0 : index
    %c0_52 = arith.constant 0 : index
    %111 = vector.load %arg13[%c0_51, %c0_52] : memref<8x128xf32, #tpu.memory_space<vmem>>, vector<8x128xf32>
    %112 = arith.mulf %102, %111 : vector<8x128xf32>
    %113 = arith.mulf %96, %104 : vector<8x128xf32>
    %114 = arith.addf %112, %113 : vector<8x128xf32>
    %115 = math.tanh %114 : vector<8x128xf32>
    %116 = arith.mulf %110, %115 : vector<8x128xf32>
    %c0_53 = arith.constant 0 : index
    %c0_54 = arith.constant 0 : index
    %117 = vector.load %arg13[%c0_53, %c0_54] : memref<8x128xf32, #tpu.memory_space<vmem>>, vector<8x128xf32>
    tpu.vector_store %arg13[%c0_53, %c0_54], %114 {strides = array<i32>} : memref<8x128xf32, #tpu.memory_space<vmem>>, vector<8x128xf32>,
    %c0_55 = arith.constant 0 : index
    %c0_56 = arith.constant 0 : index
    %118 = vector.load %arg12[%c0_55, %c0_56] : memref<8x128xf32, #tpu.memory_space<vmem>>, vector<8x128xf32>
    tpu.vector_store %arg12[%c0_55, %c0_56], %116 {strides = array<i32>} : memref<8x128xf32, #tpu.memory_space<vmem>>, vector<8x128xf32>,
    %c3_i32 = arith.constant 3 : i32
    %c8_i32_57 = arith.constant 8 : i32
    %119 = arith.muli %c3_i32, %c8_i32_57 : i32
    %120 = tpu.assume_multiple %119, 8 : i32
    %121 = arith.index_cast %120 : i32 to index
    %c0_58 = arith.constant 0 : index
    %122 = vector.load %arg11[%121, %c0_58] : memref<64x512xf32, #tpu.memory_space<vmem>>, vector<8x512xf32>
    %c0_59 = arith.constant 0 : index
    %c0_60 = arith.constant 0 : index
    %123 = vector.load %arg12[%c0_59, %c0_60] : memref<8x128xf32, #tpu.memory_space<vmem>>, vector<8x128xf32>
    %c0_61 = arith.constant 0 : index
    %c0_62 = arith.constant 0 : index
    %124 = vector.load %arg4[%c0_61, %c0_62] : memref<128x512xf32, #tpu.memory_space<vmem>>, vector<128x512xf32>
    %cst_63 = arith.constant dense<0.000000e+00> : vector<8x512xf32>
    %125 = tpu.matmul %123, %124, %cst_63 {dimension_numbers = #tpu.dot_dimension_numbers<[1], [0], [0], [1], [0, 0, 1, 1], [], []>} : vector<8x128xf32>, vector<128x512xf32>, vector<8x512xf32> -> vector<8x512xf32>
    %126 = arith.addf %122, %125 : vector<8x512xf32>
    %127 = vector.extract_strided_slice %126 {offsets = [0, 0], sizes = [8, 128], strides = [1, 1]} : vector<8x512xf32> to vector<8x128xf32>
    %128 = arith.negf %127 : vector<8x128xf32>
    %129 = math.exp %128 : vector<8x128xf32>
    %cst_64 = arith.constant 1.000000e+00 : f32
    %130 = vector.broadcast %cst_64 : f32 to vector<8x128xf32>
    %131 = arith.addf %130, %129 : vector<8x128xf32>
    %132 = arith.divf %130, %131 : vector<8x128xf32>
    %133 = vector.extract_strided_slice %126 {offsets = [0, 128], sizes = [8, 128], strides = [1, 1]} : vector<8x512xf32> to vector<8x128xf32>
    %134 = arith.negf %133 : vector<8x128xf32>
    %135 = math.exp %134 : vector<8x128xf32>
    %cst_65 = arith.constant 1.000000e+00 : f32
    %136 = vector.broadcast %cst_65 : f32 to vector<8x128xf32>
    %137 = arith.addf %136, %135 : vector<8x128xf32>
    %138 = arith.divf %136, %137 : vector<8x128xf32>
    %139 = vector.extract_strided_slice %126 {offsets = [0, 256], sizes = [8, 128], strides = [1, 1]} : vector<8x512xf32> to vector<8x128xf32>
    %140 = math.tanh %139 : vector<8x128xf32>
    %141 = vector.extract_strided_slice %126 {offsets = [0, 384], sizes = [8, 128], strides = [1, 1]} : vector<8x512xf32> to vector<8x128xf32>
    %142 = arith.negf %141 : vector<8x128xf32>
    %143 = math.exp %142 : vector<8x128xf32>
    %cst_66 = arith.constant 1.000000e+00 : f32
    %144 = vector.broadcast %cst_66 : f32 to vector<8x128xf32>
    %145 = arith.addf %144, %143 : vector<8x128xf32>
    %146 = arith.divf %144, %145 : vector<8x128xf32>
    %c0_67 = arith.constant 0 : index
    %c0_68 = arith.constant 0 : index
    %147 = vector.load %arg13[%c0_67, %c0_68] : memref<8x128xf32, #tpu.memory_space<vmem>>, vector<8x128xf32>
    %148 = arith.mulf %138, %147 : vector<8x128xf32>
    %149 = arith.mulf %132, %140 : vector<8x128xf32>
    %150 = arith.addf %148, %149 : vector<8x128xf32>
    %151 = math.tanh %150 : vector<8x128xf32>
    %152 = arith.mulf %146, %151 : vector<8x128xf32>
    %c0_69 = arith.constant 0 : index
    %c0_70 = arith.constant 0 : index
    %153 = vector.load %arg13[%c0_69, %c0_70] : memref<8x128xf32, #tpu.memory_space<vmem>>, vector<8x128xf32>
    tpu.vector_store %arg13[%c0_69, %c0_70], %150 {strides = array<i32>} : memref<8x128xf32, #tpu.memory_space<vmem>>, vector<8x128xf32>,
    %c0_71 = arith.constant 0 : index
    %c0_72 = arith.constant 0 : index
    %154 = vector.load %arg12[%c0_71, %c0_72] : memref<8x128xf32, #tpu.memory_space<vmem>>, vector<8x128xf32>
    tpu.vector_store %arg12[%c0_71, %c0_72], %152 {strides = array<i32>} : memref<8x128xf32, #tpu.memory_space<vmem>>, vector<8x128xf32>,
    %c4_i32 = arith.constant 4 : i32
    %c8_i32_73 = arith.constant 8 : i32
    %155 = arith.muli %c4_i32, %c8_i32_73 : i32
    %156 = tpu.assume_multiple %155, 8 : i32
    %157 = arith.index_cast %156 : i32 to index
    %c0_74 = arith.constant 0 : index
    %158 = vector.load %arg11[%157, %c0_74] : memref<64x512xf32, #tpu.memory_space<vmem>>, vector<8x512xf32>
    %c0_75 = arith.constant 0 : index
    %c0_76 = arith.constant 0 : index
    %159 = vector.load %arg12[%c0_75, %c0_76] : memref<8x128xf32, #tpu.memory_space<vmem>>, vector<8x128xf32>
    %c0_77 = arith.constant 0 : index
    %c0_78 = arith.constant 0 : index
    %160 = vector.load %arg4[%c0_77, %c0_78] : memref<128x512xf32, #tpu.memory_space<vmem>>, vector<128x512xf32>
    %cst_79 = arith.constant dense<0.000000e+00> : vector<8x512xf32>
    %161 = tpu.matmul %159, %160, %cst_79 {dimension_numbers = #tpu.dot_dimension_numbers<[1], [0], [0], [1], [0, 0, 1, 1], [], []>} : vector<8x128xf32>, vector<128x512xf32>, vector<8x512xf32> -> vector<8x512xf32>
    %162 = arith.addf %158, %161 : vector<8x512xf32>
    %163 = vector.extract_strided_slice %162 {offsets = [0, 0], sizes = [8, 128], strides = [1, 1]} : vector<8x512xf32> to vector<8x128xf32>
    %164 = arith.negf %163 : vector<8x128xf32>
    %165 = math.exp %164 : vector<8x128xf32>
    %cst_80 = arith.constant 1.000000e+00 : f32
    %166 = vector.broadcast %cst_80 : f32 to vector<8x128xf32>
    %167 = arith.addf %166, %165 : vector<8x128xf32>
    %168 = arith.divf %166, %167 : vector<8x128xf32>
    %169 = vector.extract_strided_slice %162 {offsets = [0, 128], sizes = [8, 128], strides = [1, 1]} : vector<8x512xf32> to vector<8x128xf32>
    %170 = arith.negf %169 : vector<8x128xf32>
    %171 = math.exp %170 : vector<8x128xf32>
    %cst_81 = arith.constant 1.000000e+00 : f32
    %172 = vector.broadcast %cst_81 : f32 to vector<8x128xf32>
    %173 = arith.addf %172, %171 : vector<8x128xf32>
    %174 = arith.divf %172, %173 : vector<8x128xf32>
    %175 = vector.extract_strided_slice %162 {offsets = [0, 256], sizes = [8, 128], strides = [1, 1]} : vector<8x512xf32> to vector<8x128xf32>
    %176 = math.tanh %175 : vector<8x128xf32>
    %177 = vector.extract_strided_slice %162 {offsets = [0, 384], sizes = [8, 128], strides = [1, 1]} : vector<8x512xf32> to vector<8x128xf32>
    %178 = arith.negf %177 : vector<8x128xf32>
    %179 = math.exp %178 : vector<8x128xf32>
    %cst_82 = arith.constant 1.000000e+00 : f32
    %180 = vector.broadcast %cst_82 : f32 to vector<8x128xf32>
    %181 = arith.addf %180, %179 : vector<8x128xf32>
    %182 = arith.divf %180, %181 : vector<8x128xf32>
    %c0_83 = arith.constant 0 : index
    %c0_84 = arith.constant 0 : index
    %183 = vector.load %arg13[%c0_83, %c0_84] : memref<8x128xf32, #tpu.memory_space<vmem>>, vector<8x128xf32>
    %184 = arith.mulf %174, %183 : vector<8x128xf32>
    %185 = arith.mulf %168, %176 : vector<8x128xf32>
    %186 = arith.addf %184, %185 : vector<8x128xf32>
    %187 = math.tanh %186 : vector<8x128xf32>
    %188 = arith.mulf %182, %187 : vector<8x128xf32>
    %c0_85 = arith.constant 0 : index
    %c0_86 = arith.constant 0 : index
    %189 = vector.load %arg13[%c0_85, %c0_86] : memref<8x128xf32, #tpu.memory_space<vmem>>, vector<8x128xf32>
    tpu.vector_store %arg13[%c0_85, %c0_86], %186 {strides = array<i32>} : memref<8x128xf32, #tpu.memory_space<vmem>>, vector<8x128xf32>,
    %c0_87 = arith.constant 0 : index
    %c0_88 = arith.constant 0 : index
    %190 = vector.load %arg12[%c0_87, %c0_88] : memref<8x128xf32, #tpu.memory_space<vmem>>, vector<8x128xf32>
    tpu.vector_store %arg12[%c0_87, %c0_88], %188 {strides = array<i32>} : memref<8x128xf32, #tpu.memory_space<vmem>>, vector<8x128xf32>,
    %c5_i32 = arith.constant 5 : i32
    %c8_i32_89 = arith.constant 8 : i32
    %191 = arith.muli %c5_i32, %c8_i32_89 : i32
    %192 = tpu.assume_multiple %191, 8 : i32
    %193 = arith.index_cast %192 : i32 to index
    %c0_90 = arith.constant 0 : index
    %194 = vector.load %arg11[%193, %c0_90] : memref<64x512xf32, #tpu.memory_space<vmem>>, vector<8x512xf32>
    %c0_91 = arith.constant 0 : index
    %c0_92 = arith.constant 0 : index
    %195 = vector.load %arg12[%c0_91, %c0_92] : memref<8x128xf32, #tpu.memory_space<vmem>>, vector<8x128xf32>
    %c0_93 = arith.constant 0 : index
    %c0_94 = arith.constant 0 : index
    %196 = vector.load %arg4[%c0_93, %c0_94] : memref<128x512xf32, #tpu.memory_space<vmem>>, vector<128x512xf32>
    %cst_95 = arith.constant dense<0.000000e+00> : vector<8x512xf32>
    %197 = tpu.matmul %195, %196, %cst_95 {dimension_numbers = #tpu.dot_dimension_numbers<[1], [0], [0], [1], [0, 0, 1, 1], [], []>} : vector<8x128xf32>, vector<128x512xf32>, vector<8x512xf32> -> vector<8x512xf32>
    %198 = arith.addf %194, %197 : vector<8x512xf32>
    %199 = vector.extract_strided_slice %198 {offsets = [0, 0], sizes = [8, 128], strides = [1, 1]} : vector<8x512xf32> to vector<8x128xf32>
    %200 = arith.negf %199 : vector<8x128xf32>
    %201 = math.exp %200 : vector<8x128xf32>
    %cst_96 = arith.constant 1.000000e+00 : f32
    %202 = vector.broadcast %cst_96 : f32 to vector<8x128xf32>
    %203 = arith.addf %202, %201 : vector<8x128xf32>
    %204 = arith.divf %202, %203 : vector<8x128xf32>
    %205 = vector.extract_strided_slice %198 {offsets = [0, 128], sizes = [8, 128], strides = [1, 1]} : vector<8x512xf32> to vector<8x128xf32>
    %206 = arith.negf %205 : vector<8x128xf32>
    %207 = math.exp %206 : vector<8x128xf32>
    %cst_97 = arith.constant 1.000000e+00 : f32
    %208 = vector.broadcast %cst_97 : f32 to vector<8x128xf32>
    %209 = arith.addf %208, %207 : vector<8x128xf32>
    %210 = arith.divf %208, %209 : vector<8x128xf32>
    %211 = vector.extract_strided_slice %198 {offsets = [0, 256], sizes = [8, 128], strides = [1, 1]} : vector<8x512xf32> to vector<8x128xf32>
    %212 = math.tanh %211 : vector<8x128xf32>
    %213 = vector.extract_strided_slice %198 {offsets = [0, 384], sizes = [8, 128], strides = [1, 1]} : vector<8x512xf32> to vector<8x128xf32>
    %214 = arith.negf %213 : vector<8x128xf32>
    %215 = math.exp %214 : vector<8x128xf32>
    %cst_98 = arith.constant 1.000000e+00 : f32
    %216 = vector.broadcast %cst_98 : f32 to vector<8x128xf32>
    %217 = arith.addf %216, %215 : vector<8x128xf32>
    %218 = arith.divf %216, %217 : vector<8x128xf32>
    %c0_99 = arith.constant 0 : index
    %c0_100 = arith.constant 0 : index
    %219 = vector.load %arg13[%c0_99, %c0_100] : memref<8x128xf32, #tpu.memory_space<vmem>>, vector<8x128xf32>
    %220 = arith.mulf %210, %219 : vector<8x128xf32>
    %221 = arith.mulf %204, %212 : vector<8x128xf32>
    %222 = arith.addf %220, %221 : vector<8x128xf32>
    %223 = math.tanh %222 : vector<8x128xf32>
    %224 = arith.mulf %218, %223 : vector<8x128xf32>
    %c0_101 = arith.constant 0 : index
    %c0_102 = arith.constant 0 : index
    %225 = vector.load %arg13[%c0_101, %c0_102] : memref<8x128xf32, #tpu.memory_space<vmem>>, vector<8x128xf32>
    tpu.vector_store %arg13[%c0_101, %c0_102], %222 {strides = array<i32>} : memref<8x128xf32, #tpu.memory_space<vmem>>, vector<8x128xf32>,
    %c0_103 = arith.constant 0 : index
    %c0_104 = arith.constant 0 : index
    %226 = vector.load %arg12[%c0_103, %c0_104] : memref<8x128xf32, #tpu.memory_space<vmem>>, vector<8x128xf32>
    tpu.vector_store %arg12[%c0_103, %c0_104], %224 {strides = array<i32>} : memref<8x128xf32, #tpu.memory_space<vmem>>, vector<8x128xf32>,
    %c6_i32 = arith.constant 6 : i32
    %c8_i32_105 = arith.constant 8 : i32
    %227 = arith.muli %c6_i32, %c8_i32_105 : i32
    %228 = tpu.assume_multiple %227, 8 : i32
    %229 = arith.index_cast %228 : i32 to index
    %c0_106 = arith.constant 0 : index
    %230 = vector.load %arg11[%229, %c0_106] : memref<64x512xf32, #tpu.memory_space<vmem>>, vector<8x512xf32>
    %c0_107 = arith.constant 0 : index
    %c0_108 = arith.constant 0 : index
    %231 = vector.load %arg12[%c0_107, %c0_108] : memref<8x128xf32, #tpu.memory_space<vmem>>, vector<8x128xf32>
    %c0_109 = arith.constant 0 : index
    %c0_110 = arith.constant 0 : index
    %232 = vector.load %arg4[%c0_109, %c0_110] : memref<128x512xf32, #tpu.memory_space<vmem>>, vector<128x512xf32>
    %cst_111 = arith.constant dense<0.000000e+00> : vector<8x512xf32>
    %233 = tpu.matmul %231, %232, %cst_111 {dimension_numbers = #tpu.dot_dimension_numbers<[1], [0], [0], [1], [0, 0, 1, 1], [], []>} : vector<8x128xf32>, vector<128x512xf32>, vector<8x512xf32> -> vector<8x512xf32>
    %234 = arith.addf %230, %233 : vector<8x512xf32>
    %235 = vector.extract_strided_slice %234 {offsets = [0, 0], sizes = [8, 128], strides = [1, 1]} : vector<8x512xf32> to vector<8x128xf32>
    %236 = arith.negf %235 : vector<8x128xf32>
    %237 = math.exp %236 : vector<8x128xf32>
    %cst_112 = arith.constant 1.000000e+00 : f32
    %238 = vector.broadcast %cst_112 : f32 to vector<8x128xf32>
    %239 = arith.addf %238, %237 : vector<8x128xf32>
    %240 = arith.divf %238, %239 : vector<8x128xf32>
    %241 = vector.extract_strided_slice %234 {offsets = [0, 128], sizes = [8, 128], strides = [1, 1]} : vector<8x512xf32> to vector<8x128xf32>
    %242 = arith.negf %241 : vector<8x128xf32>
    %243 = math.exp %242 : vector<8x128xf32>
    %cst_113 = arith.constant 1.000000e+00 : f32
    %244 = vector.broadcast %cst_113 : f32 to vector<8x128xf32>
    %245 = arith.addf %244, %243 : vector<8x128xf32>
    %246 = arith.divf %244, %245 : vector<8x128xf32>
    %247 = vector.extract_strided_slice %234 {offsets = [0, 256], sizes = [8, 128], strides = [1, 1]} : vector<8x512xf32> to vector<8x128xf32>
    %248 = math.tanh %247 : vector<8x128xf32>
    %249 = vector.extract_strided_slice %234 {offsets = [0, 384], sizes = [8, 128], strides = [1, 1]} : vector<8x512xf32> to vector<8x128xf32>
    %250 = arith.negf %249 : vector<8x128xf32>
    %251 = math.exp %250 : vector<8x128xf32>
    %cst_114 = arith.constant 1.000000e+00 : f32
    %252 = vector.broadcast %cst_114 : f32 to vector<8x128xf32>
    %253 = arith.addf %252, %251 : vector<8x128xf32>
    %254 = arith.divf %252, %253 : vector<8x128xf32>
    %c0_115 = arith.constant 0 : index
    %c0_116 = arith.constant 0 : index
    %255 = vector.load %arg13[%c0_115, %c0_116] : memref<8x128xf32, #tpu.memory_space<vmem>>, vector<8x128xf32>
    %256 = arith.mulf %246, %255 : vector<8x128xf32>
    %257 = arith.mulf %240, %248 : vector<8x128xf32>
    %258 = arith.addf %256, %257 : vector<8x128xf32>
    %259 = math.tanh %258 : vector<8x128xf32>
    %260 = arith.mulf %254, %259 : vector<8x128xf32>
    %c0_117 = arith.constant 0 : index
    %c0_118 = arith.constant 0 : index
    %261 = vector.load %arg13[%c0_117, %c0_118] : memref<8x128xf32, #tpu.memory_space<vmem>>, vector<8x128xf32>
    tpu.vector_store %arg13[%c0_117, %c0_118], %258 {strides = array<i32>} : memref<8x128xf32, #tpu.memory_space<vmem>>, vector<8x128xf32>,
    %c0_119 = arith.constant 0 : index
    %c0_120 = arith.constant 0 : index
    %262 = vector.load %arg12[%c0_119, %c0_120] : memref<8x128xf32, #tpu.memory_space<vmem>>, vector<8x128xf32>
    tpu.vector_store %arg12[%c0_119, %c0_120], %260 {strides = array<i32>} : memref<8x128xf32, #tpu.memory_space<vmem>>, vector<8x128xf32>,
    %c7_i32 = arith.constant 7 : i32
    %c8_i32_121 = arith.constant 8 : i32
    %263 = arith.muli %c7_i32, %c8_i32_121 : i32
    %264 = tpu.assume_multiple %263, 8 : i32
    %265 = arith.index_cast %264 : i32 to index
    %c0_122 = arith.constant 0 : index
    %266 = vector.load %arg11[%265, %c0_122] : memref<64x512xf32, #tpu.memory_space<vmem>>, vector<8x512xf32>
    %c0_123 = arith.constant 0 : index
    %c0_124 = arith.constant 0 : index
    %267 = vector.load %arg12[%c0_123, %c0_124] : memref<8x128xf32, #tpu.memory_space<vmem>>, vector<8x128xf32>
    %c0_125 = arith.constant 0 : index
    %c0_126 = arith.constant 0 : index
    %268 = vector.load %arg4[%c0_125, %c0_126] : memref<128x512xf32, #tpu.memory_space<vmem>>, vector<128x512xf32>
    %cst_127 = arith.constant dense<0.000000e+00> : vector<8x512xf32>
    %269 = tpu.matmul %267, %268, %cst_127 {dimension_numbers = #tpu.dot_dimension_numbers<[1], [0], [0], [1], [0, 0, 1, 1], [], []>} : vector<8x128xf32>, vector<128x512xf32>, vector<8x512xf32> -> vector<8x512xf32>
    %270 = arith.addf %266, %269 : vector<8x512xf32>
    %271 = vector.extract_strided_slice %270 {offsets = [0, 0], sizes = [8, 128], strides = [1, 1]} : vector<8x512xf32> to vector<8x128xf32>
    %272 = arith.negf %271 : vector<8x128xf32>
    %273 = math.exp %272 : vector<8x128xf32>
    %cst_128 = arith.constant 1.000000e+00 : f32
    %274 = vector.broadcast %cst_128 : f32 to vector<8x128xf32>
    %275 = arith.addf %274, %273 : vector<8x128xf32>
    %276 = arith.divf %274, %275 : vector<8x128xf32>
    %277 = vector.extract_strided_slice %270 {offsets = [0, 128], sizes = [8, 128], strides = [1, 1]} : vector<8x512xf32> to vector<8x128xf32>
    %278 = arith.negf %277 : vector<8x128xf32>
    %279 = math.exp %278 : vector<8x128xf32>
    %cst_129 = arith.constant 1.000000e+00 : f32
    %280 = vector.broadcast %cst_129 : f32 to vector<8x128xf32>
    %281 = arith.addf %280, %279 : vector<8x128xf32>
    %282 = arith.divf %280, %281 : vector<8x128xf32>
    %283 = vector.extract_strided_slice %270 {offsets = [0, 256], sizes = [8, 128], strides = [1, 1]} : vector<8x512xf32> to vector<8x128xf32>
    %284 = math.tanh %283 : vector<8x128xf32>
    %285 = vector.extract_strided_slice %270 {offsets = [0, 384], sizes = [8, 128], strides = [1, 1]} : vector<8x512xf32> to vector<8x128xf32>
    %286 = arith.negf %285 : vector<8x128xf32>
    %287 = math.exp %286 : vector<8x128xf32>
    %cst_130 = arith.constant 1.000000e+00 : f32
    %288 = vector.broadcast %cst_130 : f32 to vector<8x128xf32>
    %289 = arith.addf %288, %287 : vector<8x128xf32>
    %290 = arith.divf %288, %289 : vector<8x128xf32>
    %c0_131 = arith.constant 0 : index
    %c0_132 = arith.constant 0 : index
    %291 = vector.load %arg13[%c0_131, %c0_132] : memref<8x128xf32, #tpu.memory_space<vmem>>, vector<8x128xf32>
    %292 = arith.mulf %282, %291 : vector<8x128xf32>
    %293 = arith.mulf %276, %284 : vector<8x128xf32>
    %294 = arith.addf %292, %293 : vector<8x128xf32>
    %295 = math.tanh %294 : vector<8x128xf32>
    %296 = arith.mulf %290, %295 : vector<8x128xf32>
    %c0_133 = arith.constant 0 : index
    %c0_134 = arith.constant 0 : index
    %297 = vector.load %arg13[%c0_133, %c0_134] : memref<8x128xf32, #tpu.memory_space<vmem>>, vector<8x128xf32>
    tpu.vector_store %arg13[%c0_133, %c0_134], %294 {strides = array<i32>} : memref<8x128xf32, #tpu.memory_space<vmem>>, vector<8x128xf32>,
    %c0_135 = arith.constant 0 : index
    %c0_136 = arith.constant 0 : index
    %298 = vector.load %arg12[%c0_135, %c0_136] : memref<8x128xf32, #tpu.memory_space<vmem>>, vector<8x128xf32>
    tpu.vector_store %arg12[%c0_135, %c0_136], %296 {strides = array<i32>} : memref<8x128xf32, #tpu.memory_space<vmem>>, vector<8x128xf32>,
    %c8_i32_137 = arith.constant 8 : i32
    %c0_i32_138 = arith.constant 0 : i32
    %299 = arith.cmpi eq, %arg1, %c0_i32_138 : i32
    %300 = arith.extui %299 : i1 to i32
    %c0_i32_139 = arith.constant 0 : i32
    %301 = arith.cmpi ne, %300, %c0_i32_139 : i32
    scf.if %301 {
      %c0_140 = arith.constant 0 : index
      %c0_141 = arith.constant 0 : index
      %302 = vector.load %arg12[%c0_140, %c0_141] : memref<8x128xf32, #tpu.memory_space<vmem>>, vector<8x128xf32>
      %c0_142 = arith.constant 0 : index
      %c0_143 = arith.constant 0 : index
      %303 = vector.load %arg6[%c0_142, %c0_143] : memref<128x128xf32, #tpu.memory_space<vmem>>, vector<128x128xf32>
      %cst_144 = arith.constant dense<0.000000e+00> : vector<8x128xf32>
      %304 = tpu.matmul %302, %303, %cst_144 {dimension_numbers = #tpu.dot_dimension_numbers<[1], [0], [0], [1], [0, 0, 1, 1], [], []>} : vector<8x128xf32>, vector<128x128xf32>, vector<8x128xf32> -> vector<8x128xf32>
      %c0_145 = arith.constant 0 : index
      %c0_146 = arith.constant 0 : index
      %305 = vector.load %arg7[%c0_145, %c0_146] : memref<1x128xf32, #tpu.memory_space<vmem>>, vector<1x128xf32>
      %306 = vector.broadcast %305 : vector<1x128xf32> to vector<8x128xf32>
      %307 = arith.addf %304, %306 : vector<8x128xf32>
      %cst_147 = arith.constant 0.000000e+00 : f32
      %308 = vector.broadcast %cst_147 : f32 to vector<8x128xf32>
      %309 = arith.maximumf %307, %308 : vector<8x128xf32>
      %c0_148 = arith.constant 0 : index
      %c0_149 = arith.constant 0 : index
      %310 = vector.load %arg8[%c0_148, %c0_149] : memref<128x128xf32, #tpu.memory_space<vmem>>, vector<128x128xf32>
      %cst_150 = arith.constant dense<0.000000e+00> : vector<8x128xf32>
      %311 = tpu.matmul %309, %310, %cst_150 {dimension_numbers = #tpu.dot_dimension_numbers<[1], [0], [0], [1], [0, 0, 1, 1], [], []>} : vector<8x128xf32>, vector<128x128xf32>, vector<8x128xf32> -> vector<8x128xf32>
      %c0_151 = arith.constant 0 : index
      %c0_152 = arith.constant 0 : index
      %312 = vector.load %arg9[%c0_151, %c0_152] : memref<1x128xf32, #tpu.memory_space<vmem>>, vector<1x128xf32>
      %313 = vector.broadcast %312 : vector<1x128xf32> to vector<8x128xf32>
      %314 = arith.addf %311, %313 : vector<8x128xf32>
      %cst_153 = arith.constant 0.000000e+00 : f32
      %315 = vector.broadcast %cst_153 : f32 to vector<8x128xf32>
      %316 = arith.maximumf %314, %315 : vector<8x128xf32>
      %c0_154 = arith.constant 0 : index
      %c0_155 = arith.constant 0 : index
      %317 = vector.load %arg10[%c0_154, %c0_155] : memref<8x128xf32, #tpu.memory_space<vmem>>, vector<8x128xf32>
      tpu.vector_store %arg10[%c0_154, %c0_155], %316 {strides = array<i32>} : memref<8x128xf32, #tpu.memory_space<vmem>>, vector<8x128xf32>,
    } else {
    }
    return
  }
  func.func @transform_0(%arg0: i32, %arg1: i32) -> (i32, i32, i32) {
    %c0_i32 = arith.constant 0 : i32
    %c0_i32_0 = arith.constant 0 : i32
    return %arg1, %arg0, %c0_i32 : i32, i32, i32
  }
  func.func @transform_1(%arg0: i32, %arg1: i32) -> (i32, i32) {
    %c0_i32 = arith.constant 0 : i32
    %c0_i32_0 = arith.constant 0 : i32
    %c0_i32_1 = arith.constant 0 : i32
    return %c0_i32, %c0_i32_0 : i32, i32
  }
  func.func @transform_2(%arg0: i32, %arg1: i32) -> (i32, i32) {
    %c0_i32 = arith.constant 0 : i32
    %c0_i32_0 = arith.constant 0 : i32
    %c0_i32_1 = arith.constant 0 : i32
    return %c0_i32, %c0_i32_0 : i32, i32
  }
  func.func @transform_3(%arg0: i32, %arg1: i32) -> (i32, i32) {
    %c0_i32 = arith.constant 0 : i32
    %c0_i32_0 = arith.constant 0 : i32
    %c0_i32_1 = arith.constant 0 : i32
    return %c0_i32, %c0_i32_0 : i32, i32
  }
  func.func @transform_4(%arg0: i32, %arg1: i32) -> (i32, i32) {
    %c0_i32 = arith.constant 0 : i32
    %c0_i32_0 = arith.constant 0 : i32
    %c0_i32_1 = arith.constant 0 : i32
    return %c0_i32, %c0_i32_0 : i32, i32
  }
  func.func @transform_5(%arg0: i32, %arg1: i32) -> (i32, i32) {
    %c0_i32 = arith.constant 0 : i32
    %c0_i32_0 = arith.constant 0 : i32
    %c0_i32_1 = arith.constant 0 : i32
    return %c0_i32, %c0_i32_0 : i32, i32
  }
  func.func @transform_6(%arg0: i32, %arg1: i32) -> (i32, i32) {
    %c0_i32 = arith.constant 0 : i32
    %c0_i32_0 = arith.constant 0 : i32
    %c0_i32_1 = arith.constant 0 : i32
    return %c0_i32, %c0_i32_0 : i32, i32
  }
  func.func @transform_7(%arg0: i32, %arg1: i32) -> (i32, i32) {
    %c0_i32 = arith.constant 0 : i32
    %c0_i32_0 = arith.constant 0 : i32
    %c0_i32_1 = arith.constant 0 : i32
    return %c0_i32, %c0_i32_0 : i32, i32
  }
  func.func @transform_8(%arg0: i32, %arg1: i32) -> (i32, i32) {
    %c0_i32 = arith.constant 0 : i32
    %c0_i32_0 = arith.constant 0 : i32
    return %arg0, %c0_i32 : i32, i32
  }
}

</mosaic_0001>

<llo_original>
// kernel: text_subnet_forward.1
$region0: #{text_subnet_forward.1}
  #allocation0 [shape = 'u32[]', space=smem, size = 0x4, offset = 0x4, fixed_abs, tag = 'smem constant byte address 0x4 - core index']
  #allocation1 [shape = 'u32[144,128]{1,0:T(1,128)}', space=vmem, size = 0x12000, scoped, tag = 'internal scratch']
  #allocation2 [shape = 'f32[64,512]{1,0:T(8,128)}', space=vmem, size = 0x20000, scoped, tag = 'scratch operand']
  #allocation3 [shape = 'f32[8,128]{1,0:T(8,128)}', space=vmem, size = 0x1000, scoped, tag = 'scratch operand']
  #allocation4 [shape = 'f32[8,128]{1,0:T(8,128)}', space=vmem, size = 0x1000, scoped, tag = 'scratch operand']
  %s0 = inlined_call_operand.vmem [shape: f32[8,8,16], index: 0, kind: input, shape index: {}]
  %s1 = inlined_call_operand.vmem [shape: f32[16,512], index: 1, kind: input, shape index: {}]
  %s2 = inlined_call_operand.vmem [shape: f32[128,512], index: 2, kind: input, shape index: {}]
  %s3 = inlined_call_operand.vmem [shape: f32[1,512], index: 3, kind: input, shape index: {}]
  %s4 = inlined_call_operand.vmem [shape: f32[128,128], index: 4, kind: input, shape index: {}]
  %s5 = inlined_call_operand.vmem [shape: f32[1,128], index: 5, kind: input, shape index: {}]
  %s6 = inlined_call_operand.vmem [shape: f32[128,128], index: 6, kind: input, shape index: {}]
  %s7 = inlined_call_operand.vmem [shape: f32[1,128], index: 7, kind: input, shape index: {}]
  %s8 = inlined_call_operand.vmem [shape: f32[8,128], index: 8, kind: output, shape index: {}]
  %s9 = sld [smem:[#allocation0]]
  $region50: #{text_subnet_forward.1} parent=0
    _
  %s11 = ssub.s32 1, %s9
  %s12 = scalar_select 0, %s11, %s9
  // Predicated region
  $region2: #{text_subnet_forward.1} parent=0 // pred_check
    _
  $region3: #{text_subnet_forward.1} parent=0 // pred_check_branch
    %14 = sbr.rel (0) target = $region5
  $region4: #{text_subnet_forward.1} parent=0 // pred_region
    _
  $region5: #{text_subnet_forward.1} parent=0 // pred_fallthru
    _
  // Predicated region
  $region6: #{text_subnet_forward.1} parent=0 // pred_check
    _
  $region7: #{text_subnet_forward.1} parent=0 // pred_check_branch
    %16 = sbr.rel (0) target = $region9
  $region8: #{text_subnet_forward.1} parent=0 // pred_region
    _
  $region9: #{text_subnet_forward.1} parent=0 // pred_fallthru
    _
  // Predicated region
  $region10: #{text_subnet_forward.1} parent=0 // pred_check
    _
  $region11: #{text_subnet_forward.1} parent=0 // pred_check_branch
    %18 = sbr.rel (0) target = $region13
  $region12: #{text_subnet_forward.1} parent=0 // pred_region
    _
  $region13: #{text_subnet_forward.1} parent=0 // pred_fallthru
    _
  // Predicated region
  $region14: #{text_subnet_forward.1} parent=0 // pred_check
    _
  $region15: #{text_subnet_forward.1} parent=0 // pred_check_branch
    %20 = sbr.rel (0) target = $region17
  $region16: #{text_subnet_forward.1} parent=0 // pred_region
    _
  $region17: #{text_subnet_forward.1} parent=0 // pred_fallthru
    _
  // Predicated region
  $region18: #{text_subnet_forward.1} parent=0 // pred_check
    _
  $region19: #{text_subnet_forward.1} parent=0 // pred_check_branch
    %22 = sbr.rel (0) target = $region21
  $region20: #{text_subnet_forward.1} parent=0 // pred_region
    _
  $region21: #{text_subnet_forward.1} parent=0 // pred_fallthru
    _
  // Predicated region
  $region22: #{text_subnet_forward.1} parent=0 // pred_check
    _
  $region23: #{text_subnet_forward.1} parent=0 // pred_check_branch
    %24 = sbr.rel (0) target = $region25
  $region24: #{text_subnet_forward.1} parent=0 // pred_region
    _
  $region25: #{text_subnet_forward.1} parent=0 // pred_fallthru
    _
  // Predicated region
  $region26: #{text_subnet_forward.1} parent=0 // pred_check
    _
  $region27: #{text_subnet_forward.1} parent=0 // pred_check_branch
    %26 = sbr.rel (0) target = $region29
  $region28: #{text_subnet_forward.1} parent=0 // pred_region
    _
  $region29: #{text_subnet_forward.1} parent=0 // pred_fallthru
    _
  // Predicated region
  $region30: #{text_subnet_forward.1} parent=0 // pred_check
    _
  $region31: #{text_subnet_forward.1} parent=0 // pred_check_branch
    %28 = sbr.rel (0) target = $region33
  $region32: #{text_subnet_forward.1} parent=0 // pred_region
    _
  $region33: #{text_subnet_forward.1} parent=0 // pred_fallthru
    _
  %p29 = scmp.eq.s32.totalorder 0, 0
  // Predicated region
  $region34: #{text_subnet_forward.1} parent=0 // pred_check
    %p30 = pneg %p29
  $region35: #{text_subnet_forward.1} parent=0 // pred_check_branch
    %32 = sbr.rel (%p30) target = $region37
  $region36: #{text_subnet_forward.1} parent=0 // pred_region
    %33 = vst [vmem:[#allocation3] sm:$0xff] 0.0
    %34 = vst [vmem:[#allocation4] sm:$0xff] 0.0
  $region37: #{text_subnet_forward.1} parent=0 // pred_fallthru
    _
  %v35 = vld [vmem:[%s0] sm:$0xff]
  %v36 = vld [vmem:[%s0 + $0x8] sm:$0xff]
  %v37 = vld [vmem:[%s0 + $0x10] sm:$0xff]
  %v38 = vld [vmem:[%s0 + $0x18] sm:$0xff]
  %v39 = vld [vmem:[%s0 + $0x20] sm:$0xff]
  %v40 = vld [vmem:[%s0 + $0x28] sm:$0xff]
  %v41 = vld [vmem:[%s0 + $0x30] sm:$0xff]
  %v42 = vld [vmem:[%s0 + $0x38] sm:$0xff]
  %v43 = vld [vmem:[%s1] sm:$0xff]
  %v44 = vld [vmem:[%s1 + $0x8] sm:$0xff]
  %v45 = vld [vmem:[%s1 + $0x10] sm:$0xff]
  %v46 = vld [vmem:[%s1 + $0x18] sm:$0xff]
  %v47 = vld [vmem:[%s1 + $0x20] sm:$0xff]
  %v48 = vld [vmem:[%s1 + $0x28] sm:$0xff]
  %v49 = vld [vmem:[%s1 + $0x30] sm:$0xff]
  %v50 = vld [vmem:[%s1 + $0x38] sm:$0xff]
  %v51 = vld [vmem:[%s3] sm:$0xf]
  %v53 = vlaneseq
  %v54 = vshrl.u32 %v53, 7
  %v55 = vsub.s32 0, %v54
  %v56 = vrot.slane %v51, %v55
  %v57 = vlaneseq
  %v58 = vshrl.u32 %v57, 7
  %v59 = vsub.s32 1, %v58
  %v60 = vrot.slane %v51, %v59
  %v61 = vlaneseq
  %v62 = vshrl.u32 %v61, 7
  %v63 = vsub.s32 2, %v62
  %v64 = vrot.slane %v51, %v63
  %v65 = vlaneseq
  %v66 = vshrl.u32 %v65, 7
  %v67 = vsub.s32 3, %v66
  %v68 = vrot.slane %v51, %v67
  %vm73 = vcmask 130048
  %v75 = vsel %vm73, %v35, 0
  %v78 = vsel %vm73, %v36, 0
  %v81 = vsel %vm73, %v37, 0
  %v84 = vsel %vm73, %v38, 0
  %v87 = vsel %vm73, %v39, 0
  %v90 = vsel %vm73, %v40, 0
  %v93 = vsel %vm73, %v41, 0
  %v96 = vsel %vm73, %v42, 0
  %98 = vmatprep.subr.mxu0 %v44
  %99 = vmatpush1.msra.mxu0 %v43
  %100 = vmatprep.subr.mxu0 %v48
  %101 = vmatpush1.msra.mxu0 %v47
  %102 = vmatprep.subr.mxu0 0.0
  %103 = vmatpush1.msra.mxu0 0.0
  %104 = vmatprep.subr.mxu0 0.0
  %105 = vmatpush1.msra.mxu0 0.0
  %106 = vmatprep.subr.mxu0 0.0
  %107 = vmatpush1.msra.mxu0 0.0
  %108 = vmatprep.subr.mxu0 0.0
  %109 = vmatpush1.msra.mxu0 0.0
  %110 = vmatprep.subr.mxu0 0.0
  %111 = vmatpush1.msra.mxu0 0.0
  %112 = vmatprep.subr.mxu0 0.0
  %113 = vmatpush1.msra.mxu0 0.0
  %114 = vmatprep.subr.mxu0 0.0
  %115 = vmatpush1.msra.mxu0 0.0
  %116 = vmatprep.subr.mxu0 0.0
  %117 = vmatpush1.msra.mxu0 0.0
  %118 = vmatprep.subr.mxu0 0.0
  %119 = vmatpush1.msra.mxu0 0.0
  %120 = vmatprep.subr.mxu0 0.0
  %121 = vmatpush1.msra.mxu0 0.0
  %122 = vmatprep.subr.mxu0 0.0
  %123 = vmatpush1.msra.mxu0 0.0
  %124 = vmatprep.subr.mxu0 0.0
  %125 = vmatpush1.msra.mxu0 0.0
  %126 = vmatprep.subr.mxu0 0.0
  %127 = vmatpush1.msra.mxu0 0.0
  %128 = vmatprep.subr.mxu0 0.0
  %129 = vmatpush1.msra.mxu0 0.0
  %130 = vmatprep.subr.mxu0 0.0
  %131 = vmatpush1.msra.mxu0 0.0
  %132 = vmatprep.subr.mxu0 0.0
  %133 = vmatpush1.msra.mxu0 0.0
  %134 = vmatprep.subr.mxu0 0.0
  %135 = vmatpush1.msra.mxu0 0.0
  %136 = vmatprep.subr.mxu0 0.0
  %137 = vmatpush1.msra.mxu0 0.0
  %138 = vmatprep.subr.mxu0 0.0
  %139 = vmatpush1.msra.mxu0 0.0
  %140 = vmatprep.subr.mxu0 0.0
  %141 = vmatpush1.msra.mxu0 0.0
  %142 = vmatprep.subr.mxu0 0.0
  %143 = vmatpush1.msra.mxu0 0.0
  %144 = vmatprep.subr.mxu0 0.0
  %145 = vmatpush1.msra.mxu0 0.0
  %146 = vmatprep.subr.mxu0 0.0
  %147 = vmatpush1.msra.mxu0 0.0
  %148 = vmatprep.subr.mxu0 0.0
  %149 = vmatpush1.msra.mxu0 0.0
  %150 = vmatprep.subr.mxu0 0.0
  %151 = vmatpush1.msra.mxu0 0.0
  %152 = vmatprep.subr.mxu0 0.0
  %153 = vmatpush1.msra.mxu0 0.0
  %154 = vmatprep.subr.mxu0 0.0
  %155 = vmatpush1.msra.mxu0 0.0
  %156 = vmatprep.subr.mxu0 0.0
  %157 = vmatpush1.msra.mxu0 0.0
  %158 = vmatprep.subr.mxu0 0.0
  %159 = vmatpush1.msra.mxu0 0.0
  %160 = vmatprep.subr.mxu0 0.0
  %161 = vmatpush1.msra.mxu0 0.0
  %162 = vmatprep.mubr.f32.mxu0 0.0
  %163 = vmatmul.mubr.f32.gmra.mrb[0].mxu0 %v75
  %v164 = vpop.f32.mrb[0].mxu0
  %v165 = vadd.f32 %v56, %v164
  %v166 = vpop.f32.mrb[0].mxu0
  %v167 = vadd.f32 %v60, %v166
  %168 = vmatprep.mubr.f32.mxu0 0.0
  %169 = vmatmul.mubr.f32.gmra.mrb[0].mxu0 %v78
  %v170 = vpop.f32.mrb[0].mxu0
  %v171 = vadd.f32 %v56, %v170
  %v172 = vpop.f32.mrb[0].mxu0
  %v173 = vadd.f32 %v60, %v172
  %174 = vmatprep.mubr.f32.mxu0 0.0
  %175 = vmatmul.mubr.f32.gmra.mrb[0].mxu0 %v81
  %v176 = vpop.f32.mrb[0].mxu0
  %v177 = vadd.f32 %v56, %v176
  %v178 = vpop.f32.mrb[0].mxu0
  %v179 = vadd.f32 %v60, %v178
  %180 = vmatprep.mubr.f32.mxu0 0.0
  %181 = vmatmul.mubr.f32.gmra.mrb[0].mxu0 %v84
  %v182 = vpop.f32.mrb[0].mxu0
  %v183 = vadd.f32 %v56, %v182
  %v184 = vpop.f32.mrb[0].mxu0
  %v185 = vadd.f32 %v60, %v184
  %186 = vmatprep.mubr.f32.mxu0 0.0
  %187 = vmatmul.mubr.f32.gmra.mrb[0].mxu0 %v87
  %v188 = vpop.f32.mrb[0].mxu0
  %v189 = vadd.f32 %v56, %v188
  %v190 = vpop.f32.mrb[0].mxu0
  %v191 = vadd.f32 %v60, %v190
  %192 = vmatprep.mubr.f32.mxu0 0.0
  %193 = vmatmul.mubr.f32.gmra.mrb[0].mxu0 %v90
  %v194 = vpop.f32.mrb[0].mxu0
  %v195 = vadd.f32 %v56, %v194
  %v196 = vpop.f32.mrb[0].mxu0
  %v197 = vadd.f32 %v60, %v196
  %198 = vmatprep.mubr.f32.mxu0 0.0
  %199 = vmatmul.mubr.f32.gmra.mrb[0].mxu0 %v93
  %v200 = vpop.f32.mrb[0].mxu0
  %v201 = vadd.f32 %v56, %v200
  %v202 = vpop.f32.mrb[0].mxu0
  %v203 = vadd.f32 %v60, %v202
  %204 = vmatprep.mubr.f32.mxu0 0.0
  %205 = vmatmul.mubr.f32.gmra.mrb[0].mxu0 %v96
  %v206 = vpop.f32.mrb[0].mxu0
  %v207 = vadd.f32 %v56, %v206
  %v208 = vpop.f32.mrb[0].mxu0
  %v209 = vadd.f32 %v60, %v208
  %210 = vdwg.mxu0
  %211 = vmatprep.subr.mxu0 %v46
  %212 = vmatpush1.msra.mxu0 %v45
  %213 = vmatprep.subr.mxu0 %v50
  %214 = vmatpush1.msra.mxu0 %v49
  %215 = vmatprep.subr.mxu0 0.0
  %216 = vmatpush1.msra.mxu0 0.0
  %217 = vmatprep.subr.mxu0 0.0
  %218 = vmatpush1.msra.mxu0 0.0
  %219 = vmatprep.subr.mxu0 0.0
  %220 = vmatpush1.msra.mxu0 0.0
  %221 = vmatprep.subr.mxu0 0.0
  %222 = vmatpush1.msra.mxu0 0.0
  %223 = vmatprep.subr.mxu0 0.0
  %224 = vmatpush1.msra.mxu0 0.0
  %225 = vmatprep.subr.mxu0 0.0
  %226 = vmatpush1.msra.mxu0 0.0
  %227 = vmatprep.subr.mxu0 0.0
  %228 = vmatpush1.msra.mxu0 0.0
  %229 = vmatprep.subr.mxu0 0.0
  %230 = vmatpush1.msra.mxu0 0.0
  %231 = vmatprep.subr.mxu0 0.0
  %232 = vmatpush1.msra.mxu0 0.0
  %233 = vmatprep.subr.mxu0 0.0
  %234 = vmatpush1.msra.mxu0 0.0
  %235 = vmatprep.subr.mxu0 0.0
  %236 = vmatpush1.msra.mxu0 0.0
  %237 = vmatprep.subr.mxu0 0.0
  %238 = vmatpush1.msra.mxu0 0.0
  %239 = vmatprep.subr.mxu0 0.0
  %240 = vmatpush1.msra.mxu0 0.0
  %241 = vmatprep.subr.mxu0 0.0
  %242 = vmatpush1.msra.mxu0 0.0
  %243 = vmatprep.subr.mxu0 0.0
  %244 = vmatpush1.msra.mxu0 0.0
  %245 = vmatprep.subr.mxu0 0.0
  %246 = vmatpush1.msra.mxu0 0.0
  %247 = vmatprep.subr.mxu0 0.0
  %248 = vmatpush1.msra.mxu0 0.0
  %249 = vmatprep.subr.mxu0 0.0
  %250 = vmatpush1.msra.mxu0 0.0
  %251 = vmatprep.subr.mxu0 0.0
  %252 = vmatpush1.msra.mxu0 0.0
  %253 = vmatprep.subr.mxu0 0.0
  %254 = vmatpush1.msra.mxu0 0.0
  %255 = vmatprep.subr.mxu0 0.0
  %256 = vmatpush1.msra.mxu0 0.0
  %257 = vmatprep.subr.mxu0 0.0
  %258 = vmatpush1.msra.mxu0 0.0
  %259 = vmatprep.subr.mxu0 0.0
  %260 = vmatpush1.msra.mxu0 0.0
  %261 = vmatprep.subr.mxu0 0.0
  %262 = vmatpush1.msra.mxu0 0.0
  %263 = vmatprep.subr.mxu0 0.0
  %264 = vmatpush1.msra.mxu0 0.0
  %265 = vmatprep.subr.mxu0 0.0
  %266 = vmatpush1.msra.mxu0 0.0
  %267 = vmatprep.subr.mxu0 0.0
  %268 = vmatpush1.msra.mxu0 0.0
  %269 = vmatprep.subr.mxu0 0.0
  %270 = vmatpush1.msra.mxu0 0.0
  %271 = vmatprep.subr.mxu0 0.0
  %272 = vmatpush1.msra.mxu0 0.0
  %273 = vmatprep.subr.mxu0 0.0
  %274 = vmatpush1.msra.mxu0 0.0
  %275 = vmatprep.mubr.f32.mxu0 0.0
  %276 = vmatmul.mubr.f32.gmra.mrb[0].mxu0 %v75
  %v277 = vpop.f32.mrb[0].mxu0
  %v278 = vadd.f32 %v64, %v277
  %v279 = vpop.f32.mrb[0].mxu0
  %v280 = vadd.f32 %v68, %v279
  %281 = vmatprep.mubr.f32.mxu0 0.0
  %282 = vmatmul.mubr.f32.gmra.mrb[0].mxu0 %v78
  %v283 = vpop.f32.mrb[0].mxu0
  %v284 = vadd.f32 %v64, %v283
  %v285 = vpop.f32.mrb[0].mxu0
  %v286 = vadd.f32 %v68, %v285
  %287 = vmatprep.mubr.f32.mxu0 0.0
  %288 = vmatmul.mubr.f32.gmra.mrb[0].mxu0 %v81
  %v289 = vpop.f32.mrb[0].mxu0
  %v290 = vadd.f32 %v64, %v289
  %v291 = vpop.f32.mrb[0].mxu0
  %v292 = vadd.f32 %v68, %v291
  %293 = vmatprep.mubr.f32.mxu0 0.0
  %294 = vmatmul.mubr.f32.gmra.mrb[0].mxu0 %v84
  %v295 = vpop.f32.mrb[0].mxu0
  %v296 = vadd.f32 %v64, %v295
  %v297 = vpop.f32.mrb[0].mxu0
  %v298 = vadd.f32 %v68, %v297
  %299 = vmatprep.mubr.f32.mxu0 0.0
  %300 = vmatmul.mubr.f32.gmra.mrb[0].mxu0 %v87
  %v301 = vpop.f32.mrb[0].mxu0
  %v302 = vadd.f32 %v64, %v301
  %v303 = vpop.f32.mrb[0].mxu0
  %v304 = vadd.f32 %v68, %v303
  %305 = vmatprep.mubr.f32.mxu0 0.0
  %306 = vmatmul.mubr.f32.gmra.mrb[0].mxu0 %v90
  %v307 = vpop.f32.mrb[0].mxu0
  %v308 = vadd.f32 %v64, %v307
  %v309 = vpop.f32.mrb[0].mxu0
  %v310 = vadd.f32 %v68, %v309
  %311 = vmatprep.mubr.f32.mxu0 0.0
  %312 = vmatmul.mubr.f32.gmra.mrb[0].mxu0 %v93
  %v313 = vpop.f32.mrb[0].mxu0
  %v314 = vadd.f32 %v64, %v313
  %v315 = vpop.f32.mrb[0].mxu0
  %v316 = vadd.f32 %v68, %v315
  %317 = vmatprep.mubr.f32.mxu0 0.0
  %318 = vmatmul.mubr.f32.gmra.mrb[0].mxu0 %v96
  %v319 = vpop.f32.mrb[0].mxu0
  %v320 = vadd.f32 %v64, %v319
  %v321 = vpop.f32.mrb[0].mxu0
  %v322 = vadd.f32 %v68, %v321
  %323 = vdwg.mxu0
  %324 = vst [vmem:[#allocation2] sm:$0xff] %v165
  %325 = vst [vmem:[#allocation2 + $0x8] sm:$0xff] %v167
  %326 = vst [vmem:[#allocation2 + $0x10] sm:$0xff] %v278
  %327 = vst [vmem:[#allocation2 + $0x18] sm:$0xff] %v280
  %328 = vst [vmem:[#allocation2 + $0x20] sm:$0xff] %v171
  %329 = vst [vmem:[#allocation2 + $0x28] sm:$0xff] %v173
  %330 = vst [vmem:[#allocation2 + $0x30] sm:$0xff] %v284
  %331 = vst [vmem:[#allocation2 + $0x38] sm:$0xff] %v286
  %332 = vst [vmem:[#allocation2 + $0x40] sm:$0xff] %v177
  %333 = vst [vmem:[#allocation2 + $0x48] sm:$0xff] %v179
  %334 = vst [vmem:[#allocation2 + $0x50] sm:$0xff] %v290
  %335 = vst [vmem:[#allocation2 + $0x58] sm:$0xff] %v292
  %336 = vst [vmem:[#allocation2 + $0x60] sm:$0xff] %v183
  %337 = vst [vmem:[#allocation2 + $0x68] sm:$0xff] %v185
  %338 = vst [vmem:[#allocation2 + $0x70] sm:$0xff] %v296
  %339 = vst [vmem:[#allocation2 + $0x78] sm:$0xff] %v298
  %340 = vst [vmem:[#allocation2 + $0x80] sm:$0xff] %v189
  %341 = vst [vmem:[#allocation2 + $0x88] sm:$0xff] %v191
  %342 = vst [vmem:[#allocation2 + $0x90] sm:$0xff] %v302
  %343 = vst [vmem:[#allocation2 + $0x98] sm:$0xff] %v304
  %344 = vst [vmem:[#allocation2 + $0xa0] sm:$0xff] %v195
  %345 = vst [vmem:[#allocation2 + $0xa8] sm:$0xff] %v197
  %346 = vst [vmem:[#allocation2 + $0xb0] sm:$0xff] %v308
  %347 = vst [vmem:[#allocation2 + $0xb8] sm:$0xff] %v310
  %348 = vst [vmem:[#allocation2 + $0xc0] sm:$0xff] %v201
  %349 = vst [vmem:[#allocation2 + $0xc8] sm:$0xff] %v203
  %350 = vst [vmem:[#allocation2 + $0xd0] sm:$0xff] %v314
  %351 = vst [vmem:[#allocation2 + $0xd8] sm:$0xff] %v316
  %352 = vst [vmem:[#allocation2 + $0xe0] sm:$0xff] %v207
  %353 = vst [vmem:[#allocation2 + $0xe8] sm:$0xff] %v209
  %354 = vst [vmem:[#allocation2 + $0xf0] sm:$0xff] %v320
  %355 = vst [vmem:[#allocation2 + $0xf8] sm:$0xff] %v322
  %s356 = smul.u32 0, 4
  %s357 = smul.addr %s356, 8
  %s358 = scalar_lea.vmem [#allocation2], %s357
  %v359 = vld [vmem:[%s358] sm:$0xff]
  %v360 = vld [vmem:[%s358 + $0x8] sm:$0xff]
  %v361 = vld [vmem:[%s358 + $0x10] sm:$0xff]
  %v362 = vld [vmem:[%s358 + $0x18] sm:$0xff]
  %v363 = vld [vmem:[#allocation3] sm:$0xff]
  %v364 = vld [vmem:[%s2] sm:$0xff]
  %v365 = vld [vmem:[%s2 + $0x8] sm:$0xff]
  %v366 = vld [vmem:[%s2 + $0x10] sm:$0xff]
  %v367 = vld [vmem:[%s2 + $0x18] sm:$0xff]
  %v368 = vld [vmem:[%s2 + $0x20] sm:$0xff]
  %v369 = vld [vmem:[%s2 + $0x28] sm:$0xff]
  %v370 = vld [vmem:[%s2 + $0x30] sm:$0xff]
  %v371 = vld [vmem:[%s2 + $0x38] sm:$0xff]
  %v372 = vld [vmem:[%s2 + $0x40] sm:$0xff]
  %v373 = vld [vmem:[%s2 + $0x48] sm:$0xff]
  %v374 = vld [vmem:[%s2 + $0x50] sm:$0xff]
  %v375 = vld [vmem:[%s2 + $0x58] sm:$0xff]
  %v376 = vld [vmem:[%s2 + $0x60] sm:$0xff]
  %v377 = vld [vmem:[%s2 + $0x68] sm:$0xff]
  %v378 = vld [vmem:[%s2 + $0x70] sm:$0xff]
  %v379 = vld [vmem:[%s2 + $0x78] sm:$0xff]
  %v380 = vld [vmem:[%s2 + $0x80] sm:$0xff]
  %v381 = vld [vmem:[%s2 + $0x88] sm:$0xff]
  %v382 = vld [vmem:[%s2 + $0x90] sm:$0xff]
  %v383 = vld [vmem:[%s2 + $0x98] sm:$0xff]
  %v384 = vld [vmem:[%s2 + $0xa0] sm:$0xff]
  %v385 = vld [vmem:[%s2 + $0xa8] sm:$0xff]
  %v386 = vld [vmem:[%s2 + $0xb0] sm:$0xff]
  %v387 = vld [vmem:[%s2 + $0xb8] sm:$0xff]
  %v388 = vld [vmem:[%s2 + $0xc0] sm:$0xff]
  %v389 = vld [vmem:[%s2 + $0xc8] sm:$0xff]
  %v390 = vld [vmem:[%s2 + $0xd0] sm:$0xff]
  %v391 = vld [vmem:[%s2 + $0xd8] sm:$0xff]
  %v392 = vld [vmem:[%s2 + $0xe0] sm:$0xff]
  %v393 = vld [vmem:[%s2 + $0xe8] sm:$0xff]
  %v394 = vld [vmem:[%s2 + $0xf0] sm:$0xff]
  %v395 = vld [vmem:[%s2 + $0xf8] sm:$0xff]
  %v396 = vld [vmem:[%s2 + $0x100] sm:$0xff]
  %v397 = vld [vmem:[%s2 + $0x108] sm:$0xff]
  %v398 = vld [vmem:[%s2 + $0x110] sm:$0xff]
  %v399 = vld [vmem:[%s2 + $0x118] sm:$0xff]
  %v400 = vld [vmem:[%s2 + $0x120] sm:$0xff]
  %v401 = vld [vmem:[%s2 + $0x128] sm:$0xff]
  %v402 = vld [vmem:[%s2 + $0x130] sm:$0xff]
  %v403 = vld [vmem:[%s2 + $0x138] sm:$0xff]
  %v404 = vld [vmem:[%s2 + $0x140] sm:$0xff]
  %v405 = vld [vmem:[%s2 + $0x148] sm:$0xff]
  %v406 = vld [vmem:[%s2 + $0x150] sm:$0xff]
  %v407 = vld [vmem:[%s2 + $0x158] sm:$0xff]
  %v408 = vld [vmem:[%s2 + $0x160] sm:$0xff]
  %v409 = vld [vmem:[%s2 + $0x168] sm:$0xff]
  %v410 = vld [vmem:[%s2 + $0x170] sm:$0xff]
  %v411 = vld [vmem:[%s2 + $0x178] sm:$0xff]
  %v412 = vld [vmem:[%s2 + $0x180] sm:$0xff]
  %v413 = vld [vmem:[%s2 + $0x188] sm:$0xff]
  %v414 = vld [vmem:[%s2 + $0x190] sm:$0xff]
  %v415 = vld [vmem:[%s2 + $0x198] sm:$0xff]
  %v416 = vld [vmem:[%s2 + $0x1a0] sm:$0xff]
  %v417 = vld [vmem:[%s2 + $0x1a8] sm:$0xff]
  %v418 = vld [vmem:[%s2 + $0x1b0] sm:$0xff]
  %v419 = vld [vmem:[%s2 + $0x1b8] sm:$0xff]
  %v420 = vld [vmem:[%s2 + $0x1c0] sm:$0xff]
  %v421 = vld [vmem:[%s2 + $0x1c8] sm:$0xff]
  %v422 = vld [vmem:[%s2 + $0x1d0] sm:$0xff]
  %v423 = vld [vmem:[%s2 + $0x1d8] sm:$0xff]
  %v424 = vld [vmem:[%s2 + $0x1e0] sm:$0xff]
  %v425 = vld [vmem:[%s2 + $0x1e8] sm:$0xff]
  %v426 = vld [vmem:[%s2 + $0x1f0] sm:$0xff]
  %v427 = vld [vmem:[%s2 + $0x1f8] sm:$0xff]
  %428 = vmatprep.subr.mxu0 %v365
  %429 = vmatpush1.msra.mxu0 %v364
  %430 = vmatprep.subr.mxu0 %v369
  %431 = vmatpush1.msra.mxu0 %v368
  %432 = vmatprep.subr.mxu0 %v373
  %433 = vmatpush1.msra.mxu0 %v372
  %434 = vmatprep.subr.mxu0 %v377
  %435 = vmatpush1.msra.mxu0 %v376
  %436 = vmatprep.subr.mxu0 %v381
  %437 = vmatpush1.msra.mxu0 %v380
  %438 = vmatprep.subr.mxu0 %v385
  %439 = vmatpush1.msra.mxu0 %v384
  %440 = vmatprep.subr.mxu0 %v389
  %441 = vmatpush1.msra.mxu0 %v388
  %442 = vmatprep.subr.mxu0 %v393
  %443 = vmatpush1.msra.mxu0 %v392
  %444 = vmatprep.subr.mxu0 %v397
  %445 = vmatpush1.msra.mxu0 %v396
  %446 = vmatprep.subr.mxu0 %v401
  %447 = vmatpush1.msra.mxu0 %v400
  %448 = vmatprep.subr.mxu0 %v405
  %449 = vmatpush1.msra.mxu0 %v404
  %450 = vmatprep.subr.mxu0 %v409
  %451 = vmatpush1.msra.mxu0 %v408
  %452 = vmatprep.subr.mxu0 %v413
  %453 = vmatpush1.msra.mxu0 %v412
  %454 = vmatprep.subr.mxu0 %v417
  %455 = vmatpush1.msra.mxu0 %v416
  %456 = vmatprep.subr.mxu0 %v421
  %457 = vmatpush1.msra.mxu0 %v420
  %458 = vmatprep.subr.mxu0 %v425
  %459 = vmatpush1.msra.mxu0 %v424
  %460 = vmatprep.subr.mxu0 0.0
  %461 = vmatpush1.msra.mxu0 0.0
  %462 = vmatprep.subr.mxu0 0.0
  %463 = vmatpush1.msra.mxu0 0.0
  %464 = vmatprep.subr.mxu0 0.0
  %465 = vmatpush1.msra.mxu0 0.0
  %466 = vmatprep.subr.mxu0 0.0
  %467 = vmatpush1.msra.mxu0 0.0
  %468 = vmatprep.subr.mxu0 0.0
  %469 = vmatpush1.msra.mxu0 0.0
  %470 = vmatprep.subr.mxu0 0.0
  %471 = vmatpush1.msra.mxu0 0.0
  %472 = vmatprep.subr.mxu0 0.0
  %473 = vmatpush1.msra.mxu0 0.0
  %474 = vmatprep.subr.mxu0 0.0
  %475 = vmatpush1.msra.mxu0 0.0
  %476 = vmatprep.subr.mxu0 0.0
  %477 = vmatpush1.msra.mxu0 0.0
  %478 = vmatprep.subr.mxu0 0.0
  %479 = vmatpush1.msra.mxu0 0.0
  %480 = vmatprep.subr.mxu0 0.0
  %481 = vmatpush1.msra.mxu0 0.0
  %482 = vmatprep.subr.mxu0 0.0
  %483 = vmatpush1.msra.mxu0 0.0
  %484 = vmatprep.subr.mxu0 0.0
  %485 = vmatpush1.msra.mxu0 0.0
  %486 = vmatprep.subr.mxu0 0.0
  %487 = vmatpush1.msra.mxu0 0.0
  %488 = vmatprep.subr.mxu0 0.0
  %489 = vmatpush1.msra.mxu0 0.0
  %490 = vmatprep.subr.mxu0 0.0
  %491 = vmatpush1.msra.mxu0 0.0
  %492 = vmatprep.mubr.f32.mxu0 0.0
  %493 = vmatmul.mubr.f32.gmra.mrb[0].mxu0 %v363
  %v494 = vpop.f32.mrb[0].mxu0
  %v495 = vadd.f32 0.0, %v494
  %v496 = vpop.f32.mrb[0].mxu0
  %v497 = vadd.f32 0.0, %v496
  %498 = vdwg.mxu0
  %499 = vmatprep.subr.mxu0 %v367
  %500 = vmatpush1.msra.mxu0 %v366
  %501 = vmatprep.subr.mxu0 %v371
  %502 = vmatpush1.msra.mxu0 %v370
  %503 = vmatprep.subr.mxu0 %v375
  %504 = vmatpush1.msra.mxu0 %v374
  %505 = vmatprep.subr.mxu0 %v379
  %506 = vmatpush1.msra.mxu0 %v378
  %507 = vmatprep.subr.mxu0 %v383
  %508 = vmatpush1.msra.mxu0 %v382
  %509 = vmatprep.subr.mxu0 %v387
  %510 = vmatpush1.msra.mxu0 %v386
  %511 = vmatprep.subr.mxu0 %v391
  %512 = vmatpush1.msra.mxu0 %v390
  %513 = vmatprep.subr.mxu0 %v395
  %514 = vmatpush1.msra.mxu0 %v394
  %515 = vmatprep.subr.mxu0 %v399
  %516 = vmatpush1.msra.mxu0 %v398
  %517 = vmatprep.subr.mxu0 %v403
  %518 = vmatpush1.msra.mxu0 %v402
  %519 = vmatprep.subr.mxu0 %v407
  %520 = vmatpush1.msra.mxu0 %v406
  %521 = vmatprep.subr.mxu0 %v411
  %522 = vmatpush1.msra.mxu0 %v410
  %523 = vmatprep.subr.mxu0 %v415
  %524 = vmatpush1.msra.mxu0 %v414
  %525 = vmatprep.subr.mxu0 %v419
  %526 = vmatpush1.msra.mxu0 %v418
  %527 = vmatprep.subr.mxu0 %v423
  %528 = vmatpush1.msra.mxu0 %v422
  %529 = vmatprep.subr.mxu0 %v427
  %530 = vmatpush1.msra.mxu0 %v426
  %531 = vmatprep.subr.mxu0 0.0
  %532 = vmatpush1.msra.mxu0 0.0
  %533 = vmatprep.subr.mxu0 0.0
  %534 = vmatpush1.msra.mxu0 0.0
  %535 = vmatprep.subr.mxu0 0.0
  %536 = vmatpush1.msra.mxu0 0.0
  %537 = vmatprep.subr.mxu0 0.0
  %538 = vmatpush1.msra.mxu0 0.0
  %539 = vmatprep.subr.mxu0 0.0
  %540 = vmatpush1.msra.mxu0 0.0
  %541 = vmatprep.subr.mxu0 0.0
  %542 = vmatpush1.msra.mxu0 0.0
  %543 = vmatprep.subr.mxu0 0.0
  %544 = vmatpush1.msra.mxu0 0.0
  %545 = vmatprep.subr.mxu0 0.0
  %546 = vmatpush1.msra.mxu0 0.0
  %547 = vmatprep.subr.mxu0 0.0
  %548 = vmatpush1.msra.mxu0 0.0
  %549 = vmatprep.subr.mxu0 0.0
  %550 = vmatpush1.msra.mxu0 0.0
  %551 = vmatprep.subr.mxu0 0.0
  %552 = vmatpush1.msra.mxu0 0.0
  %553 = vmatprep.subr.mxu0 0.0
  %554 = vmatpush1.msra.mxu0 0.0
  %555 = vmatprep.subr.mxu0 0.0
  %556 = vmatpush1.msra.mxu0 0.0
  %557 = vmatprep.subr.mxu0 0.0
  %558 = vmatpush1.msra.mxu0 0.0
  %559 = vmatprep.subr.mxu0 0.0
  %560 = vmatpush1.msra.mxu0 0.0
  %561 = vmatprep.subr.mxu0 0.0
  %562 = vmatpush1.msra.mxu0 0.0
  %563 = vmatprep.mubr.f32.mxu0 0.0
  %564 = vmatmul.mubr.f32.gmra.mrb[0].mxu0 %v363
  %v565 = vpop.f32.mrb[0].mxu0
  %v566 = vadd.f32 0.0, %v565
  %v567 = vpop.f32.mrb[0].mxu0
  %v568 = vadd.f32 0.0, %v567
  %569 = vdwg.mxu0
  %v570 = vadd.f32 %v359, %v495
  %v571 = vadd.f32 %v360, %v497
  %v572 = vadd.f32 %v361, %v566
  %v573 = vadd.f32 %v362, %v568
  %v574 = vxor.u32 %v570, 2147483648
  %v575 = vmul.f32 %v574, 1.442695
  %v576 = vpow.pop %v575
  %v577 = vadd.f32 %v576, 1.0
  %v578 = vrcp.pop %v577
  %v579 = vmul.f32 1.0, %v578
  %v580 = vxor.u32 %v571, 2147483648
  %v581 = vmul.f32 %v580, 1.442695
  %v582 = vpow.pop %v581
  %v583 = vadd.f32 %v582, 1.0
  %v584 = vrcp.pop %v583
  %v585 = vmul.f32 1.0, %v584
  %v586 = vtanh.pop %v572
  %v587 = vxor.u32 %v573, 2147483648
  %v588 = vmul.f32 %v587, 1.442695
  %v589 = vpow.pop %v588
  %v590 = vadd.f32 %v589, 1.0
  %v591 = vrcp.pop %v590
  %v592 = vmul.f32 1.0, %v591
  %v593 = vld [vmem:[#allocation4] sm:$0xff]
  %v594 = vmul.f32 %v585, %v593
  %v595 = vmul.f32 %v579, %v586
  %v596 = vadd.f32 %v594, %v595
  %v597 = vtanh.pop %v596
  %v598 = vmul.f32 %v592, %v597
  %599 = vst [vmem:[#allocation4] sm:$0xff] %v596
  %600 = vst [vmem:[#allocation3] sm:$0xff] %v598
  %s601 = smul.u32 1, 4
  %s602 = smul.addr %s601, 8
  %s603 = scalar_lea.vmem [#allocation2], %s602
  %v604 = vld [vmem:[%s603] sm:$0xff]
  %v605 = vld [vmem:[%s603 + $0x8] sm:$0xff]
  %v606 = vld [vmem:[%s603 + $0x10] sm:$0xff]
  %v607 = vld [vmem:[%s603 + $0x18] sm:$0xff]
  %v608 = vld [vmem:[#allocation3] sm:$0xff]
  %v609 = vld [vmem:[%s2] sm:$0xff]
  %v610 = vld [vmem:[%s2 + $0x8] sm:$0xff]
  %v611 = vld [vmem:[%s2 + $0x10] sm:$0xff]
  %v612 = vld [vmem:[%s2 + $0x18] sm:$0xff]
  %v613 = vld [vmem:[%s2 + $0x20] sm:$0xff]
  %v614 = vld [vmem:[%s2 + $0x28] sm:$0xff]
  %v615 = vld [vmem:[%s2 + $0x30] sm:$0xff]
  %v616 = vld [vmem:[%s2 + $0x38] sm:$0xff]
  %v617 = vld [vmem:[%s2 + $0x40] sm:$0xff]
  %v618 = vld [vmem:[%s2 + $0x48] sm:$0xff]
  %v619 = vld [vmem:[%s2 + $0x50] sm:$0xff]
  %v620 = vld [vmem:[%s2 + $0x58] sm:$0xff]
  %v621 = vld [vmem:[%s2 + $0x60] sm:$0xff]
  %v622 = vld [vmem:[%s2 + $0x68] sm:$0xff]
  %v623 = vld [vmem:[%s2 + $0x70] sm:$0xff]
  %v624 = vld [vmem:[%s2 + $0x78] sm:$0xff]
  %v625 = vld [vmem:[%s2 + $0x80] sm:$0xff]
  %v626 = vld [vmem:[%s2 + $0x88] sm:$0xff]
  %v627 = vld [vmem:[%s2 + $0x90] sm:$0xff]
  %v628 = vld [vmem:[%s2 + $0x98] sm:$0xff]
  %v629 = vld [vmem:[%s2 + $0xa0] sm:$0xff]
  %v630 = vld [vmem:[%s2 + $0xa8] sm:$0xff]
  %v631 = vld [vmem:[%s2 + $0xb0] sm:$0xff]
  %v632 = vld [vmem:[%s2 + $0xb8] sm:$0xff]
  %v633 = vld [vmem:[%s2 + $0xc0] sm:$0xff]
  %v634 = vld [vmem:[%s2 + $0xc8] sm:$0xff]
  %v635 = vld [vmem:[%s2 + $0xd0] sm:$0xff]
  %v636 = vld [vmem:[%s2 + $0xd8] sm:$0xff]
  %v637 = vld [vmem:[%s2 + $0xe0] sm:$0xff]
  %v638 = vld [vmem:[%s2 + $0xe8] sm:$0xff]
  %v639 = vld [vmem:[%s2 + $0xf0] sm:$0xff]
  %v640 = vld [vmem:[%s2 + $0xf8] sm:$0xff]
  %v641 = vld [vmem:[%s2 + $0x100] sm:$0xff]
  %v642 = vld [vmem:[%s2 + $0x108] sm:$0xff]
  %v643 = vld [vmem:[%s2 + $0x110] sm:$0xff]
  %v644 = vld [vmem:[%s2 + $0x118] sm:$0xff]
  %v645 = vld [vmem:[%s2 + $0x120] sm:$0xff]
  %v646 = vld [vmem:[%s2 + $0x128] sm:$0xff]
  %v647 = vld [vmem:[%s2 + $0x130] sm:$0xff]
  %v648 = vld [vmem:[%s2 + $0x138] sm:$0xff]
  %v649 = vld [vmem:[%s2 + $0x140] sm:$0xff]
  %v650 = vld [vmem:[%s2 + $0x148] sm:$0xff]
  %v651 = vld [vmem:[%s2 + $0x150] sm:$0xff]
  %v652 = vld [vmem:[%s2 + $0x158] sm:$0xff]
  %v653 = vld [vmem:[%s2 + $0x160] sm:$0xff]
  %v654 = vld [vmem:[%s2 + $0x168] sm:$0xff]
  %v655 = vld [vmem:[%s2 + $0x170] sm:$0xff]
  %v656 = vld [vmem:[%s2 + $0x178] sm:$0xff]
  %v657 = vld [vmem:[%s2 + $0x180] sm:$0xff]
  %v658 = vld [vmem:[%s2 + $0x188] sm:$0xff]
  %v659 = vld [vmem:[%s2 + $0x190] sm:$0xff]
  %v660 = vld [vmem:[%s2 + $0x198] sm:$0xff]
  %v661 = vld [vmem:[%s2 + $0x1a0] sm:$0xff]
  %v662 = vld [vmem:[%s2 + $0x1a8] sm:$0xff]
  %v663 = vld [vmem:[%s2 + $0x1b0] sm:$0xff]
  %v664 = vld [vmem:[%s2 + $0x1b8] sm:$0xff]
  %v665 = vld [vmem:[%s2 + $0x1c0] sm:$0xff]
  %v666 = vld [vmem:[%s2 + $0x1c8] sm:$0xff]
  %v667 = vld [vmem:[%s2 + $0x1d0] sm:$0xff]
  %v668 = vld [vmem:[%s2 + $0x1d8] sm:$0xff]
  %v669 = vld [vmem:[%s2 + $0x1e0] sm:$0xff]
  %v670 = vld [vmem:[%s2 + $0x1e8] sm:$0xff]
  %v671 = vld [vmem:[%s2 + $0x1f0] sm:$0xff]
  %v672 = vld [vmem:[%s2 + $0x1f8] sm:$0xff]
  %673 = vmatprep.subr.mxu0 %v610
  %674 = vmatpush1.msra.mxu0 %v609
  %675 = vmatprep.subr.mxu0 %v614
  %676 = vmatpush1.msra.mxu0 %v613
  %677 = vmatprep.subr.mxu0 %v618
  %678 = vmatpush1.msra.mxu0 %v617
  %679 = vmatprep.subr.mxu0 %v622
  %680 = vmatpush1.msra.mxu0 %v621
  %681 = vmatprep.subr.mxu0 %v626
  %682 = vmatpush1.msra.mxu0 %v625
  %683 = vmatprep.subr.mxu0 %v630
  %684 = vmatpush1.msra.mxu0 %v629
  %685 = vmatprep.subr.mxu0 %v634
  %686 = vmatpush1.msra.mxu0 %v633
  %687 = vmatprep.subr.mxu0 %v638
  %688 = vmatpush1.msra.mxu0 %v637
  %689 = vmatprep.subr.mxu0 %v642
  %690 = vmatpush1.msra.mxu0 %v641
  %691 = vmatprep.subr.mxu0 %v646
  %692 = vmatpush1.msra.mxu0 %v645
  %693 = vmatprep.subr.mxu0 %v650
  %694 = vmatpush1.msra.mxu0 %v649
  %695 = vmatprep.subr.mxu0 %v654
  %696 = vmatpush1.msra.mxu0 %v653
  %697 = vmatprep.subr.mxu0 %v658
  %698 = vmatpush1.msra.mxu0 %v657
  %699 = vmatprep.subr.mxu0 %v662
  %700 = vmatpush1.msra.mxu0 %v661
  %701 = vmatprep.subr.mxu0 %v666
  %702 = vmatpush1.msra.mxu0 %v665
  %703 = vmatprep.subr.mxu0 %v670
  %704 = vmatpush1.msra.mxu0 %v669
  %705 = vmatprep.subr.mxu0 0.0
  %706 = vmatpush1.msra.mxu0 0.0
  %707 = vmatprep.subr.mxu0 0.0
  %708 = vmatpush1.msra.mxu0 0.0
  %709 = vmatprep.subr.mxu0 0.0
  %710 = vmatpush1.msra.mxu0 0.0
  %711 = vmatprep.subr.mxu0 0.0
  %712 = vmatpush1.msra.mxu0 0.0
  %713 = vmatprep.subr.mxu0 0.0
  %714 = vmatpush1.msra.mxu0 0.0
  %715 = vmatprep.subr.mxu0 0.0
  %716 = vmatpush1.msra.mxu0 0.0
  %717 = vmatprep.subr.mxu0 0.0
  %718 = vmatpush1.msra.mxu0 0.0
  %719 = vmatprep.subr.mxu0 0.0
  %720 = vmatpush1.msra.mxu0 0.0
  %721 = vmatprep.subr.mxu0 0.0
  %722 = vmatpush1.msra.mxu0 0.0
  %723 = vmatprep.subr.mxu0 0.0
  %724 = vmatpush1.msra.mxu0 0.0
  %725 = vmatprep.subr.mxu0 0.0
  %726 = vmatpush1.msra.mxu0 0.0
  %727 = vmatprep.subr.mxu0 0.0
  %728 = vmatpush1.msra.mxu0 0.0
  %729 = vmatprep.subr.mxu0 0.0
  %730 = vmatpush1.msra.mxu0 0.0
  %731 = vmatprep.subr.mxu0 0.0
  %732 = vmatpush1.msra.mxu0 0.0
  %733 = vmatprep.subr.mxu0 0.0
  %734 = vmatpush1.msra.mxu0 0.0
  %735 = vmatprep.subr.mxu0 0.0
  %736 = vmatpush1.msra.mxu0 0.0
  %737 = vmatprep.mubr.f32.mxu0 0.0
  %738 = vmatmul.mubr.f32.gmra.mrb[0].mxu0 %v608
  %v739 = vpop.f32.mrb[0].mxu0
  %v740 = vadd.f32 0.0, %v739
  %v741 = vpop.f32.mrb[0].mxu0
  %v742 = vadd.f32 0.0, %v741
  %743 = vdwg.mxu0
  %744 = vmatprep.subr.mxu0 %v612
  %745 = vmatpush1.msra.mxu0 %v611
  %746 = vmatprep.subr.mxu0 %v616
  %747 = vmatpush1.msra.mxu0 %v615
  %748 = vmatprep.subr.mxu0 %v620
  %749 = vmatpush1.msra.mxu0 %v619
  %750 = vmatprep.subr.mxu0 %v624
  %751 = vmatpush1.msra.mxu0 %v623
  %752 = vmatprep.subr.mxu0 %v628
  %753 = vmatpush1.msra.mxu0 %v627
  %754 = vmatprep.subr.mxu0 %v632
  %755 = vmatpush1.msra.mxu0 %v631
  %756 = vmatprep.subr.mxu0 %v636
  %757 = vmatpush1.msra.mxu0 %v635
  %758 = vmatprep.subr.mxu0 %v640
  %759 = vmatpush1.msra.mxu0 %v639
  %760 = vmatprep.subr.mxu0 %v644
  %761 = vmatpush1.msra.mxu0 %v643
  %762 = vmatprep.subr.mxu0 %v648
  %763 = vmatpush1.msra.mxu0 %v647
  %764 = vmatprep.subr.mxu0 %v652
  %765 = vmatpush1.msra.mxu0 %v651
  %766 = vmatprep.subr.mxu0 %v656
  %767 = vmatpush1.msra.mxu0 %v655
  %768 = vmatprep.subr.mxu0 %v660
  %769 = vmatpush1.msra.mxu0 %v659
  %770 = vmatprep.subr.mxu0 %v664
  %771 = vmatpush1.msra.mxu0 %v663
  %772 = vmatprep.subr.mxu0 %v668
  %773 = vmatpush1.msra.mxu0 %v667
  %774 = vmatprep.subr.mxu0 %v672
  %775 = vmatpush1.msra.mxu0 %v671
  %776 = vmatprep.subr.mxu0 0.0
  %777 = vmatpush1.msra.mxu0 0.0
  %778 = vmatprep.subr.mxu0 0.0
  %779 = vmatpush1.msra.mxu0 0.0
  %780 = vmatprep.subr.mxu0 0.0
  %781 = vmatpush1.msra.mxu0 0.0
  %782 = vmatprep.subr.mxu0 0.0
  %783 = vmatpush1.msra.mxu0 0.0
  %784 = vmatprep.subr.mxu0 0.0
  %785 = vmatpush1.msra.mxu0 0.0
  %786 = vmatprep.subr.mxu0 0.0
  %787 = vmatpush1.msra.mxu0 0.0
  %788 = vmatprep.subr.mxu0 0.0
  %789 = vmatpush1.msra.mxu0 0.0
  %790 = vmatprep.subr.mxu0 0.0
  %791 = vmatpush1.msra.mxu0 0.0
  %792 = vmatprep.subr.mxu0 0.0
  %793 = vmatpush1.msra.mxu0 0.0
  %794 = vmatprep.subr.mxu0 0.0
  %795 = vmatpush1.msra.mxu0 0.0
  %796 = vmatprep.subr.mxu0 0.0
  %797 = vmatpush1.msra.mxu0 0.0
  %798 = vmatprep.subr.mxu0 0.0
  %799 = vmatpush1.msra.mxu0 0.0
  %800 = vmatprep.subr.mxu0 0.0
  %801 = vmatpush1.msra.mxu0 0.0
  %802 = vmatprep.subr.mxu0 0.0
  %803 = vmatpush1.msra.mxu0 0.0
  %804 = vmatprep.subr.mxu0 0.0
  %805 = vmatpush1.msra.mxu0 0.0
  %806 = vmatprep.subr.mxu0 0.0
  %807 = vmatpush1.msra.mxu0 0.0
  %808 = vmatprep.mubr.f32.mxu0 0.0
  %809 = vmatmul.mubr.f32.gmra.mrb[0].mxu0 %v608
  %v810 = vpop.f32.mrb[0].mxu0
  %v811 = vadd.f32 0.0, %v810
  %v812 = vpop.f32.mrb[0].mxu0
  %v813 = vadd.f32 0.0, %v812
  %814 = vdwg.mxu0
  %v815 = vadd.f32 %v604, %v740
  %v816 = vadd.f32 %v605, %v742
  %v817 = vadd.f32 %v606, %v811
  %v818 = vadd.f32 %v607, %v813
  %v819 = vxor.u32 %v815, 2147483648
  %v820 = vmul.f32 %v819, 1.442695
  %v821 = vpow.pop %v820
  %v822 = vadd.f32 %v821, 1.0
  %v823 = vrcp.pop %v822
  %v824 = vmul.f32 1.0, %v823
  %v825 = vxor.u32 %v816, 2147483648
  %v826 = vmul.f32 %v825, 1.442695
  %v827 = vpow.pop %v826
  %v828 = vadd.f32 %v827, 1.0
  %v829 = vrcp.pop %v828
  %v830 = vmul.f32 1.0, %v829
  %v831 = vtanh.pop %v817
  %v832 = vxor.u32 %v818, 2147483648
  %v833 = vmul.f32 %v832, 1.442695
  %v834 = vpow.pop %v833
  %v835 = vadd.f32 %v834, 1.0
  %v836 = vrcp.pop %v835
  %v837 = vmul.f32 1.0, %v836
  %v838 = vld [vmem:[#allocation4] sm:$0xff]
  %v839 = vmul.f32 %v830, %v838
  %v840 = vmul.f32 %v824, %v831
  %v841 = vadd.f32 %v839, %v840
  %v842 = vtanh.pop %v841
  %v843 = vmul.f32 %v837, %v842
  %844 = vst [vmem:[#allocation4] sm:$0xff] %v841
  %845 = vst [vmem:[#allocation3] sm:$0xff] %v843
  %s846 = smul.u32 2, 4
  %s847 = smul.addr %s846, 8
  %s848 = scalar_lea.vmem [#allocation2], %s847
  %v849 = vld [vmem:[%s848] sm:$0xff]
  %v850 = vld [vmem:[%s848 + $0x8] sm:$0xff]
  %v851 = vld [vmem:[%s848 + $0x10] sm:$0xff]
  %v852 = vld [vmem:[%s848 + $0x18] sm:$0xff]
  %v853 = vld [vmem:[#allocation3] sm:$0xff]
  %v854 = vld [vmem:[%s2] sm:$0xff]
  %v855 = vld [vmem:[%s2 + $0x8] sm:$0xff]
  %v856 = vld [vmem:[%s2 + $0x10] sm:$0xff]
  %v857 = vld [vmem:[%s2 + $0x18] sm:$0xff]
  %v858 = vld [vmem:[%s2 + $0x20] sm:$0xff]
  %v859 = vld [vmem:[%s2 + $0x28] sm:$0xff]
  %v860 = vld [vmem:[%s2 + $0x30] sm:$0xff]
  %v861 = vld [vmem:[%s2 + $0x38] sm:$0xff]
  %v862 = vld [vmem:[%s2 + $0x40] sm:$0xff]
  %v863 = vld [vmem:[%s2 + $0x48] sm:$0xff]
  %v864 = vld [vmem:[%s2 + $0x50] sm:$0xff]
  %v865 = vld [vmem:[%s2 + $0x58] sm:$0xff]
  %v866 = vld [vmem:[%s2 + $0x60] sm:$0xff]
  %v867 = vld [vmem:[%s2 + $0x68] sm:$0xff]
  %v868 = vld [vmem:[%s2 + $0x70] sm:$0xff]
  %v869 = vld [vmem:[%s2 + $0x78] sm:$0xff]
  %v870 = vld [vmem:[%s2 + $0x80] sm:$0xff]
  %v871 = vld [vmem:[%s2 + $0x88] sm:$0xff]
  %v872 = vld [vmem:[%s2 + $0x90] sm:$0xff]
  %v873 = vld [vmem:[%s2 + $0x98] sm:$0xff]
  %v874 = vld [vmem:[%s2 + $0xa0] sm:$0xff]
  %v875 = vld [vmem:[%s2 + $0xa8] sm:$0xff]
  %v876 = vld [vmem:[%s2 + $0xb0] sm:$0xff]
  %v877 = vld [vmem:[%s2 + $0xb8] sm:$0xff]
  %v878 = vld [vmem:[%s2 + $0xc0] sm:$0xff]
  %v879 = vld [vmem:[%s2 + $0xc8] sm:$0xff]
  %v880 = vld [vmem:[%s2 + $0xd0] sm:$0xff]
  %v881 = vld [vmem:[%s2 + $0xd8] sm:$0xff]
  %v882 = vld [vmem:[%s2 + $0xe0] sm:$0xff]
  %v883 = vld [vmem:[%s2 + $0xe8] sm:$0xff]
  %v884 = vld [vmem:[%s2 + $0xf0] sm:$0xff]
  %v885 = vld [vmem:[%s2 + $0xf8] sm:$0xff]
  %v886 = vld [vmem:[%s2 + $0x100] sm:$0xff]
  %v887 = vld [vmem:[%s2 + $0x108] sm:$0xff]
  %v888 = vld [vmem:[%s2 + $0x110] sm:$0xff]
  %v889 = vld [vmem:[%s2 + $0x118] sm:$0xff]
  %v890 = vld [vmem:[%s2 + $0x120] sm:$0xff]
  %v891 = vld [vmem:[%s2 + $0x128] sm:$0xff]
  %v892 = vld [vmem:[%s2 + $0x130] sm:$0xff]
  %v893 = vld [vmem:[%s2 + $0x138] sm:$0xff]
  %v894 = vld [vmem:[%s2 + $0x140] sm:$0xff]
  %v895 = vld [vmem:[%s2 + $0x148] sm:$0xff]
  %v896 = vld [vmem:[%s2 + $0x150] sm:$0xff]
  %v897 = vld [vmem:[%s2 + $0x158] sm:$0xff]
  %v898 = vld [vmem:[%s2 + $0x160] sm:$0xff]
  %v899 = vld [vmem:[%s2 + $0x168] sm:$0xff]
  %v900 = vld [vmem:[%s2 + $0x170] sm:$0xff]
  %v901 = vld [vmem:[%s2 + $0x178] sm:$0xff]
  %v902 = vld [vmem:[%s2 + $0x180] sm:$0xff]
  %v903 = vld [vmem:[%s2 + $0x188] sm:$0xff]
  %v904 = vld [vmem:[%s2 + $0x190] sm:$0xff]
  %v905 = vld [vmem:[%s2 + $0x198] sm:$0xff]
  %v906 = vld [vmem:[%s2 + $0x1a0] sm:$0xff]
  %v907 = vld [vmem:[%s2 + $0x1a8] sm:$0xff]
  %v908 = vld [vmem:[%s2 + $0x1b0] sm:$0xff]
  %v909 = vld [vmem:[%s2 + $0x1b8] sm:$0xff]
  %v910 = vld [vmem:[%s2 + $0x1c0] sm:$0xff]
  %v911 = vld [vmem:[%s2 + $0x1c8] sm:$0xff]
  %v912 = vld [vmem:[%s2 + $0x1d0] sm:$0xff]
  %v913 = vld [vmem:[%s2 + $0x1d8] sm:$0xff]
  %v914 = vld [vmem:[%s2 + $0x1e0] sm:$0xff]
  %v915 = vld [vmem:[%s2 + $0x1e8] sm:$0xff]
  %v916 = vld [vmem:[%s2 + $0x1f0] sm:$0xff]
  %v917 = vld [vmem:[%s2 + $0x1f8] sm:$0xff]
  %918 = vmatprep.subr.mxu0 %v855
  %919 = vmatpush1.msra.mxu0 %v854
  %920 = vmatprep.subr.mxu0 %v859
  %921 = vmatpush1.msra.mxu0 %v858
  %922 = vmatprep.subr.mxu0 %v863
  %923 = vmatpush1.msra.mxu0 %v862
  %924 = vmatprep.subr.mxu0 %v867
  %925 = vmatpush1.msra.mxu0 %v866
  %926 = vmatprep.subr.mxu0 %v871
  %927 = vmatpush1.msra.mxu0 %v870
  %928 = vmatprep.subr.mxu0 %v875
  %929 = vmatpush1.msra.mxu0 %v874
  %930 = vmatprep.subr.mxu0 %v879
  %931 = vmatpush1.msra.mxu0 %v878
  %932 = vmatprep.subr.mxu0 %v883
  %933 = vmatpush1.msra.mxu0 %v882
  %934 = vmatprep.subr.mxu0 %v887
  %935 = vmatpush1.msra.mxu0 %v886
  %936 = vmatprep.subr.mxu0 %v891
  %937 = vmatpush1.msra.mxu0 %v890
  %938 = vmatprep.subr.mxu0 %v895
  %939 = vmatpush1.msra.mxu0 %v894
  %940 = vmatprep.subr.mxu0 %v899
  %941 = vmatpush1.msra.mxu0 %v898
  %942 = vmatprep.subr.mxu0 %v903
  %943 = vmatpush1.msra.mxu0 %v902
  %944 = vmatprep.subr.mxu0 %v907
  %945 = vmatpush1.msra.mxu0 %v906
  %946 = vmatprep.subr.mxu0 %v911
  %947 = vmatpush1.msra.mxu0 %v910
  %948 = vmatprep.subr.mxu0 %v915
  %949 = vmatpush1.msra.mxu0 %v914
  %950 = vmatprep.subr.mxu0 0.0
  %951 = vmatpush1.msra.mxu0 0.0
  %952 = vmatprep.subr.mxu0 0.0
  %953 = vmatpush1.msra.mxu0 0.0
  %954 = vmatprep.subr.mxu0 0.0
  %955 = vmatpush1.msra.mxu0 0.0
  %956 = vmatprep.subr.mxu0 0.0
  %957 = vmatpush1.msra.mxu0 0.0
  %958 = vmatprep.subr.mxu0 0.0
  %959 = vmatpush1.msra.mxu0 0.0
  %960 = vmatprep.subr.mxu0 0.0
  %961 = vmatpush1.msra.mxu0 0.0
  %962 = vmatprep.subr.mxu0 0.0
  %963 = vmatpush1.msra.mxu0 0.0
  %964 = vmatprep.subr.mxu0 0.0
  %965 = vmatpush1.msra.mxu0 0.0
  %966 = vmatprep.subr.mxu0 0.0
  %967 = vmatpush1.msra.mxu0 0.0
  %968 = vmatprep.subr.mxu0 0.0
  %969 = vmatpush1.msra.mxu0 0.0
  %970 = vmatprep.subr.mxu0 0.0
  %971 = vmatpush1.msra.mxu0 0.0
  %972 = vmatprep.subr.mxu0 0.0
  %973 = vmatpush1.msra.mxu0 0.0
  %974 = vmatprep.subr.mxu0 0.0
  %975 = vmatpush1.msra.mxu0 0.0
  %976 = vmatprep.subr.mxu0 0.0
  %977 = vmatpush1.msra.mxu0 0.0
  %978 = vmatprep.subr.mxu0 0.0
  %979 = vmatpush1.msra.mxu0 0.0
  %980 = vmatprep.subr.mxu0 0.0
  %981 = vmatpush1.msra.mxu0 0.0
  %982 = vmatprep.mubr.f32.mxu0 0.0
  %983 = vmatmul.mubr.f32.gmra.mrb[0].mxu0 %v853
  %v984 = vpop.f32.mrb[0].mxu0
  %v985 = vadd.f32 0.0, %v984
  %v986 = vpop.f32.mrb[0].mxu0
  %v987 = vadd.f32 0.0, %v986
  %988 = vdwg.mxu0
  %989 = vmatprep.subr.mxu0 %v857
  %990 = vmatpush1.msra.mxu0 %v856
  %991 = vmatprep.subr.mxu0 %v861
  %992 = vmatpush1.msra.mxu0 %v860
  %993 = vmatprep.subr.mxu0 %v865
  %994 = vmatpush1.msra.mxu0 %v864
  %995 = vmatprep.subr.mxu0 %v869
  %996 = vmatpush1.msra.mxu0 %v868
  %997 = vmatprep.subr.mxu0 %v873
  %998 = vmatpush1.msra.mxu0 %v872
  %999 = vmatprep.subr.mxu0 %v877
  %1000 = vmatpush1.msra.mxu0 %v876
  %1001 = vmatprep.subr.mxu0 %v881
  %1002 = vmatpush1.msra.mxu0 %v880
  %1003 = vmatprep.subr.mxu0 %v885
  %1004 = vmatpush1.msra.mxu0 %v884
  %1005 = vmatprep.subr.mxu0 %v889
  %1006 = vmatpush1.msra.mxu0 %v888
  %1007 = vmatprep.subr.mxu0 %v893
  %1008 = vmatpush1.msra.mxu0 %v892
  %1009 = vmatprep.subr.mxu0 %v897
  %1010 = vmatpush1.msra.mxu0 %v896
  %1011 = vmatprep.subr.mxu0 %v901
  %1012 = vmatpush1.msra.mxu0 %v900
  %1013 = vmatprep.subr.mxu0 %v905
  %1014 = vmatpush1.msra.mxu0 %v904
  %1015 = vmatprep.subr.mxu0 %v909
  %1016 = vmatpush1.msra.mxu0 %v908
  %1017 = vmatprep.subr.mxu0 %v913
  %1018 = vmatpush1.msra.mxu0 %v912
  %1019 = vmatprep.subr.mxu0 %v917
  %1020 = vmatpush1.msra.mxu0 %v916
  %1021 = vmatprep.subr.mxu0 0.0
  %1022 = vmatpush1.msra.mxu0 0.0
  %1023 = vmatprep.subr.mxu0 0.0
  %1024 = vmatpush1.msra.mxu0 0.0
  %1025 = vmatprep.subr.mxu0 0.0
  %1026 = vmatpush1.msra.mxu0 0.0
  %1027 = vmatprep.subr.mxu0 0.0
  %1028 = vmatpush1.msra.mxu0 0.0
  %1029 = vmatprep.subr.mxu0 0.0
  %1030 = vmatpush1.msra.mxu0 0.0
  %1031 = vmatprep.subr.mxu0 0.0
  %1032 = vmatpush1.msra.mxu0 0.0
  %1033 = vmatprep.subr.mxu0 0.0
  %1034 = vmatpush1.msra.mxu0 0.0
  %1035 = vmatprep.subr.mxu0 0.0
  %1036 = vmatpush1.msra.mxu0 0.0
  %1037 = vmatprep.subr.mxu0 0.0
  %1038 = vmatpush1.msra.mxu0 0.0
  %1039 = vmatprep.subr.mxu0 0.0
  %1040 = vmatpush1.msra.mxu0 0.0
  %1041 = vmatprep.subr.mxu0 0.0
  %1042 = vmatpush1.msra.mxu0 0.0
  %1043 = vmatprep.subr.mxu0 0.0
  %1044 = vmatpush1.msra.mxu0 0.0
  %1045 = vmatprep.subr.mxu0 0.0
  %1046 = vmatpush1.msra.mxu0 0.0
  %1047 = vmatprep.subr.mxu0 0.0
  %1048 = vmatpush1.msra.mxu0 0.0
  %1049 = vmatprep.subr.mxu0 0.0
  %1050 = vmatpush1.msra.mxu0 0.0
  %1051 = vmatprep.subr.mxu0 0.0
  %1052 = vmatpush1.msra.mxu0 0.0
  %1053 = vmatprep.mubr.f32.mxu0 0.0
  %1054 = vmatmul.mubr.f32.gmra.mrb[0].mxu0 %v853
  %v1055 = vpop.f32.mrb[0].mxu0
  %v1056 = vadd.f32 0.0, %v1055
  %v1057 = vpop.f32.mrb[0].mxu0
  %v1058 = vadd.f32 0.0, %v1057
  %1059 = vdwg.mxu0
  %v1060 = vadd.f32 %v849, %v985
  %v1061 = vadd.f32 %v850, %v987
  %v1062 = vadd.f32 %v851, %v1056
  %v1063 = vadd.f32 %v852, %v1058
  %v1064 = vxor.u32 %v1060, 2147483648
  %v1065 = vmul.f32 %v1064, 1.442695
  %v1066 = vpow.pop %v1065
  %v1067 = vadd.f32 %v1066, 1.0
  %v1068 = vrcp.pop %v1067
  %v1069 = vmul.f32 1.0, %v1068
  %v1070 = vxor.u32 %v1061, 2147483648
  %v1071 = vmul.f32 %v1070, 1.442695
  %v1072 = vpow.pop %v1071
  %v1073 = vadd.f32 %v1072, 1.0
  %v1074 = vrcp.pop %v1073
  %v1075 = vmul.f32 1.0, %v1074
  %v1076 = vtanh.pop %v1062
  %v1077 = vxor.u32 %v1063, 2147483648
  %v1078 = vmul.f32 %v1077, 1.442695
  %v1079 = vpow.pop %v1078
  %v1080 = vadd.f32 %v1079, 1.0
  %v1081 = vrcp.pop %v1080
  %v1082 = vmul.f32 1.0, %v1081
  %v1083 = vld [vmem:[#allocation4] sm:$0xff]
  %v1084 = vmul.f32 %v1075, %v1083
  %v1085 = vmul.f32 %v1069, %v1076
  %v1086 = vadd.f32 %v1084, %v1085
  %v1087 = vtanh.pop %v1086
  %v1088 = vmul.f32 %v1082, %v1087
  %1089 = vst [vmem:[#allocation4] sm:$0xff] %v1086
  %1090 = vst [vmem:[#allocation3] sm:$0xff] %v1088
  %s1091 = smul.u32 3, 4
  %s1092 = smul.addr %s1091, 8
  %s1093 = scalar_lea.vmem [#allocation2], %s1092
  %v1094 = vld [vmem:[%s1093] sm:$0xff]
  %v1095 = vld [vmem:[%s1093 + $0x8] sm:$0xff]
  %v1096 = vld [vmem:[%s1093 + $0x10] sm:$0xff]
  %v1097 = vld [vmem:[%s1093 + $0x18] sm:$0xff]
  %v1098 = vld [vmem:[#allocation3] sm:$0xff]
  %v1099 = vld [vmem:[%s2] sm:$0xff]
  %v1100 = vld [vmem:[%s2 + $0x8] sm:$0xff]
  %v1101 = vld [vmem:[%s2 + $0x10] sm:$0xff]
  %v1102 = vld [vmem:[%s2 + $0x18] sm:$0xff]
  %v1103 = vld [vmem:[%s2 + $0x20] sm:$0xff]
  %v1104 = vld [vmem:[%s2 + $0x28] sm:$0xff]
  %v1105 = vld [vmem:[%s2 + $0x30] sm:$0xff]
  %v1106 = vld [vmem:[%s2 + $0x38] sm:$0xff]
  %v1107 = vld [vmem:[%s2 + $0x40] sm:$0xff]
  %v1108 = vld [vmem:[%s2 + $0x48] sm:$0xff]
  %v1109 = vld [vmem:[%s2 + $0x50] sm:$0xff]
  %v1110 = vld [vmem:[%s2 + $0x58] sm:$0xff]
  %v1111 = vld [vmem:[%s2 + $0x60] sm:$0xff]
  %v1112 = vld [vmem:[%s2 + $0x68] sm:$0xff]
  %v1113 = vld [vmem:[%s2 + $0x70] sm:$0xff]
  %v1114 = vld [vmem:[%s2 + $0x78] sm:$0xff]
  %v1115 = vld [vmem:[%s2 + $0x80] sm:$0xff]
  %v1116 = vld [vmem:[%s2 + $0x88] sm:$0xff]
  %v1117 = vld [vmem:[%s2 + $0x90] sm:$0xff]
  %v1118 = vld [vmem:[%s2 + $0x98] sm:$0xff]
  %v1119 = vld [vmem:[%s2 + $0xa0] sm:$0xff]
  %v1120 = vld [vmem:[%s2 + $0xa8] sm:$0xff]
  %v1121 = vld [vmem:[%s2 + $0xb0] sm:$0xff]
  %v1122 = vld [vmem:[%s2 + $0xb8] sm:$0xff]
  %v1123 = vld [vmem:[%s2 + $0xc0] sm:$0xff]
  %v1124 = vld [vmem:[%s2 + $0xc8] sm:$0xff]
  %v1125 = vld [vmem:[%s2 + $0xd0] sm:$0xff]
  %v1126 = vld [vmem:[%s2 + $0xd8] sm:$0xff]
  %v1127 = vld [vmem:[%s2 + $0xe0] sm:$0xff]
  %v1128 = vld [vmem:[%s2 + $0xe8] sm:$0xff]
  %v1129 = vld [vmem:[%s2 + $0xf0] sm:$0xff]
  %v1130 = vld [vmem:[%s2 + $0xf8] sm:$0xff]
  %v1131 = vld [vmem:[%s2 + $0x100] sm:$0xff]
  %v1132 = vld [vmem:[%s2 + $0x108] sm:$0xff]
  %v1133 = vld [vmem:[%s2 + $0x110] sm:$0xff]
  %v1134 = vld [vmem:[%s2 + $0x118] sm:$0xff]
  %v1135 = vld [vmem:[%s2 + $0x120] sm:$0xff]
  %v1136 = vld [vmem:[%s2 + $0x128] sm:$0xff]
  %v1137 = vld [vmem:[%s2 + $0x130] sm:$0xff]
  %v1138 = vld [vmem:[%s2 + $0x138] sm:$0xff]
  %v1139 = vld [vmem:[%s2 + $0x140] sm:$0xff]
  %v1140 = vld [vmem:[%s2 + $0x148] sm:$0xff]
  %v1141 = vld [vmem:[%s2 + $0x150] sm:$0xff]
  %v1142 = vld [vmem:[%s2 + $0x158] sm:$0xff]
  %v1143 = vld [vmem:[%s2 + $0x160] sm:$0xff]
  %v1144 = vld [vmem:[%s2 + $0x168] sm:$0xff]
  %v1145 = vld [vmem:[%s2 + $0x170] sm:$0xff]
  %v1146 = vld [vmem:[%s2 + $0x178] sm:$0xff]
  %v1147 = vld [vmem:[%s2 + $0x180] sm:$0xff]
  %v1148 = vld [vmem:[%s2 + $0x188] sm:$0xff]
  %v1149 = vld [vmem:[%s2 + $0x190] sm:$0xff]
  %v1150 = vld [vmem:[%s2 + $0x198] sm:$0xff]
  %v1151 = vld [vmem:[%s2 + $0x1a0] sm:$0xff]
  %v1152 = vld [vmem:[%s2 + $0x1a8] sm:$0xff]
  %v1153 = vld [vmem:[%s2 + $0x1b0] sm:$0xff]
  %v1154 = vld [vmem:[%s2 + $0x1b8] sm:$0xff]
  %v1155 = vld [vmem:[%s2 + $0x1c0] sm:$0xff]
  %v1156 = vld [vmem:[%s2 + $0x1c8] sm:$0xff]
  %v1157 = vld [vmem:[%s2 + $0x1d0] sm:$0xff]
  %v1158 = vld [vmem:[%s2 + $0x1d8] sm:$0xff]
  %v1159 = vld [vmem:[%s2 + $0x1e0] sm:$0xff]
  %v1160 = vld [vmem:[%s2 + $0x1e8] sm:$0xff]
  %v1161 = vld [vmem:[%s2 + $0x1f0] sm:$0xff]
  %v1162 = vld [vmem:[%s2 + $0x1f8] sm:$0xff]
  %1163 = vmatprep.subr.mxu0 %v1100
  %1164 = vmatpush1.msra.mxu0 %v1099
  %1165 = vmatprep.subr.mxu0 %v1104
  %1166 = vmatpush1.msra.mxu0 %v1103
  %1167 = vmatprep.subr.mxu0 %v1108
  %1168 = vmatpush1.msra.mxu0 %v1107
  %1169 = vmatprep.subr.mxu0 %v1112
  %1170 = vmatpush1.msra.mxu0 %v1111
  %1171 = vmatprep.subr.mxu0 %v1116
  %1172 = vmatpush1.msra.mxu0 %v1115
  %1173 = vmatprep.subr.mxu0 %v1120
  %1174 = vmatpush1.msra.mxu0 %v1119
  %1175 = vmatprep.subr.mxu0 %v1124
  %1176 = vmatpush1.msra.mxu0 %v1123
  %1177 = vmatprep.subr.mxu0 %v1128
  %1178 = vmatpush1.msra.mxu0 %v1127
  %1179 = vmatprep.subr.mxu0 %v1132
  %1180 = vmatpush1.msra.mxu0 %v1131
  %1181 = vmatprep.subr.mxu0 %v1136
  %1182 = vmatpush1.msra.mxu0 %v1135
  %1183 = vmatprep.subr.mxu0 %v1140
  %1184 = vmatpush1.msra.mxu0 %v1139
  %1185 = vmatprep.subr.mxu0 %v1144
  %1186 = vmatpush1.msra.mxu0 %v1143
  %1187 = vmatprep.subr.mxu0 %v1148
  %1188 = vmatpush1.msra.mxu0 %v1147
  %1189 = vmatprep.subr.mxu0 %v1152
  %1190 = vmatpush1.msra.mxu0 %v1151
  %1191 = vmatprep.subr.mxu0 %v1156
  %1192 = vmatpush1.msra.mxu0 %v1155
  %1193 = vmatprep.subr.mxu0 %v1160
  %1194 = vmatpush1.msra.mxu0 %v1159
  %1195 = vmatprep.subr.mxu0 0.0
  %1196 = vmatpush1.msra.mxu0 0.0
  %1197 = vmatprep.subr.mxu0 0.0
  %1198 = vmatpush1.msra.mxu0 0.0
  %1199 = vmatprep.subr.mxu0 0.0
  %1200 = vmatpush1.msra.mxu0 0.0
  %1201 = vmatprep.subr.mxu0 0.0
  %1202 = vmatpush1.msra.mxu0 0.0
  %1203 = vmatprep.subr.mxu0 0.0
  %1204 = vmatpush1.msra.mxu0 0.0
  %1205 = vmatprep.subr.mxu0 0.0
  %1206 = vmatpush1.msra.mxu0 0.0
  %1207 = vmatprep.subr.mxu0 0.0
  %1208 = vmatpush1.msra.mxu0 0.0
  %1209 = vmatprep.subr.mxu0 0.0
  %1210 = vmatpush1.msra.mxu0 0.0
  %1211 = vmatprep.subr.mxu0 0.0
  %1212 = vmatpush1.msra.mxu0 0.0
  %1213 = vmatprep.subr.mxu0 0.0
  %1214 = vmatpush1.msra.mxu0 0.0
  %1215 = vmatprep.subr.mxu0 0.0
  %1216 = vmatpush1.msra.mxu0 0.0
  %1217 = vmatprep.subr.mxu0 0.0
  %1218 = vmatpush1.msra.mxu0 0.0
  %1219 = vmatprep.subr.mxu0 0.0
  %1220 = vmatpush1.msra.mxu0 0.0
  %1221 = vmatprep.subr.mxu0 0.0
  %1222 = vmatpush1.msra.mxu0 0.0
  %1223 = vmatprep.subr.mxu0 0.0
  %1224 = vmatpush1.msra.mxu0 0.0
  %1225 = vmatprep.subr.mxu0 0.0
  %1226 = vmatpush1.msra.mxu0 0.0
  %1227 = vmatprep.mubr.f32.mxu0 0.0
  %1228 = vmatmul.mubr.f32.gmra.mrb[0].mxu0 %v1098
  %v1229 = vpop.f32.mrb[0].mxu0
  %v1230 = vadd.f32 0.0, %v1229
  %v1231 = vpop.f32.mrb[0].mxu0
  %v1232 = vadd.f32 0.0, %v1231
  %1233 = vdwg.mxu0
  %1234 = vmatprep.subr.mxu0 %v1102
  %1235 = vmatpush1.msra.mxu0 %v1101
  %1236 = vmatprep.subr.mxu0 %v1106
  %1237 = vmatpush1.msra.mxu0 %v1105
  %1238 = vmatprep.subr.mxu0 %v1110
  %1239 = vmatpush1.msra.mxu0 %v1109
  %1240 = vmatprep.subr.mxu0 %v1114
  %1241 = vmatpush1.msra.mxu0 %v1113
  %1242 = vmatprep.subr.mxu0 %v1118
  %1243 = vmatpush1.msra.mxu0 %v1117
  %1244 = vmatprep.subr.mxu0 %v1122
  %1245 = vmatpush1.msra.mxu0 %v1121
  %1246 = vmatprep.subr.mxu0 %v1126
  %1247 = vmatpush1.msra.mxu0 %v1125
  %1248 = vmatprep.subr.mxu0 %v1130
  %1249 = vmatpush1.msra.mxu0 %v1129
  %1250 = vmatprep.subr.mxu0 %v1134
  %1251 = vmatpush1.msra.mxu0 %v1133
  %1252 = vmatprep.subr.mxu0 %v1138
  %1253 = vmatpush1.msra.mxu0 %v1137
  %1254 = vmatprep.subr.mxu0 %v1142
  %1255 = vmatpush1.msra.mxu0 %v1141
  %1256 = vmatprep.subr.mxu0 %v1146
  %1257 = vmatpush1.msra.mxu0 %v1145
  %1258 = vmatprep.subr.mxu0 %v1150
  %1259 = vmatpush1.msra.mxu0 %v1149
  %1260 = vmatprep.subr.mxu0 %v1154
  %1261 = vmatpush1.msra.mxu0 %v1153
  %1262 = vmatprep.subr.mxu0 %v1158
  %1263 = vmatpush1.msra.mxu0 %v1157
  %1264 = vmatprep.subr.mxu0 %v1162
  %1265 = vmatpush1.msra.mxu0 %v1161
  %1266 = vmatprep.subr.mxu0 0.0
  %1267 = vmatpush1.msra.mxu0 0.0
  %1268 = vmatprep.subr.mxu0 0.0
  %1269 = vmatpush1.msra.mxu0 0.0
  %1270 = vmatprep.subr.mxu0 0.0
  %1271 = vmatpush1.msra.mxu0 0.0
  %1272 = vmatprep.subr.mxu0 0.0
  %1273 = vmatpush1.msra.mxu0 0.0
  %1274 = vmatprep.subr.mxu0 0.0
  %1275 = vmatpush1.msra.mxu0 0.0
  %1276 = vmatprep.subr.mxu0 0.0
  %1277 = vmatpush1.msra.mxu0 0.0
  %1278 = vmatprep.subr.mxu0 0.0
  %1279 = vmatpush1.msra.mxu0 0.0
  %1280 = vmatprep.subr.mxu0 0.0
  %1281 = vmatpush1.msra.mxu0 0.0
  %1282 = vmatprep.subr.mxu0 0.0
  %1283 = vmatpush1.msra.mxu0 0.0
  %1284 = vmatprep.subr.mxu0 0.0
  %1285 = vmatpush1.msra.mxu0 0.0
  %1286 = vmatprep.subr.mxu0 0.0
  %1287 = vmatpush1.msra.mxu0 0.0
  %1288 = vmatprep.subr.mxu0 0.0
  %1289 = vmatpush1.msra.mxu0 0.0
  %1290 = vmatprep.subr.mxu0 0.0
  %1291 = vmatpush1.msra.mxu0 0.0
  %1292 = vmatprep.subr.mxu0 0.0
  %1293 = vmatpush1.msra.mxu0 0.0
  %1294 = vmatprep.subr.mxu0 0.0
  %1295 = vmatpush1.msra.mxu0 0.0
  %1296 = vmatprep.subr.mxu0 0.0
  %1297 = vmatpush1.msra.mxu0 0.0
  %1298 = vmatprep.mubr.f32.mxu0 0.0
  %1299 = vmatmul.mubr.f32.gmra.mrb[0].mxu0 %v1098
  %v1300 = vpop.f32.mrb[0].mxu0
  %v1301 = vadd.f32 0.0, %v1300
  %v1302 = vpop.f32.mrb[0].mxu0
  %v1303 = vadd.f32 0.0, %v1302
  %1304 = vdwg.mxu0
  %v1305 = vadd.f32 %v1094, %v1230
  %v1306 = vadd.f32 %v1095, %v1232
  %v1307 = vadd.f32 %v1096, %v1301
  %v1308 = vadd.f32 %v1097, %v1303
  %v1309 = vxor.u32 %v1305, 2147483648
  %v1310 = vmul.f32 %v1309, 1.442695
  %v1311 = vpow.pop %v1310
  %v1312 = vadd.f32 %v1311, 1.0
  %v1313 = vrcp.pop %v1312
  %v1314 = vmul.f32 1.0, %v1313
  %v1315 = vxor.u32 %v1306, 2147483648
  %v1316 = vmul.f32 %v1315, 1.442695
  %v1317 = vpow.pop %v1316
  %v1318 = vadd.f32 %v1317, 1.0
  %v1319 = vrcp.pop %v1318
  %v1320 = vmul.f32 1.0, %v1319
  %v1321 = vtanh.pop %v1307
  %v1322 = vxor.u32 %v1308, 2147483648
  %v1323 = vmul.f32 %v1322, 1.442695
  %v1324 = vpow.pop %v1323
  %v1325 = vadd.f32 %v1324, 1.0
  %v1326 = vrcp.pop %v1325
  %v1327 = vmul.f32 1.0, %v1326
  %v1328 = vld [vmem:[#allocation4] sm:$0xff]
  %v1329 = vmul.f32 %v1320, %v1328
  %v1330 = vmul.f32 %v1314, %v1321
  %v1331 = vadd.f32 %v1329, %v1330
  %v1332 = vtanh.pop %v1331
  %v1333 = vmul.f32 %v1327, %v1332
  %1334 = vst [vmem:[#allocation4] sm:$0xff] %v1331
  %1335 = vst [vmem:[#allocation3] sm:$0xff] %v1333
  %s1336 = smul.u32 4, 4
  %s1337 = smul.addr %s1336, 8
  %s1338 = scalar_lea.vmem [#allocation2], %s1337
  %v1339 = vld [vmem:[%s1338] sm:$0xff]
  %v1340 = vld [vmem:[%s1338 + $0x8] sm:$0xff]
  %v1341 = vld [vmem:[%s1338 + $0x10] sm:$0xff]
  %v1342 = vld [vmem:[%s1338 + $0x18] sm:$0xff]
  %v1343 = vld [vmem:[#allocation3] sm:$0xff]
  %v1344 = vld [vmem:[%s2] sm:$0xff]
  %v1345 = vld [vmem:[%s2 + $0x8] sm:$0xff]
  %v1346 = vld [vmem:[%s2 + $0x10] sm:$0xff]
  %v1347 = vld [vmem:[%s2 + $0x18] sm:$0xff]
  %v1348 = vld [vmem:[%s2 + $0x20] sm:$0xff]
  %v1349 = vld [vmem:[%s2 + $0x28] sm:$0xff]
  %v1350 = vld [vmem:[%s2 + $0x30] sm:$0xff]
  %v1351 = vld [vmem:[%s2 + $0x38] sm:$0xff]
  %v1352 = vld [vmem:[%s2 + $0x40] sm:$0xff]
  %v1353 = vld [vmem:[%s2 + $0x48] sm:$0xff]
  %v1354 = vld [vmem:[%s2 + $0x50] sm:$0xff]
  %v1355 = vld [vmem:[%s2 + $0x58] sm:$0xff]
  %v1356 = vld [vmem:[%s2 + $0x60] sm:$0xff]
  %v1357 = vld [vmem:[%s2 + $0x68] sm:$0xff]
  %v1358 = vld [vmem:[%s2 + $0x70] sm:$0xff]
  %v1359 = vld [vmem:[%s2 + $0x78] sm:$0xff]
  %v1360 = vld [vmem:[%s2 + $0x80] sm:$0xff]
  %v1361 = vld [vmem:[%s2 + $0x88] sm:$0xff]
  %v1362 = vld [vmem:[%s2 + $0x90] sm:$0xff]
  %v1363 = vld [vmem:[%s2 + $0x98] sm:$0xff]
  %v1364 = vld [vmem:[%s2 + $0xa0] sm:$0xff]
  %v1365 = vld [vmem:[%s2 + $0xa8] sm:$0xff]
  %v1366 = vld [vmem:[%s2 + $0xb0] sm:$0xff]
  %v1367 = vld [vmem:[%s2 + $0xb8] sm:$0xff]
  %v1368 = vld [vmem:[%s2 + $0xc0] sm:$0xff]
  %v1369 = vld [vmem:[%s2 + $0xc8] sm:$0xff]
  %v1370 = vld [vmem:[%s2 + $0xd0] sm:$0xff]
  %v1371 = vld [vmem:[%s2 + $0xd8] sm:$0xff]
  %v1372 = vld [vmem:[%s2 + $0xe0] sm:$0xff]
  %v1373 = vld [vmem:[%s2 + $0xe8] sm:$0xff]
  %v1374 = vld [vmem:[%s2 + $0xf0] sm:$0xff]
  %v1375 = vld [vmem:[%s2 + $0xf8] sm:$0xff]
  %v1376 = vld [vmem:[%s2 + $0x100] sm:$0xff]
  %v1377 = vld [vmem:[%s2 + $0x108] sm:$0xff]
  %v1378 = vld [vmem:[%s2 + $0x110] sm:$0xff]
  %v1379 = vld [vmem:[%s2 + $0x118] sm:$0xff]
  %v1380 = vld [vmem:[%s2 + $0x120] sm:$0xff]
  %v1381 = vld [vmem:[%s2 + $0x128] sm:$0xff]
  %v1382 = vld [vmem:[%s2 + $0x130] sm:$0xff]
  %v1383 = vld [vmem:[%s2 + $0x138] sm:$0xff]
  %v1384 = vld [vmem:[%s2 + $0x140] sm:$0xff]
  %v1385 = vld [vmem:[%s2 + $0x148] sm:$0xff]
  %v1386 = vld [vmem:[%s2 + $0x150] sm:$0xff]
  %v1387 = vld [vmem:[%s2 + $0x158] sm:$0xff]
  %v1388 = vld [vmem:[%s2 + $0x160] sm:$0xff]
  %v1389 = vld [vmem:[%s2 + $0x168] sm:$0xff]
  %v1390 = vld [vmem:[%s2 + $0x170] sm:$0xff]
  %v1391 = vld [vmem:[%s2 + $0x178] sm:$0xff]
  %v1392 = vld [vmem:[%s2 + $0x180] sm:$0xff]
  %v1393 = vld [vmem:[%s2 + $0x188] sm:$0xff]
  %v1394 = vld [vmem:[%s2 + $0x190] sm:$0xff]
  %v1395 = vld [vmem:[%s2 + $0x198] sm:$0xff]
  %v1396 = vld [vmem:[%s2 + $0x1a0] sm:$0xff]
  %v1397 = vld [vmem:[%s2 + $0x1a8] sm:$0xff]
  %v1398 = vld [vmem:[%s2 + $0x1b0] sm:$0xff]
  %v1399 = vld [vmem:[%s2 + $0x1b8] sm:$0xff]
  %v1400 = vld [vmem:[%s2 + $0x1c0] sm:$0xff]
  %v1401 = vld [vmem:[%s2 + $0x1c8] sm:$0xff]
  %v1402 = vld [vmem:[%s2 + $0x1d0] sm:$0xff]
  %v1403 = vld [vmem:[%s2 + $0x1d8] sm:$0xff]
  %v1404 = vld [vmem:[%s2 + $0x1e0] sm:$0xff]
  %v1405 = vld [vmem:[%s2 + $0x1e8] sm:$0xff]
  %v1406 = vld [vmem:[%s2 + $0x1f0] sm:$0xff]
  %v1407 = vld [vmem:[%s2 + $0x1f8] sm:$0xff]
  %1408 = vmatprep.subr.mxu0 %v1345
  %1409 = vmatpush1.msra.mxu0 %v1344
  %1410 = vmatprep.subr.mxu0 %v1349
  %1411 = vmatpush1.msra.mxu0 %v1348
  %1412 = vmatprep.subr.mxu0 %v1353
  %1413 = vmatpush1.msra.mxu0 %v1352
  %1414 = vmatprep.subr.mxu0 %v1357
  %1415 = vmatpush1.msra.mxu0 %v1356
  %1416 = vmatprep.subr.mxu0 %v1361
  %1417 = vmatpush1.msra.mxu0 %v1360
  %1418 = vmatprep.subr.mxu0 %v1365
  %1419 = vmatpush1.msra.mxu0 %v1364
  %1420 = vmatprep.subr.mxu0 %v1369
  %1421 = vmatpush1.msra.mxu0 %v1368
  %1422 = vmatprep.subr.mxu0 %v1373
  %1423 = vmatpush1.msra.mxu0 %v1372
  %1424 = vmatprep.subr.mxu0 %v1377
  %1425 = vmatpush1.msra.mxu0 %v1376
  %1426 = vmatprep.subr.mxu0 %v1381
  %1427 = vmatpush1.msra.mxu0 %v1380
  %1428 = vmatprep.subr.mxu0 %v1385
  %1429 = vmatpush1.msra.mxu0 %v1384
  %1430 = vmatprep.subr.mxu0 %v1389
  %1431 = vmatpush1.msra.mxu0 %v1388
  %1432 = vmatprep.subr.mxu0 %v1393
  %1433 = vmatpush1.msra.mxu0 %v1392
  %1434 = vmatprep.subr.mxu0 %v1397
  %1435 = vmatpush1.msra.mxu0 %v1396
  %1436 = vmatprep.subr.mxu0 %v1401
  %1437 = vmatpush1.msra.mxu0 %v1400
  %1438 = vmatprep.subr.mxu0 %v1405
  %1439 = vmatpush1.msra.mxu0 %v1404
  %1440 = vmatprep.subr.mxu0 0.0
  %1441 = vmatpush1.msra.mxu0 0.0
  %1442 = vmatprep.subr.mxu0 0.0
  %1443 = vmatpush1.msra.mxu0 0.0
  %1444 = vmatprep.subr.mxu0 0.0
  %1445 = vmatpush1.msra.mxu0 0.0
  %1446 = vmatprep.subr.mxu0 0.0
  %1447 = vmatpush1.msra.mxu0 0.0
  %1448 = vmatprep.subr.mxu0 0.0
  %1449 = vmatpush1.msra.mxu0 0.0
  %1450 = vmatprep.subr.mxu0 0.0
  %1451 = vmatpush1.msra.mxu0 0.0
  %1452 = vmatprep.subr.mxu0 0.0
  %1453 = vmatpush1.msra.mxu0 0.0
  %1454 = vmatprep.subr.mxu0 0.0
  %1455 = vmatpush1.msra.mxu0 0.0
  %1456 = vmatprep.subr.mxu0 0.0
  %1457 = vmatpush1.msra.mxu0 0.0
  %1458 = vmatprep.subr.mxu0 0.0
  %1459 = vmatpush1.msra.mxu0 0.0
  %1460 = vmatprep.subr.mxu0 0.0
  %1461 = vmatpush1.msra.mxu0 0.0
  %1462 = vmatprep.subr.mxu0 0.0
  %1463 = vmatpush1.msra.mxu0 0.0
  %1464 = vmatprep.subr.mxu0 0.0
  %1465 = vmatpush1.msra.mxu0 0.0
  %1466 = vmatprep.subr.mxu0 0.0
  %1467 = vmatpush1.msra.mxu0 0.0
  %1468 = vmatprep.subr.mxu0 0.0
  %1469 = vmatpush1.msra.mxu0 0.0
  %1470 = vmatprep.subr.mxu0 0.0
  %1471 = vmatpush1.msra.mxu0 0.0
  %1472 = vmatprep.mubr.f32.mxu0 0.0
  %1473 = vmatmul.mubr.f32.gmra.mrb[0].mxu0 %v1343
  %v1474 = vpop.f32.mrb[0].mxu0
  %v1475 = vadd.f32 0.0, %v1474
  %v1476 = vpop.f32.mrb[0].mxu0
  %v1477 = vadd.f32 0.0, %v1476
  %1478 = vdwg.mxu0
  %1479 = vmatprep.subr.mxu0 %v1347
  %1480 = vmatpush1.msra.mxu0 %v1346
  %1481 = vmatprep.subr.mxu0 %v1351
  %1482 = vmatpush1.msra.mxu0 %v1350
  %1483 = vmatprep.subr.mxu0 %v1355
  %1484 = vmatpush1.msra.mxu0 %v1354
  %1485 = vmatprep.subr.mxu0 %v1359
  %1486 = vmatpush1.msra.mxu0 %v1358
  %1487 = vmatprep.subr.mxu0 %v1363
  %1488 = vmatpush1.msra.mxu0 %v1362
  %1489 = vmatprep.subr.mxu0 %v1367
  %1490 = vmatpush1.msra.mxu0 %v1366
  %1491 = vmatprep.subr.mxu0 %v1371
  %1492 = vmatpush1.msra.mxu0 %v1370
  %1493 = vmatprep.subr.mxu0 %v1375
  %1494 = vmatpush1.msra.mxu0 %v1374
  %1495 = vmatprep.subr.mxu0 %v1379
  %1496 = vmatpush1.msra.mxu0 %v1378
  %1497 = vmatprep.subr.mxu0 %v1383
  %1498 = vmatpush1.msra.mxu0 %v1382
  %1499 = vmatprep.subr.mxu0 %v1387
  %1500 = vmatpush1.msra.mxu0 %v1386
  %1501 = vmatprep.subr.mxu0 %v1391
  %1502 = vmatpush1.msra.mxu0 %v1390
  %1503 = vmatprep.subr.mxu0 %v1395
  %1504 = vmatpush1.msra.mxu0 %v1394
  %1505 = vmatprep.subr.mxu0 %v1399
  %1506 = vmatpush1.msra.mxu0 %v1398
  %1507 = vmatprep.subr.mxu0 %v1403
  %1508 = vmatpush1.msra.mxu0 %v1402
  %1509 = vmatprep.subr.mxu0 %v1407
  %1510 = vmatpush1.msra.mxu0 %v1406
  %1511 = vmatprep.subr.mxu0 0.0
  %1512 = vmatpush1.msra.mxu0 0.0
  %1513 = vmatprep.subr.mxu0 0.0
  %1514 = vmatpush1.msra.mxu0 0.0
  %1515 = vmatprep.subr.mxu0 0.0
  %1516 = vmatpush1.msra.mxu0 0.0
  %1517 = vmatprep.subr.mxu0 0.0
  %1518 = vmatpush1.msra.mxu0 0.0
  %1519 = vmatprep.subr.mxu0 0.0
  %1520 = vmatpush1.msra.mxu0 0.0
  %1521 = vmatprep.subr.mxu0 0.0
  %1522 = vmatpush1.msra.mxu0 0.0
  %1523 = vmatprep.subr.mxu0 0.0
  %1524 = vmatpush1.msra.mxu0 0.0
  %1525 = vmatprep.subr.mxu0 0.0
  %1526 = vmatpush1.msra.mxu0 0.0
  %1527 = vmatprep.subr.mxu0 0.0
  %1528 = vmatpush1.msra.mxu0 0.0
  %1529 = vmatprep.subr.mxu0 0.0
  %1530 = vmatpush1.msra.mxu0 0.0
  %1531 = vmatprep.subr.mxu0 0.0
  %1532 = vmatpush1.msra.mxu0 0.0
  %1533 = vmatprep.subr.mxu0 0.0
  %1534 = vmatpush1.msra.mxu0 0.0
  %1535 = vmatprep.subr.mxu0 0.0
  %1536 = vmatpush1.msra.mxu0 0.0
  %1537 = vmatprep.subr.mxu0 0.0
  %1538 = vmatpush1.msra.mxu0 0.0
  %1539 = vmatprep.subr.mxu0 0.0
  %1540 = vmatpush1.msra.mxu0 0.0
  %1541 = vmatprep.subr.mxu0 0.0
  %1542 = vmatpush1.msra.mxu0 0.0
  %1543 = vmatprep.mubr.f32.mxu0 0.0
  %1544 = vmatmul.mubr.f32.gmra.mrb[0].mxu0 %v1343
  %v1545 = vpop.f32.mrb[0].mxu0
  %v1546 = vadd.f32 0.0, %v1545
  %v1547 = vpop.f32.mrb[0].mxu0
  %v1548 = vadd.f32 0.0, %v1547
  %1549 = vdwg.mxu0
  %v1550 = vadd.f32 %v1339, %v1475
  %v1551 = vadd.f32 %v1340, %v1477
  %v1552 = vadd.f32 %v1341, %v1546
  %v1553 = vadd.f32 %v1342, %v1548
  %v1554 = vxor.u32 %v1550, 2147483648
  %v1555 = vmul.f32 %v1554, 1.442695
  %v1556 = vpow.pop %v1555
  %v1557 = vadd.f32 %v1556, 1.0
  %v1558 = vrcp.pop %v1557
  %v1559 = vmul.f32 1.0, %v1558
  %v1560 = vxor.u32 %v1551, 2147483648
  %v1561 = vmul.f32 %v1560, 1.442695
  %v1562 = vpow.pop %v1561
  %v1563 = vadd.f32 %v1562, 1.0
  %v1564 = vrcp.pop %v1563
  %v1565 = vmul.f32 1.0, %v1564
  %v1566 = vtanh.pop %v1552
  %v1567 = vxor.u32 %v1553, 2147483648
  %v1568 = vmul.f32 %v1567, 1.442695
  %v1569 = vpow.pop %v1568
  %v1570 = vadd.f32 %v1569, 1.0
  %v1571 = vrcp.pop %v1570
  %v1572 = vmul.f32 1.0, %v1571
  %v1573 = vld [vmem:[#allocation4] sm:$0xff]
  %v1574 = vmul.f32 %v1565, %v1573
  %v1575 = vmul.f32 %v1559, %v1566
  %v1576 = vadd.f32 %v1574, %v1575
  %v1577 = vtanh.pop %v1576
  %v1578 = vmul.f32 %v1572, %v1577
  %1579 = vst [vmem:[#allocation4] sm:$0xff] %v1576
  %1580 = vst [vmem:[#allocation3] sm:$0xff] %v1578
  %s1581 = smul.u32 5, 4
  %s1582 = smul.addr %s1581, 8
  %s1583 = scalar_lea.vmem [#allocation2], %s1582
  %v1584 = vld [vmem:[%s1583] sm:$0xff]
  %v1585 = vld [vmem:[%s1583 + $0x8] sm:$0xff]
  %v1586 = vld [vmem:[%s1583 + $0x10] sm:$0xff]
  %v1587 = vld [vmem:[%s1583 + $0x18] sm:$0xff]
  %v1588 = vld [vmem:[#allocation3] sm:$0xff]
  %v1589 = vld [vmem:[%s2] sm:$0xff]
  %v1590 = vld [vmem:[%s2 + $0x8] sm:$0xff]
  %v1591 = vld [vmem:[%s2 + $0x10] sm:$0xff]
  %v1592 = vld [vmem:[%s2 + $0x18] sm:$0xff]
  %v1593 = vld [vmem:[%s2 + $0x20] sm:$0xff]
  %v1594 = vld [vmem:[%s2 + $0x28] sm:$0xff]
  %v1595 = vld [vmem:[%s2 + $0x30] sm:$0xff]
  %v1596 = vld [vmem:[%s2 + $0x38] sm:$0xff]
  %v1597 = vld [vmem:[%s2 + $0x40] sm:$0xff]
  %v1598 = vld [vmem:[%s2 + $0x48] sm:$0xff]
  %v1599 = vld [vmem:[%s2 + $0x50] sm:$0xff]
  %v1600 = vld [vmem:[%s2 + $0x58] sm:$0xff]
  %v1601 = vld [vmem:[%s2 + $0x60] sm:$0xff]
  %v1602 = vld [vmem:[%s2 + $0x68] sm:$0xff]
  %v1603 = vld [vmem:[%s2 + $0x70] sm:$0xff]
  %v1604 = vld [vmem:[%s2 + $0x78] sm:$0xff]
  %v1605 = vld [vmem:[%s2 + $0x80] sm:$0xff]
  %v1606 = vld [vmem:[%s2 + $0x88] sm:$0xff]
  %v1607 = vld [vmem:[%s2 + $0x90] sm:$0xff]
  %v1608 = vld [vmem:[%s2 + $0x98] sm:$0xff]
  %v1609 = vld [vmem:[%s2 + $0xa0] sm:$0xff]
  %v1610 = vld [vmem:[%s2 + $0xa8] sm:$0xff]
  %v1611 = vld [vmem:[%s2 + $0xb0] sm:$0xff]
  %v1612 = vld [vmem:[%s2 + $0xb8] sm:$0xff]
  %v1613 = vld [vmem:[%s2 + $0xc0] sm:$0xff]
  %v1614 = vld [vmem:[%s2 + $0xc8] sm:$0xff]
  %v1615 = vld [vmem:[%s2 + $0xd0] sm:$0xff]
  %v1616 = vld [vmem:[%s2 + $0xd8] sm:$0xff]
  %v1617 = vld [vmem:[%s2 + $0xe0] sm:$0xff]
  %v1618 = vld [vmem:[%s2 + $0xe8] sm:$0xff]
  %v1619 = vld [vmem:[%s2 + $0xf0] sm:$0xff]
  %v1620 = vld [vmem:[%s2 + $0xf8] sm:$0xff]
  %v1621 = vld [vmem:[%s2 + $0x100] sm:$0xff]
  %v1622 = vld [vmem:[%s2 + $0x108] sm:$0xff]
  %v1623 = vld [vmem:[%s2 + $0x110] sm:$0xff]
  %v1624 = vld [vmem:[%s2 + $0x118] sm:$0xff]
  %v1625 = vld [vmem:[%s2 + $0x120] sm:$0xff]
  %v1626 = vld [vmem:[%s2 + $0x128] sm:$0xff]
  %v1627 = vld [vmem:[%s2 + $0x130] sm:$0xff]
  %v1628 = vld [vmem:[%s2 + $0x138] sm:$0xff]
  %v1629 = vld [vmem:[%s2 + $0x140] sm:$0xff]
  %v1630 = vld [vmem:[%s2 + $0x148] sm:$0xff]
  %v1631 = vld [vmem:[%s2 + $0x150] sm:$0xff]
  %v1632 = vld [vmem:[%s2 + $0x158] sm:$0xff]
  %v1633 = vld [vmem:[%s2 + $0x160] sm:$0xff]
  %v1634 = vld [vmem:[%s2 + $0x168] sm:$0xff]
  %v1635 = vld [vmem:[%s2 + $0x170] sm:$0xff]
  %v1636 = vld [vmem:[%s2 + $0x178] sm:$0xff]
  %v1637 = vld [vmem:[%s2 + $0x180] sm:$0xff]
  %v1638 = vld [vmem:[%s2 + $0x188] sm:$0xff]
  %v1639 = vld [vmem:[%s2 + $0x190] sm:$0xff]
  %v1640 = vld [vmem:[%s2 + $0x198] sm:$0xff]
  %v1641 = vld [vmem:[%s2 + $0x1a0] sm:$0xff]
  %v1642 = vld [vmem:[%s2 + $0x1a8] sm:$0xff]
  %v1643 = vld [vmem:[%s2 + $0x1b0] sm:$0xff]
  %v1644 = vld [vmem:[%s2 + $0x1b8] sm:$0xff]
  %v1645 = vld [vmem:[%s2 + $0x1c0] sm:$0xff]
  %v1646 = vld [vmem:[%s2 + $0x1c8] sm:$0xff]
  %v1647 = vld [vmem:[%s2 + $0x1d0] sm:$0xff]
  %v1648 = vld [vmem:[%s2 + $0x1d8] sm:$0xff]
  %v1649 = vld [vmem:[%s2 + $0x1e0] sm:$0xff]
  %v1650 = vld [vmem:[%s2 + $0x1e8] sm:$0xff]
  %v1651 = vld [vmem:[%s2 + $0x1f0] sm:$0xff]
  %v1652 = vld [vmem:[%s2 + $0x1f8] sm:$0xff]
  %1653 = vmatprep.subr.mxu0 %v1590
  %1654 = vmatpush1.msra.mxu0 %v1589
  %1655 = vmatprep.subr.mxu0 %v1594
  %1656 = vmatpush1.msra.mxu0 %v1593
  %1657 = vmatprep.subr.mxu0 %v1598
  %1658 = vmatpush1.msra.mxu0 %v1597
  %1659 = vmatprep.subr.mxu0 %v1602
  %1660 = vmatpush1.msra.mxu0 %v1601
  %1661 = vmatprep.subr.mxu0 %v1606
  %1662 = vmatpush1.msra.mxu0 %v1605
  %1663 = vmatprep.subr.mxu0 %v1610
  %1664 = vmatpush1.msra.mxu0 %v1609
  %1665 = vmatprep.subr.mxu0 %v1614
  %1666 = vmatpush1.msra.mxu0 %v1613
  %1667 = vmatprep.subr.mxu0 %v1618
  %1668 = vmatpush1.msra.mxu0 %v1617
  %1669 = vmatprep.subr.mxu0 %v1622
  %1670 = vmatpush1.msra.mxu0 %v1621
  %1671 = vmatprep.subr.mxu0 %v1626
  %1672 = vmatpush1.msra.mxu0 %v1625
  %1673 = vmatprep.subr.mxu0 %v1630
  %1674 = vmatpush1.msra.mxu0 %v1629
  %1675 = vmatprep.subr.mxu0 %v1634
  %1676 = vmatpush1.msra.mxu0 %v1633
  %1677 = vmatprep.subr.mxu0 %v1638
  %1678 = vmatpush1.msra.mxu0 %v1637
  %1679 = vmatprep.subr.mxu0 %v1642
  %1680 = vmatpush1.msra.mxu0 %v1641
  %1681 = vmatprep.subr.mxu0 %v1646
  %1682 = vmatpush1.msra.mxu0 %v1645
  %1683 = vmatprep.subr.mxu0 %v1650
  %1684 = vmatpush1.msra.mxu0 %v1649
  %1685 = vmatprep.subr.mxu0 0.0
  %1686 = vmatpush1.msra.mxu0 0.0
  %1687 = vmatprep.subr.mxu0 0.0
  %1688 = vmatpush1.msra.mxu0 0.0
  %1689 = vmatprep.subr.mxu0 0.0
  %1690 = vmatpush1.msra.mxu0 0.0
  %1691 = vmatprep.subr.mxu0 0.0
  %1692 = vmatpush1.msra.mxu0 0.0
  %1693 = vmatprep.subr.mxu0 0.0
  %1694 = vmatpush1.msra.mxu0 0.0
  %1695 = vmatprep.subr.mxu0 0.0
  %1696 = vmatpush1.msra.mxu0 0.0
  %1697 = vmatprep.subr.mxu0 0.0
  %1698 = vmatpush1.msra.mxu0 0.0
  %1699 = vmatprep.subr.mxu0 0.0
  %1700 = vmatpush1.msra.mxu0 0.0
  %1701 = vmatprep.subr.mxu0 0.0
  %1702 = vmatpush1.msra.mxu0 0.0
  %1703 = vmatprep.subr.mxu0 0.0
  %1704 = vmatpush1.msra.mxu0 0.0
  %1705 = vmatprep.subr.mxu0 0.0
  %1706 = vmatpush1.msra.mxu0 0.0
  %1707 = vmatprep.subr.mxu0 0.0
  %1708 = vmatpush1.msra.mxu0 0.0
  %1709 = vmatprep.subr.mxu0 0.0
  %1710 = vmatpush1.msra.mxu0 0.0
  %1711 = vmatprep.subr.mxu0 0.0
  %1712 = vmatpush1.msra.mxu0 0.0
  %1713 = vmatprep.subr.mxu0 0.0
  %1714 = vmatpush1.msra.mxu0 0.0
  %1715 = vmatprep.subr.mxu0 0.0
  %1716 = vmatpush1.msra.mxu0 0.0
  %1717 = vmatprep.mubr.f32.mxu0 0.0
  %1718 = vmatmul.mubr.f32.gmra.mrb[0].mxu0 %v1588
  %v1719 = vpop.f32.mrb[0].mxu0
  %v1720 = vadd.f32 0.0, %v1719
  %v1721 = vpop.f32.mrb[0].mxu0
  %v1722 = vadd.f32 0.0, %v1721
  %1723 = vdwg.mxu0
  %1724 = vmatprep.subr.mxu0 %v1592
  %1725 = vmatpush1.msra.mxu0 %v1591
  %1726 = vmatprep.subr.mxu0 %v1596
  %1727 = vmatpush1.msra.mxu0 %v1595
  %1728 = vmatprep.subr.mxu0 %v1600
  %1729 = vmatpush1.msra.mxu0 %v1599
  %1730 = vmatprep.subr.mxu0 %v1604
  %1731 = vmatpush1.msra.mxu0 %v1603
  %1732 = vmatprep.subr.mxu0 %v1608
  %1733 = vmatpush1.msra.mxu0 %v1607
  %1734 = vmatprep.subr.mxu0 %v1612
  %1735 = vmatpush1.msra.mxu0 %v1611
  %1736 = vmatprep.subr.mxu0 %v1616
  %1737 = vmatpush1.msra.mxu0 %v1615
  %1738 = vmatprep.subr.mxu0 %v1620
  %1739 = vmatpush1.msra.mxu0 %v1619
  %1740 = vmatprep.subr.mxu0 %v1624
  %1741 = vmatpush1.msra.mxu0 %v1623
  %1742 = vmatprep.subr.mxu0 %v1628
  %1743 = vmatpush1.msra.mxu0 %v1627
  %1744 = vmatprep.subr.mxu0 %v1632
  %1745 = vmatpush1.msra.mxu0 %v1631
  %1746 = vmatprep.subr.mxu0 %v1636
  %1747 = vmatpush1.msra.mxu0 %v1635
  %1748 = vmatprep.subr.mxu0 %v1640
  %1749 = vmatpush1.msra.mxu0 %v1639
  %1750 = vmatprep.subr.mxu0 %v1644
  %1751 = vmatpush1.msra.mxu0 %v1643
  %1752 = vmatprep.subr.mxu0 %v1648
  %1753 = vmatpush1.msra.mxu0 %v1647
  %1754 = vmatprep.subr.mxu0 %v1652
  %1755 = vmatpush1.msra.mxu0 %v1651
  %1756 = vmatprep.subr.mxu0 0.0
  %1757 = vmatpush1.msra.mxu0 0.0
  %1758 = vmatprep.subr.mxu0 0.0
  %1759 = vmatpush1.msra.mxu0 0.0
  %1760 = vmatprep.subr.mxu0 0.0
  %1761 = vmatpush1.msra.mxu0 0.0
  %1762 = vmatprep.subr.mxu0 0.0
  %1763 = vmatpush1.msra.mxu0 0.0
  %1764 = vmatprep.subr.mxu0 0.0
  %1765 = vmatpush1.msra.mxu0 0.0
  %1766 = vmatprep.subr.mxu0 0.0
  %1767 = vmatpush1.msra.mxu0 0.0
  %1768 = vmatprep.subr.mxu0 0.0
  %1769 = vmatpush1.msra.mxu0 0.0
  %1770 = vmatprep.subr.mxu0 0.0
  %1771 = vmatpush1.msra.mxu0 0.0
  %1772 = vmatprep.subr.mxu0 0.0
  %1773 = vmatpush1.msra.mxu0 0.0
  %1774 = vmatprep.subr.mxu0 0.0
  %1775 = vmatpush1.msra.mxu0 0.0
  %1776 = vmatprep.subr.mxu0 0.0
  %1777 = vmatpush1.msra.mxu0 0.0
  %1778 = vmatprep.subr.mxu0 0.0
  %1779 = vmatpush1.msra.mxu0 0.0
  %1780 = vmatprep.subr.mxu0 0.0
  %1781 = vmatpush1.msra.mxu0 0.0
  %1782 = vmatprep.subr.mxu0 0.0
  %1783 = vmatpush1.msra.mxu0 0.0
  %1784 = vmatprep.subr.mxu0 0.0
  %1785 = vmatpush1.msra.mxu0 0.0
  %1786 = vmatprep.subr.mxu0 0.0
  %1787 = vmatpush1.msra.mxu0 0.0
  %1788 = vmatprep.mubr.f32.mxu0 0.0
  %1789 = vmatmul.mubr.f32.gmra.mrb[0].mxu0 %v1588
  %v1790 = vpop.f32.mrb[0].mxu0
  %v1791 = vadd.f32 0.0, %v1790
  %v1792 = vpop.f32.mrb[0].mxu0
  %v1793 = vadd.f32 0.0, %v1792
  %1794 = vdwg.mxu0
  %v1795 = vadd.f32 %v1584, %v1720
  %v1796 = vadd.f32 %v1585, %v1722
  %v1797 = vadd.f32 %v1586, %v1791
  %v1798 = vadd.f32 %v1587, %v1793
  %v1799 = vxor.u32 %v1795, 2147483648
  %v1800 = vmul.f32 %v1799, 1.442695
  %v1801 = vpow.pop %v1800
  %v1802 = vadd.f32 %v1801, 1.0
  %v1803 = vrcp.pop %v1802
  %v1804 = vmul.f32 1.0, %v1803
  %v1805 = vxor.u32 %v1796, 2147483648
  %v1806 = vmul.f32 %v1805, 1.442695
  %v1807 = vpow.pop %v1806
  %v1808 = vadd.f32 %v1807, 1.0
  %v1809 = vrcp.pop %v1808
  %v1810 = vmul.f32 1.0, %v1809
  %v1811 = vtanh.pop %v1797
  %v1812 = vxor.u32 %v1798, 2147483648
  %v1813 = vmul.f32 %v1812, 1.442695
  %v1814 = vpow.pop %v1813
  %v1815 = vadd.f32 %v1814, 1.0
  %v1816 = vrcp.pop %v1815
  %v1817 = vmul.f32 1.0, %v1816
  %v1818 = vld [vmem:[#allocation4] sm:$0xff]
  %v1819 = vmul.f32 %v1810, %v1818
  %v1820 = vmul.f32 %v1804, %v1811
  %v1821 = vadd.f32 %v1819, %v1820
  %v1822 = vtanh.pop %v1821
  %v1823 = vmul.f32 %v1817, %v1822
  %1824 = vst [vmem:[#allocation4] sm:$0xff] %v1821
  %1825 = vst [vmem:[#allocation3] sm:$0xff] %v1823
  %s1826 = smul.u32 6, 4
  %s1827 = smul.addr %s1826, 8
  %s1828 = scalar_lea.vmem [#allocation2], %s1827
  %v1829 = vld [vmem:[%s1828] sm:$0xff]
  %v1830 = vld [vmem:[%s1828 + $0x8] sm:$0xff]
  %v1831 = vld [vmem:[%s1828 + $0x10] sm:$0xff]
  %v1832 = vld [vmem:[%s1828 + $0x18] sm:$0xff]
  %v1833 = vld [vmem:[#allocation3] sm:$0xff]
  %v1834 = vld [vmem:[%s2] sm:$0xff]
  %v1835 = vld [vmem:[%s2 + $0x8] sm:$0xff]
  %v1836 = vld [vmem:[%s2 + $0x10] sm:$0xff]
  %v1837 = vld [vmem:[%s2 + $0x18] sm:$0xff]
  %v1838 = vld [vmem:[%s2 + $0x20] sm:$0xff]
  %v1839 = vld [vmem:[%s2 + $0x28] sm:$0xff]
  %v1840 = vld [vmem:[%s2 + $0x30] sm:$0xff]
  %v1841 = vld [vmem:[%s2 + $0x38] sm:$0xff]
  %v1842 = vld [vmem:[%s2 + $0x40] sm:$0xff]
  %v1843 = vld [vmem:[%s2 + $0x48] sm:$0xff]
  %v1844 = vld [vmem:[%s2 + $0x50] sm:$0xff]
  %v1845 = vld [vmem:[%s2 + $0x58] sm:$0xff]
  %v1846 = vld [vmem:[%s2 + $0x60] sm:$0xff]
  %v1847 = vld [vmem:[%s2 + $0x68] sm:$0xff]
  %v1848 = vld [vmem:[%s2 + $0x70] sm:$0xff]
  %v1849 = vld [vmem:[%s2 + $0x78] sm:$0xff]
  %v1850 = vld [vmem:[%s2 + $0x80] sm:$0xff]
  %v1851 = vld [vmem:[%s2 + $0x88] sm:$0xff]
  %v1852 = vld [vmem:[%s2 + $0x90] sm:$0xff]
  %v1853 = vld [vmem:[%s2 + $0x98] sm:$0xff]
  %v1854 = vld [vmem:[%s2 + $0xa0] sm:$0xff]
  %v1855 = vld [vmem:[%s2 + $0xa8] sm:$0xff]
  %v1856 = vld [vmem:[%s2 + $0xb0] sm:$0xff]
  %v1857 = vld [vmem:[%s2 + $0xb8] sm:$0xff]
  %v1858 = vld [vmem:[%s2 + $0xc0] sm:$0xff]
  %v1859 = vld [vmem:[%s2 + $0xc8] sm:$0xff]
  %v1860 = vld [vmem:[%s2 + $0xd0] sm:$0xff]
  %v1861 = vld [vmem:[%s2 + $0xd8] sm:$0xff]
  %v1862 = vld [vmem:[%s2 + $0xe0] sm:$0xff]
  %v1863 = vld [vmem:[%s2 + $0xe8] sm:$0xff]
  %v1864 = vld [vmem:[%s2 + $0xf0] sm:$0xff]
  %v1865 = vld [vmem:[%s2 + $0xf8] sm:$0xff]
  %v1866 = vld [vmem:[%s2 + $0x100] sm:$0xff]
  %v1867 = vld [vmem:[%s2 + $0x108] sm:$0xff]
  %v1868 = vld [vmem:[%s2 + $0x110] sm:$0xff]
  %v1869 = vld [vmem:[%s2 + $0x118] sm:$0xff]
  %v1870 = vld [vmem:[%s2 + $0x120] sm:$0xff]
  %v1871 = vld [vmem:[%s2 + $0x128] sm:$0xff]
  %v1872 = vld [vmem:[%s2 + $0x130] sm:$0xff]
  %v1873 = vld [vmem:[%s2 + $0x138] sm:$0xff]
  %v1874 = vld [vmem:[%s2 + $0x140] sm:$0xff]
  %v1875 = vld [vmem:[%s2 + $0x148] sm:$0xff]
  %v1876 = vld [vmem:[%s2 + $0x150] sm:$0xff]
  %v1877 = vld [vmem:[%s2 + $0x158] sm:$0xff]
  %v1878 = vld [vmem:[%s2 + $0x160] sm:$0xff]
  %v1879 = vld [vmem:[%s2 + $0x168] sm:$0xff]
  %v1880 = vld [vmem:[%s2 + $0x170] sm:$0xff]
  %v1881 = vld [vmem:[%s2 + $0x178] sm:$0xff]
  %v1882 = vld [vmem:[%s2 + $0x180] sm:$0xff]
  %v1883 = vld [vmem:[%s2 + $0x188] sm:$0xff]
  %v1884 = vld [vmem:[%s2 + $0x190] sm:$0xff]
  %v1885 = vld [vmem:[%s2 + $0x198] sm:$0xff]
  %v1886 = vld [vmem:[%s2 + $0x1a0] sm:$0xff]
  %v1887 = vld [vmem:[%s2 + $0x1a8] sm:$0xff]
  %v1888 = vld [vmem:[%s2 + $0x1b0] sm:$0xff]
  %v1889 = vld [vmem:[%s2 + $0x1b8] sm:$0xff]
  %v1890 = vld [vmem:[%s2 + $0x1c0] sm:$0xff]
  %v1891 = vld [vmem:[%s2 + $0x1c8] sm:$0xff]
  %v1892 = vld [vmem:[%s2 + $0x1d0] sm:$0xff]
  %v1893 = vld [vmem:[%s2 + $0x1d8] sm:$0xff]
  %v1894 = vld [vmem:[%s2 + $0x1e0] sm:$0xff]
  %v1895 = vld [vmem:[%s2 + $0x1e8] sm:$0xff]
  %v1896 = vld [vmem:[%s2 + $0x1f0] sm:$0xff]
  %v1897 = vld [vmem:[%s2 + $0x1f8] sm:$0xff]
  %1898 = vmatprep.subr.mxu0 %v1835
  %1899 = vmatpush1.msra.mxu0 %v1834
  %1900 = vmatprep.subr.mxu0 %v1839
  %1901 = vmatpush1.msra.mxu0 %v1838
  %1902 = vmatprep.subr.mxu0 %v1843
  %1903 = vmatpush1.msra.mxu0 %v1842
  %1904 = vmatprep.subr.mxu0 %v1847
  %1905 = vmatpush1.msra.mxu0 %v1846
  %1906 = vmatprep.subr.mxu0 %v1851
  %1907 = vmatpush1.msra.mxu0 %v1850
  %1908 = vmatprep.subr.mxu0 %v1855
  %1909 = vmatpush1.msra.mxu0 %v1854
  %1910 = vmatprep.subr.mxu0 %v1859
  %1911 = vmatpush1.msra.mxu0 %v1858
  %1912 = vmatprep.subr.mxu0 %v1863
  %1913 = vmatpush1.msra.mxu0 %v1862
  %1914 = vmatprep.subr.mxu0 %v1867
  %1915 = vmatpush1.msra.mxu0 %v1866
  %1916 = vmatprep.subr.mxu0 %v1871
  %1917 = vmatpush1.msra.mxu0 %v1870
  %1918 = vmatprep.subr.mxu0 %v1875
  %1919 = vmatpush1.msra.mxu0 %v1874
  %1920 = vmatprep.subr.mxu0 %v1879
  %1921 = vmatpush1.msra.mxu0 %v1878
  %1922 = vmatprep.subr.mxu0 %v1883
  %1923 = vmatpush1.msra.mxu0 %v1882
  %1924 = vmatprep.subr.mxu0 %v1887
  %1925 = vmatpush1.msra.mxu0 %v1886
  %1926 = vmatprep.subr.mxu0 %v1891
  %1927 = vmatpush1.msra.mxu0 %v1890
  %1928 = vmatprep.subr.mxu0 %v1895
  %1929 = vmatpush1.msra.mxu0 %v1894
  %1930 = vmatprep.subr.mxu0 0.0
  %1931 = vmatpush1.msra.mxu0 0.0
  %1932 = vmatprep.subr.mxu0 0.0
  %1933 = vmatpush1.msra.mxu0 0.0
  %1934 = vmatprep.subr.mxu0 0.0
  %1935 = vmatpush1.msra.mxu0 0.0
  %1936 = vmatprep.subr.mxu0 0.0
  %1937 = vmatpush1.msra.mxu0 0.0
  %1938 = vmatprep.subr.mxu0 0.0
  %1939 = vmatpush1.msra.mxu0 0.0
  %1940 = vmatprep.subr.mxu0 0.0
  %1941 = vmatpush1.msra.mxu0 0.0
  %1942 = vmatprep.subr.mxu0 0.0
  %1943 = vmatpush1.msra.mxu0 0.0
  %1944 = vmatprep.subr.mxu0 0.0
  %1945 = vmatpush1.msra.mxu0 0.0
  %1946 = vmatprep.subr.mxu0 0.0
  %1947 = vmatpush1.msra.mxu0 0.0
  %1948 = vmatprep.subr.mxu0 0.0
  %1949 = vmatpush1.msra.mxu0 0.0
  %1950 = vmatprep.subr.mxu0 0.0
  %1951 = vmatpush1.msra.mxu0 0.0
  %1952 = vmatprep.subr.mxu0 0.0
  %1953 = vmatpush1.msra.mxu0 0.0
  %1954 = vmatprep.subr.mxu0 0.0
  %1955 = vmatpush1.msra.mxu0 0.0
  %1956 = vmatprep.subr.mxu0 0.0
  %1957 = vmatpush1.msra.mxu0 0.0
  %1958 = vmatprep.subr.mxu0 0.0
  %1959 = vmatpush1.msra.mxu0 0.0
  %1960 = vmatprep.subr.mxu0 0.0
  %1961 = vmatpush1.msra.mxu0 0.0
  %1962 = vmatprep.mubr.f32.mxu0 0.0
  %1963 = vmatmul.mubr.f32.gmra.mrb[0].mxu0 %v1833
  %v1964 = vpop.f32.mrb[0].mxu0
  %v1965 = vadd.f32 0.0, %v1964
  %v1966 = vpop.f32.mrb[0].mxu0
  %v1967 = vadd.f32 0.0, %v1966
  %1968 = vdwg.mxu0
  %1969 = vmatprep.subr.mxu0 %v1837
  %1970 = vmatpush1.msra.mxu0 %v1836
  %1971 = vmatprep.subr.mxu0 %v1841
  %1972 = vmatpush1.msra.mxu0 %v1840
  %1973 = vmatprep.subr.mxu0 %v1845
  %1974 = vmatpush1.msra.mxu0 %v1844
  %1975 = vmatprep.subr.mxu0 %v1849
  %1976 = vmatpush1.msra.mxu0 %v1848
  %1977 = vmatprep.subr.mxu0 %v1853
  %1978 = vmatpush1.msra.mxu0 %v1852
  %1979 = vmatprep.subr.mxu0 %v1857
  %1980 = vmatpush1.msra.mxu0 %v1856
  %1981 = vmatprep.subr.mxu0 %v1861
  %1982 = vmatpush1.msra.mxu0 %v1860
  %1983 = vmatprep.subr.mxu0 %v1865
  %1984 = vmatpush1.msra.mxu0 %v1864
  %1985 = vmatprep.subr.mxu0 %v1869
  %1986 = vmatpush1.msra.mxu0 %v1868
  %1987 = vmatprep.subr.mxu0 %v1873
  %1988 = vmatpush1.msra.mxu0 %v1872
  %1989 = vmatprep.subr.mxu0 %v1877
  %1990 = vmatpush1.msra.mxu0 %v1876
  %1991 = vmatprep.subr.mxu0 %v1881
  %1992 = vmatpush1.msra.mxu0 %v1880
  %1993 = vmatprep.subr.mxu0 %v1885
  %1994 = vmatpush1.msra.mxu0 %v1884
  %1995 = vmatprep.subr.mxu0 %v1889
  %1996 = vmatpush1.msra.mxu0 %v1888
  %1997 = vmatprep.subr.mxu0 %v1893
  %1998 = vmatpush1.msra.mxu0 %v1892
  %1999 = vmatprep.subr.mxu0 %v1897
  %2000 = vmatpush1.msra.mxu0 %v1896
  %2001 = vmatprep.subr.mxu0 0.0
  %2002 = vmatpush1.msra.mxu0 0.0
  %2003 = vmatprep.subr.mxu0 0.0
  %2004 = vmatpush1.msra.mxu0 0.0
  %2005 = vmatprep.subr.mxu0 0.0
  %2006 = vmatpush1.msra.mxu0 0.0
  %2007 = vmatprep.subr.mxu0 0.0
  %2008 = vmatpush1.msra.mxu0 0.0
  %2009 = vmatprep.subr.mxu0 0.0
  %2010 = vmatpush1.msra.mxu0 0.0
  %2011 = vmatprep.subr.mxu0 0.0
  %2012 = vmatpush1.msra.mxu0 0.0
  %2013 = vmatprep.subr.mxu0 0.0
  %2014 = vmatpush1.msra.mxu0 0.0
  %2015 = vmatprep.subr.mxu0 0.0
  %2016 = vmatpush1.msra.mxu0 0.0
  %2017 = vmatprep.subr.mxu0 0.0
  %2018 = vmatpush1.msra.mxu0 0.0
  %2019 = vmatprep.subr.mxu0 0.0
  %2020 = vmatpush1.msra.mxu0 0.0
  %2021 = vmatprep.subr.mxu0 0.0
  %2022 = vmatpush1.msra.mxu0 0.0
  %2023 = vmatprep.subr.mxu0 0.0
  %2024 = vmatpush1.msra.mxu0 0.0
  %2025 = vmatprep.subr.mxu0 0.0
  %2026 = vmatpush1.msra.mxu0 0.0
  %2027 = vmatprep.subr.mxu0 0.0
  %2028 = vmatpush1.msra.mxu0 0.0
  %2029 = vmatprep.subr.mxu0 0.0
  %2030 = vmatpush1.msra.mxu0 0.0
  %2031 = vmatprep.subr.mxu0 0.0
  %2032 = vmatpush1.msra.mxu0 0.0
  %2033 = vmatprep.mubr.f32.mxu0 0.0
  %2034 = vmatmul.mubr.f32.gmra.mrb[0].mxu0 %v1833
  %v2035 = vpop.f32.mrb[0].mxu0
  %v2036 = vadd.f32 0.0, %v2035
  %v2037 = vpop.f32.mrb[0].mxu0
  %v2038 = vadd.f32 0.0, %v2037
  %2039 = vdwg.mxu0
  %v2040 = vadd.f32 %v1829, %v1965
  %v2041 = vadd.f32 %v1830, %v1967
  %v2042 = vadd.f32 %v1831, %v2036
  %v2043 = vadd.f32 %v1832, %v2038
  %v2044 = vxor.u32 %v2040, 2147483648
  %v2045 = vmul.f32 %v2044, 1.442695
  %v2046 = vpow.pop %v2045
  %v2047 = vadd.f32 %v2046, 1.0
  %v2048 = vrcp.pop %v2047
  %v2049 = vmul.f32 1.0, %v2048
  %v2050 = vxor.u32 %v2041, 2147483648
  %v2051 = vmul.f32 %v2050, 1.442695
  %v2052 = vpow.pop %v2051
  %v2053 = vadd.f32 %v2052, 1.0
  %v2054 = vrcp.pop %v2053
  %v2055 = vmul.f32 1.0, %v2054
  %v2056 = vtanh.pop %v2042
  %v2057 = vxor.u32 %v2043, 2147483648
  %v2058 = vmul.f32 %v2057, 1.442695
  %v2059 = vpow.pop %v2058
  %v2060 = vadd.f32 %v2059, 1.0
  %v2061 = vrcp.pop %v2060
  %v2062 = vmul.f32 1.0, %v2061
  %v2063 = vld [vmem:[#allocation4] sm:$0xff]
  %v2064 = vmul.f32 %v2055, %v2063
  %v2065 = vmul.f32 %v2049, %v2056
  %v2066 = vadd.f32 %v2064, %v2065
  %v2067 = vtanh.pop %v2066
  %v2068 = vmul.f32 %v2062, %v2067
  %2069 = vst [vmem:[#allocation4] sm:$0xff] %v2066
  %2070 = vst [vmem:[#allocation3] sm:$0xff] %v2068
  %s2071 = smul.u32 7, 4
  %s2072 = smul.addr %s2071, 8
  %s2073 = scalar_lea.vmem [#allocation2], %s2072
  %v2074 = vld [vmem:[%s2073] sm:$0xff]
  %v2075 = vld [vmem:[%s2073 + $0x8] sm:$0xff]
  %v2076 = vld [vmem:[%s2073 + $0x10] sm:$0xff]
  %v2077 = vld [vmem:[%s2073 + $0x18] sm:$0xff]
  %v2078 = vld [vmem:[#allocation3] sm:$0xff]
  %v2079 = vld [vmem:[%s2] sm:$0xff]
  %v2080 = vld [vmem:[%s2 + $0x8] sm:$0xff]
  %v2081 = vld [vmem:[%s2 + $0x10] sm:$0xff]
  %v2082 = vld [vmem:[%s2 + $0x18] sm:$0xff]
  %v2083 = vld [vmem:[%s2 + $0x20] sm:$0xff]
  %v2084 = vld [vmem:[%s2 + $0x28] sm:$0xff]
  %v2085 = vld [vmem:[%s2 + $0x30] sm:$0xff]
  %v2086 = vld [vmem:[%s2 + $0x38] sm:$0xff]
  %v2087 = vld [vmem:[%s2 + $0x40] sm:$0xff]
  %v2088 = vld [vmem:[%s2 + $0x48] sm:$0xff]
  %v2089 = vld [vmem:[%s2 + $0x50] sm:$0xff]
  %v2090 = vld [vmem:[%s2 + $0x58] sm:$0xff]
  %v2091 = vld [vmem:[%s2 + $0x60] sm:$0xff]
  %v2092 = vld [vmem:[%s2 + $0x68] sm:$0xff]
  %v2093 = vld [vmem:[%s2 + $0x70] sm:$0xff]
  %v2094 = vld [vmem:[%s2 + $0x78] sm:$0xff]
  %v2095 = vld [vmem:[%s2 + $0x80] sm:$0xff]
  %v2096 = vld [vmem:[%s2 + $0x88] sm:$0xff]
  %v2097 = vld [vmem:[%s2 + $0x90] sm:$0xff]
  %v2098 = vld [vmem:[%s2 + $0x98] sm:$0xff]
  %v2099 = vld [vmem:[%s2 + $0xa0] sm:$0xff]
  %v2100 = vld [vmem:[%s2 + $0xa8] sm:$0xff]
  %v2101 = vld [vmem:[%s2 + $0xb0] sm:$0xff]
  %v2102 = vld [vmem:[%s2 + $0xb8] sm:$0xff]
  %v2103 = vld [vmem:[%s2 + $0xc0] sm:$0xff]
  %v2104 = vld [vmem:[%s2 + $0xc8] sm:$0xff]
  %v2105 = vld [vmem:[%s2 + $0xd0] sm:$0xff]
  %v2106 = vld [vmem:[%s2 + $0xd8] sm:$0xff]
  %v2107 = vld [vmem:[%s2 + $0xe0] sm:$0xff]
  %v2108 = vld [vmem:[%s2 + $0xe8] sm:$0xff]
  %v2109 = vld [vmem:[%s2 + $0xf0] sm:$0xff]
  %v2110 = vld [vmem:[%s2 + $0xf8] sm:$0xff]
  %v2111 = vld [vmem:[%s2 + $0x100] sm:$0xff]
  %v2112 = vld [vmem:[%s2 + $0x108] sm:$0xff]
  %v2113 = vld [vmem:[%s2 + $0x110] sm:$0xff]
  %v2114 = vld [vmem:[%s2 + $0x118] sm:$0xff]
  %v2115 = vld [vmem:[%s2 + $0x120] sm:$0xff]
  %v2116 = vld [vmem:[%s2 + $0x128] sm:$0xff]
  %v2117 = vld [vmem:[%s2 + $0x130] sm:$0xff]
  %v2118 = vld [vmem:[%s2 + $0x138] sm:$0xff]
  %v2119 = vld [vmem:[%s2 + $0x140] sm:$0xff]
  %v2120 = vld [vmem:[%s2 + $0x148] sm:$0xff]
  %v2121 = vld [vmem:[%s2 + $0x150] sm:$0xff]
  %v2122 = vld [vmem:[%s2 + $0x158] sm:$0xff]
  %v2123 = vld [vmem:[%s2 + $0x160] sm:$0xff]
  %v2124 = vld [vmem:[%s2 + $0x168] sm:$0xff]
  %v2125 = vld [vmem:[%s2 + $0x170] sm:$0xff]
  %v2126 = vld [vmem:[%s2 + $0x178] sm:$0xff]
  %v2127 = vld [vmem:[%s2 + $0x180] sm:$0xff]
  %v2128 = vld [vmem:[%s2 + $0x188] sm:$0xff]
  %v2129 = vld [vmem:[%s2 + $0x190] sm:$0xff]
  %v2130 = vld [vmem:[%s2 + $0x198] sm:$0xff]
  %v2131 = vld [vmem:[%s2 + $0x1a0] sm:$0xff]
  %v2132 = vld [vmem:[%s2 + $0x1a8] sm:$0xff]
  %v2133 = vld [vmem:[%s2 + $0x1b0] sm:$0xff]
  %v2134 = vld [vmem:[%s2 + $0x1b8] sm:$0xff]
  %v2135 = vld [vmem:[%s2 + $0x1c0] sm:$0xff]
  %v2136 = vld [vmem:[%s2 + $0x1c8] sm:$0xff]
  %v2137 = vld [vmem:[%s2 + $0x1d0] sm:$0xff]
  %v2138 = vld [vmem:[%s2 + $0x1d8] sm:$0xff]
  %v2139 = vld [vmem:[%s2 + $0x1e0] sm:$0xff]
  %v2140 = vld [vmem:[%s2 + $0x1e8] sm:$0xff]
  %v2141 = vld [vmem:[%s2 + $0x1f0] sm:$0xff]
  %v2142 = vld [vmem:[%s2 + $0x1f8] sm:$0xff]
  %2143 = vmatprep.subr.mxu0 %v2080
  %2144 = vmatpush1.msra.mxu0 %v2079
  %2145 = vmatprep.subr.mxu0 %v2084
  %2146 = vmatpush1.msra.mxu0 %v2083
  %2147 = vmatprep.subr.mxu0 %v2088
  %2148 = vmatpush1.msra.mxu0 %v2087
  %2149 = vmatprep.subr.mxu0 %v2092
  %2150 = vmatpush1.msra.mxu0 %v2091
  %2151 = vmatprep.subr.mxu0 %v2096
  %2152 = vmatpush1.msra.mxu0 %v2095
  %2153 = vmatprep.subr.mxu0 %v2100
  %2154 = vmatpush1.msra.mxu0 %v2099
  %2155 = vmatprep.subr.mxu0 %v2104
  %2156 = vmatpush1.msra.mxu0 %v2103
  %2157 = vmatprep.subr.mxu0 %v2108
  %2158 = vmatpush1.msra.mxu0 %v2107
  %2159 = vmatprep.subr.mxu0 %v2112
  %2160 = vmatpush1.msra.mxu0 %v2111
  %2161 = vmatprep.subr.mxu0 %v2116
  %2162 = vmatpush1.msra.mxu0 %v2115
  %2163 = vmatprep.subr.mxu0 %v2120
  %2164 = vmatpush1.msra.mxu0 %v2119
  %2165 = vmatprep.subr.mxu0 %v2124
  %2166 = vmatpush1.msra.mxu0 %v2123
  %2167 = vmatprep.subr.mxu0 %v2128
  %2168 = vmatpush1.msra.mxu0 %v2127
  %2169 = vmatprep.subr.mxu0 %v2132
  %2170 = vmatpush1.msra.mxu0 %v2131
  %2171 = vmatprep.subr.mxu0 %v2136
  %2172 = vmatpush1.msra.mxu0 %v2135
  %2173 = vmatprep.subr.mxu0 %v2140
  %2174 = vmatpush1.msra.mxu0 %v2139
  %2175 = vmatprep.subr.mxu0 0.0
  %2176 = vmatpush1.msra.mxu0 0.0
  %2177 = vmatprep.subr.mxu0 0.0
  %2178 = vmatpush1.msra.mxu0 0.0
  %2179 = vmatprep.subr.mxu0 0.0
  %2180 = vmatpush1.msra.mxu0 0.0
  %2181 = vmatprep.subr.mxu0 0.0
  %2182 = vmatpush1.msra.mxu0 0.0
  %2183 = vmatprep.subr.mxu0 0.0
  %2184 = vmatpush1.msra.mxu0 0.0
  %2185 = vmatprep.subr.mxu0 0.0
  %2186 = vmatpush1.msra.mxu0 0.0
  %2187 = vmatprep.subr.mxu0 0.0
  %2188 = vmatpush1.msra.mxu0 0.0
  %2189 = vmatprep.subr.mxu0 0.0
  %2190 = vmatpush1.msra.mxu0 0.0
  %2191 = vmatprep.subr.mxu0 0.0
  %2192 = vmatpush1.msra.mxu0 0.0
  %2193 = vmatprep.subr.mxu0 0.0
  %2194 = vmatpush1.msra.mxu0 0.0
  %2195 = vmatprep.subr.mxu0 0.0
  %2196 = vmatpush1.msra.mxu0 0.0
  %2197 = vmatprep.subr.mxu0 0.0
  %2198 = vmatpush1.msra.mxu0 0.0
  %2199 = vmatprep.subr.mxu0 0.0
  %2200 = vmatpush1.msra.mxu0 0.0
  %2201 = vmatprep.subr.mxu0 0.0
  %2202 = vmatpush1.msra.mxu0 0.0
  %2203 = vmatprep.subr.mxu0 0.0
  %2204 = vmatpush1.msra.mxu0 0.0
  %2205 = vmatprep.subr.mxu0 0.0
  %2206 = vmatpush1.msra.mxu0 0.0
  %2207 = vmatprep.mubr.f32.mxu0 0.0
  %2208 = vmatmul.mubr.f32.gmra.mrb[0].mxu0 %v2078
  %v2209 = vpop.f32.mrb[0].mxu0
  %v2210 = vadd.f32 0.0, %v2209
  %v2211 = vpop.f32.mrb[0].mxu0
  %v2212 = vadd.f32 0.0, %v2211
  %2213 = vdwg.mxu0
  %2214 = vmatprep.subr.mxu0 %v2082
  %2215 = vmatpush1.msra.mxu0 %v2081
  %2216 = vmatprep.subr.mxu0 %v2086
  %2217 = vmatpush1.msra.mxu0 %v2085
  %2218 = vmatprep.subr.mxu0 %v2090
  %2219 = vmatpush1.msra.mxu0 %v2089
  %2220 = vmatprep.subr.mxu0 %v2094
  %2221 = vmatpush1.msra.mxu0 %v2093
  %2222 = vmatprep.subr.mxu0 %v2098
  %2223 = vmatpush1.msra.mxu0 %v2097
  %2224 = vmatprep.subr.mxu0 %v2102
  %2225 = vmatpush1.msra.mxu0 %v2101
  %2226 = vmatprep.subr.mxu0 %v2106
  %2227 = vmatpush1.msra.mxu0 %v2105
  %2228 = vmatprep.subr.mxu0 %v2110
  %2229 = vmatpush1.msra.mxu0 %v2109
  %2230 = vmatprep.subr.mxu0 %v2114
  %2231 = vmatpush1.msra.mxu0 %v2113
  %2232 = vmatprep.subr.mxu0 %v2118
  %2233 = vmatpush1.msra.mxu0 %v2117
  %2234 = vmatprep.subr.mxu0 %v2122
  %2235 = vmatpush1.msra.mxu0 %v2121
  %2236 = vmatprep.subr.mxu0 %v2126
  %2237 = vmatpush1.msra.mxu0 %v2125
  %2238 = vmatprep.subr.mxu0 %v2130
  %2239 = vmatpush1.msra.mxu0 %v2129
  %2240 = vmatprep.subr.mxu0 %v2134
  %2241 = vmatpush1.msra.mxu0 %v2133
  %2242 = vmatprep.subr.mxu0 %v2138
  %2243 = vmatpush1.msra.mxu0 %v2137
  %2244 = vmatprep.subr.mxu0 %v2142
  %2245 = vmatpush1.msra.mxu0 %v2141
  %2246 = vmatprep.subr.mxu0 0.0
  %2247 = vmatpush1.msra.mxu0 0.0
  %2248 = vmatprep.subr.mxu0 0.0
  %2249 = vmatpush1.msra.mxu0 0.0
  %2250 = vmatprep.subr.mxu0 0.0
  %2251 = vmatpush1.msra.mxu0 0.0
  %2252 = vmatprep.subr.mxu0 0.0
  %2253 = vmatpush1.msra.mxu0 0.0
  %2254 = vmatprep.subr.mxu0 0.0
  %2255 = vmatpush1.msra.mxu0 0.0
  %2256 = vmatprep.subr.mxu0 0.0
  %2257 = vmatpush1.msra.mxu0 0.0
  %2258 = vmatprep.subr.mxu0 0.0
  %2259 = vmatpush1.msra.mxu0 0.0
  %2260 = vmatprep.subr.mxu0 0.0
  %2261 = vmatpush1.msra.mxu0 0.0
  %2262 = vmatprep.subr.mxu0 0.0
  %2263 = vmatpush1.msra.mxu0 0.0
  %2264 = vmatprep.subr.mxu0 0.0
  %2265 = vmatpush1.msra.mxu0 0.0
  %2266 = vmatprep.subr.mxu0 0.0
  %2267 = vmatpush1.msra.mxu0 0.0
  %2268 = vmatprep.subr.mxu0 0.0
  %2269 = vmatpush1.msra.mxu0 0.0
  %2270 = vmatprep.subr.mxu0 0.0
  %2271 = vmatpush1.msra.mxu0 0.0
  %2272 = vmatprep.subr.mxu0 0.0
  %2273 = vmatpush1.msra.mxu0 0.0
  %2274 = vmatprep.subr.mxu0 0.0
  %2275 = vmatpush1.msra.mxu0 0.0
  %2276 = vmatprep.subr.mxu0 0.0
  %2277 = vmatpush1.msra.mxu0 0.0
  %2278 = vmatprep.mubr.f32.mxu0 0.0
  %2279 = vmatmul.mubr.f32.gmra.mrb[0].mxu0 %v2078
  %v2280 = vpop.f32.mrb[0].mxu0
  %v2281 = vadd.f32 0.0, %v2280
  %v2282 = vpop.f32.mrb[0].mxu0
  %v2283 = vadd.f32 0.0, %v2282
  %2284 = vdwg.mxu0
  %v2285 = vadd.f32 %v2074, %v2210
  %v2286 = vadd.f32 %v2075, %v2212
  %v2287 = vadd.f32 %v2076, %v2281
  %v2288 = vadd.f32 %v2077, %v2283
  %v2289 = vxor.u32 %v2285, 2147483648
  %v2290 = vmul.f32 %v2289, 1.442695
  %v2291 = vpow.pop %v2290
  %v2292 = vadd.f32 %v2291, 1.0
  %v2293 = vrcp.pop %v2292
  %v2294 = vmul.f32 1.0, %v2293
  %v2295 = vxor.u32 %v2286, 2147483648
  %v2296 = vmul.f32 %v2295, 1.442695
  %v2297 = vpow.pop %v2296
  %v2298 = vadd.f32 %v2297, 1.0
  %v2299 = vrcp.pop %v2298
  %v2300 = vmul.f32 1.0, %v2299
  %v2301 = vtanh.pop %v2287
  %v2302 = vxor.u32 %v2288, 2147483648
  %v2303 = vmul.f32 %v2302, 1.442695
  %v2304 = vpow.pop %v2303
  %v2305 = vadd.f32 %v2304, 1.0
  %v2306 = vrcp.pop %v2305
  %v2307 = vmul.f32 1.0, %v2306
  %v2308 = vld [vmem:[#allocation4] sm:$0xff]
  %v2309 = vmul.f32 %v2300, %v2308
  %v2310 = vmul.f32 %v2294, %v2301
  %v2311 = vadd.f32 %v2309, %v2310
  %v2312 = vtanh.pop %v2311
  %v2313 = vmul.f32 %v2307, %v2312
  %2314 = vst [vmem:[#allocation4] sm:$0xff] %v2311
  %2315 = vst [vmem:[#allocation3] sm:$0xff] %v2313
  // Predicated region
  $region38: #{text_subnet_forward.1} parent=0 // pred_check
    %p2316 = pneg %p29
  $region39: #{text_subnet_forward.1} parent=0 // pred_check_branch
    %2318 = sbr.rel (%p2316) target = $region41
  $region40: #{text_subnet_forward.1} parent=0 // pred_region
    %v2319 = vld [vmem:[#allocation3] sm:$0xff]
    %v2320 = vld [vmem:[%s4] sm:$0xff]
    %v2321 = vld [vmem:[%s4 + $0x8] sm:$0xff]
    %v2322 = vld [vmem:[%s4 + $0x10] sm:$0xff]
    %v2323 = vld [vmem:[%s4 + $0x18] sm:$0xff]
    %v2324 = vld [vmem:[%s4 + $0x20] sm:$0xff]
    %v2325 = vld [vmem:[%s4 + $0x28] sm:$0xff]
    %v2326 = vld [vmem:[%s4 + $0x30] sm:$0xff]
    %v2327 = vld [vmem:[%s4 + $0x38] sm:$0xff]
    %v2328 = vld [vmem:[%s4 + $0x40] sm:$0xff]
    %v2329 = vld [vmem:[%s4 + $0x48] sm:$0xff]
    %v2330 = vld [vmem:[%s4 + $0x50] sm:$0xff]
    %v2331 = vld [vmem:[%s4 + $0x58] sm:$0xff]
    %v2332 = vld [vmem:[%s4 + $0x60] sm:$0xff]
    %v2333 = vld [vmem:[%s4 + $0x68] sm:$0xff]
    %v2334 = vld [vmem:[%s4 + $0x70] sm:$0xff]
    %v2335 = vld [vmem:[%s4 + $0x78] sm:$0xff]
    %v2336 = vld [vmem:[%s5] sm:$0x1]
    %v2338 = vlaneseq
    %v2339 = vshrl.u32 %v2338, 7
    %v2340 = vsub.s32 0, %v2339
    %v2341 = vrot.slane %v2336, %v2340
    %2343 = vmatprep.subr.mxu0 0.0
    %2344 = vmatpush1.msra.mxu0 %v2320
    %2345 = vmatprep.subr.mxu0 0.0
    %2346 = vmatpush1.msra.mxu0 %v2321
    %2347 = vmatprep.subr.mxu0 0.0
    %2348 = vmatpush1.msra.mxu0 %v2322
    %2349 = vmatprep.subr.mxu0 0.0
    %2350 = vmatpush1.msra.mxu0 %v2323
    %2351 = vmatprep.subr.mxu0 0.0
    %2352 = vmatpush1.msra.mxu0 %v2324
    %2353 = vmatprep.subr.mxu0 0.0
    %2354 = vmatpush1.msra.mxu0 %v2325
    %2355 = vmatprep.subr.mxu0 0.0
    %2356 = vmatpush1.msra.mxu0 %v2326
    %2357 = vmatprep.subr.mxu0 0.0
    %2358 = vmatpush1.msra.mxu0 %v2327
    %2359 = vmatprep.subr.mxu0 0.0
    %2360 = vmatpush1.msra.mxu0 %v2328
    %2361 = vmatprep.subr.mxu0 0.0
    %2362 = vmatpush1.msra.mxu0 %v2329
    %2363 = vmatprep.subr.mxu0 0.0
    %2364 = vmatpush1.msra.mxu0 %v2330
    %2365 = vmatprep.subr.mxu0 0.0
    %2366 = vmatpush1.msra.mxu0 %v2331
    %2367 = vmatprep.subr.mxu0 0.0
    %2368 = vmatpush1.msra.mxu0 %v2332
    %2369 = vmatprep.subr.mxu0 0.0
    %2370 = vmatpush1.msra.mxu0 %v2333
    %2371 = vmatprep.subr.mxu0 0.0
    %2372 = vmatpush1.msra.mxu0 %v2334
    %2373 = vmatprep.subr.mxu0 0.0
    %2374 = vmatpush1.msra.mxu0 %v2335
    %2375 = vmatprep.subr.mxu0 0.0
    %2376 = vmatpush1.msra.mxu0 0.0
    %2377 = vmatprep.subr.mxu0 0.0
    %2378 = vmatpush1.msra.mxu0 0.0
    %2379 = vmatprep.subr.mxu0 0.0
    %2380 = vmatpush1.msra.mxu0 0.0
    %2381 = vmatprep.subr.mxu0 0.0
    %2382 = vmatpush1.msra.mxu0 0.0
    %2383 = vmatprep.subr.mxu0 0.0
    %2384 = vmatpush1.msra.mxu0 0.0
    %2385 = vmatprep.subr.mxu0 0.0
    %2386 = vmatpush1.msra.mxu0 0.0
    %2387 = vmatprep.subr.mxu0 0.0
    %2388 = vmatpush1.msra.mxu0 0.0
    %2389 = vmatprep.subr.mxu0 0.0
    %2390 = vmatpush1.msra.mxu0 0.0
    %2391 = vmatprep.subr.mxu0 0.0
    %2392 = vmatpush1.msra.mxu0 0.0
    %2393 = vmatprep.subr.mxu0 0.0
    %2394 = vmatpush1.msra.mxu0 0.0
    %2395 = vmatprep.subr.mxu0 0.0
    %2396 = vmatpush1.msra.mxu0 0.0
    %2397 = vmatprep.subr.mxu0 0.0
    %2398 = vmatpush1.msra.mxu0 0.0
    %2399 = vmatprep.subr.mxu0 0.0
    %2400 = vmatpush1.msra.mxu0 0.0
    %2401 = vmatprep.subr.mxu0 0.0
    %2402 = vmatpush1.msra.mxu0 0.0
    %2403 = vmatprep.subr.mxu0 0.0
    %2404 = vmatpush1.msra.mxu0 0.0
    %2405 = vmatprep.subr.mxu0 0.0
    %2406 = vmatpush1.msra.mxu0 0.0
    %2407 = vmatprep.mubr.f32.mxu0 0.0
    %2408 = vmatmul.mubr.f32.gmra.mrb[0].mxu0 %v2319
    %v2409 = vpop.f32.mrb[0].mxu0
    %v2410 = vadd.f32 %v2341, %v2409
    %v2411 = vpop.f32.mrb[0].mxu0
    %2412 = vdwg.mxu0
    %v2413 = vmax.f32 %v2410, 0.0
    %v2414 = vld [vmem:[%s6] sm:$0xff]
    %v2415 = vld [vmem:[%s6 + $0x8] sm:$0xff]
    %v2416 = vld [vmem:[%s6 + $0x10] sm:$0xff]
    %v2417 = vld [vmem:[%s6 + $0x18] sm:$0xff]
    %v2418 = vld [vmem:[%s6 + $0x20] sm:$0xff]
    %v2419 = vld [vmem:[%s6 + $0x28] sm:$0xff]
    %v2420 = vld [vmem:[%s6 + $0x30] sm:$0xff]
    %v2421 = vld [vmem:[%s6 + $0x38] sm:$0xff]
    %v2422 = vld [vmem:[%s6 + $0x40] sm:$0xff]
    %v2423 = vld [vmem:[%s6 + $0x48] sm:$0xff]
    %v2424 = vld [vmem:[%s6 + $0x50] sm:$0xff]
    %v2425 = vld [vmem:[%s6 + $0x58] sm:$0xff]
    %v2426 = vld [vmem:[%s6 + $0x60] sm:$0xff]
    %v2427 = vld [vmem:[%s6 + $0x68] sm:$0xff]
    %v2428 = vld [vmem:[%s6 + $0x70] sm:$0xff]
    %v2429 = vld [vmem:[%s6 + $0x78] sm:$0xff]
    %v2430 = vld [vmem:[%s7] sm:$0x1]
    %v2432 = vlaneseq
    %v2433 = vshrl.u32 %v2432, 7
    %v2434 = vsub.s32 0, %v2433
    %v2435 = vrot.slane %v2430, %v2434
    %2437 = vmatprep.subr.mxu0 0.0
    %2438 = vmatpush1.msra.mxu0 %v2414
    %2439 = vmatprep.subr.mxu0 0.0
    %2440 = vmatpush1.msra.mxu0 %v2415
    %2441 = vmatprep.subr.mxu0 0.0
    %2442 = vmatpush1.msra.mxu0 %v2416
    %2443 = vmatprep.subr.mxu0 0.0
    %2444 = vmatpush1.msra.mxu0 %v2417
    %2445 = vmatprep.subr.mxu0 0.0
    %2446 = vmatpush1.msra.mxu0 %v2418
    %2447 = vmatprep.subr.mxu0 0.0
    %2448 = vmatpush1.msra.mxu0 %v2419
    %2449 = vmatprep.subr.mxu0 0.0
    %2450 = vmatpush1.msra.mxu0 %v2420
    %2451 = vmatprep.subr.mxu0 0.0
    %2452 = vmatpush1.msra.mxu0 %v2421
    %2453 = vmatprep.subr.mxu0 0.0
    %2454 = vmatpush1.msra.mxu0 %v2422
    %2455 = vmatprep.subr.mxu0 0.0
    %2456 = vmatpush1.msra.mxu0 %v2423
    %2457 = vmatprep.subr.mxu0 0.0
    %2458 = vmatpush1.msra.mxu0 %v2424
    %2459 = vmatprep.subr.mxu0 0.0
    %2460 = vmatpush1.msra.mxu0 %v2425
    %2461 = vmatprep.subr.mxu0 0.0
    %2462 = vmatpush1.msra.mxu0 %v2426
    %2463 = vmatprep.subr.mxu0 0.0
    %2464 = vmatpush1.msra.mxu0 %v2427
    %2465 = vmatprep.subr.mxu0 0.0
    %2466 = vmatpush1.msra.mxu0 %v2428
    %2467 = vmatprep.subr.mxu0 0.0
    %2468 = vmatpush1.msra.mxu0 %v2429
    %2469 = vmatprep.subr.mxu0 0.0
    %2470 = vmatpush1.msra.mxu0 0.0
    %2471 = vmatprep.subr.mxu0 0.0
    %2472 = vmatpush1.msra.mxu0 0.0
    %2473 = vmatprep.subr.mxu0 0.0
    %2474 = vmatpush1.msra.mxu0 0.0
    %2475 = vmatprep.subr.mxu0 0.0
    %2476 = vmatpush1.msra.mxu0 0.0
    %2477 = vmatprep.subr.mxu0 0.0
    %2478 = vmatpush1.msra.mxu0 0.0
    %2479 = vmatprep.subr.mxu0 0.0
    %2480 = vmatpush1.msra.mxu0 0.0
    %2481 = vmatprep.subr.mxu0 0.0
    %2482 = vmatpush1.msra.mxu0 0.0
    %2483 = vmatprep.subr.mxu0 0.0
    %2484 = vmatpush1.msra.mxu0 0.0
    %2485 = vmatprep.subr.mxu0 0.0
    %2486 = vmatpush1.msra.mxu0 0.0
    %2487 = vmatprep.subr.mxu0 0.0
    %2488 = vmatpush1.msra.mxu0 0.0
    %2489 = vmatprep.subr.mxu0 0.0
    %2490 = vmatpush1.msra.mxu0 0.0
    %2491 = vmatprep.subr.mxu0 0.0
    %2492 = vmatpush1.msra.mxu0 0.0
    %2493 = vmatprep.subr.mxu0 0.0
    %2494 = vmatpush1.msra.mxu0 0.0
    %2495 = vmatprep.subr.mxu0 0.0
    %2496 = vmatpush1.msra.mxu0 0.0
    %2497 = vmatprep.subr.mxu0 0.0
    %2498 = vmatpush1.msra.mxu0 0.0
    %2499 = vmatprep.subr.mxu0 0.0
    %2500 = vmatpush1.msra.mxu0 0.0
    %2501 = vmatprep.mubr.f32.mxu0 0.0
    %2502 = vmatmul.mubr.f32.gmra.mrb[0].mxu0 %v2413
    %v2503 = vpop.f32.mrb[0].mxu0
    %v2504 = vadd.f32 %v2435, %v2503
    %v2505 = vpop.f32.mrb[0].mxu0
    %2506 = vdwg.mxu0
    %v2507 = vmax.f32 %v2504, 0.0
    %2508 = vst [vmem:[%s8] sm:$0xff] %v2507
  $region41: #{text_subnet_forward.1} parent=0 // pred_fallthru
    _
  // Predicated region
  $region42: #{text_subnet_forward.1} parent=0 // pred_check
    _
  $region43: #{text_subnet_forward.1} parent=0 // pred_check_branch
    %2510 = sbr.rel (0) target = $region45
  $region44: #{text_subnet_forward.1} parent=0 // pred_region
    _
  $region45: #{text_subnet_forward.1} parent=0 // pred_fallthru
    _
  // Predicated region
  $region46: #{text_subnet_forward.1} parent=0 // pred_check
    _
  $region47: #{text_subnet_forward.1} parent=0 // pred_check_branch
    %2512 = sbr.rel (0) target = $region49
  $region48: #{text_subnet_forward.1} parent=0 // pred_region
    _
  $region49: #{text_subnet_forward.1} parent=0 // pred_fallthru
    _

</llo_original>
